<compile_context>
chip_gen: v5e
topology: v5e:2x2
jax: 0.10.0
libtpu: 0.0.40
codegen_flags: <defaults>
</compile_context>

<pallas_src>
import functools
import math

import jax
import jax.numpy as jnp
from jax.experimental import pallas as pl
from jax.experimental.pallas import tpu as pltpu

EPS = 1e-5  # PyTorch nn.LayerNorm default
F32 = jnp.float32
BF16 = jnp.bfloat16


# ----------------------------- in-kernel helpers -----------------------------
def _layernorm(x, g, b):
    x = x.astype(F32)
    mu = jnp.mean(x, axis=-1, keepdims=True)
    var = jnp.mean((x - mu) ** 2, axis=-1, keepdims=True)
    return (x - mu) * jax.lax.rsqrt(var + EPS) * g + b


_ERF_P = 0.3275911
_ERF_A = (0.254829592, -0.284496736, 1.421413741, -1.453152027, 1.061405429)


def _erf(x):
    # Abramowitz & Stegun 7.1.26 rational approximation, |err| < 1.5e-7.
    # Built only from exp / mul / add / div / where so it always lowers on Mosaic.
    sgn = jnp.where(x >= 0.0, 1.0, -1.0)
    a = jnp.abs(x)
    t = 1.0 / (1.0 + _ERF_P * a)
    a1, a2, a3, a4, a5 = _ERF_A
    poly = t * (a1 + t * (a2 + t * (a3 + t * (a4 + t * a5))))
    return sgn * (1.0 - poly * jnp.exp(-a * a))


def _gelu_exact(x):
    # Matches PyTorch nn.GELU default (erf formulation).
    return 0.5 * x * (1.0 + _erf(x * 0.7071067811865476))


# ------------------------------- fused ViT kernel -------------------------------
def vit_kernel(num_heads,
               patches_ref,
               ln0g_ref, ln0b_ref, w_emb_ref, b_emb_ref, ln1g_ref, ln1b_ref, pos_ref,
               vecs_ref, wqkv_ref, bqkv_ref, wo_ref, w1_ref, b1_ref, w2_ref,
               lnfg_ref, lnfb_ref, wcls_ref, bcls_ref,
               out_ref, tok_ref):
    l = pl.program_id(1)
    nl = pl.num_programs(1)

    Bt, N, D = tok_ref.shape
    P = patches_ref.shape[2]
    H = num_heads
    dh = D // H

    # ---- patch embedding + positional embedding (once per batch tile) ----
    @pl.when(l == 0)
    def _():
        p = patches_ref[...].reshape(Bt * N, P)
        x = _layernorm(p, ln0g_ref[...], ln0b_ref[...])
        x = jnp.dot(x.astype(BF16), w_emb_ref[...],
                    preferred_element_type=F32) + b_emb_ref[...]
        x = _layernorm(x, ln1g_ref[...], ln1b_ref[...])
        tok_ref[...] = x.reshape(Bt, N, D) + pos_ref[...]   # dropout = identity (eval)

    x = tok_ref[...]                                          # (Bt, N, D) f32, VMEM-resident
    xf = x.reshape(Bt * N, D)

    vecs = vecs_ref[0]                                        # (6, D) packed per-layer vectors
    ln_a_g, ln_a_b = vecs[0:1], vecs[1:2]
    b_o = vecs[2:3]
    ln_m_g, ln_m_b = vecs[3:4], vecs[4:5]
    b_fc2 = vecs[5:6]

    # ---- attention sub-block (pre-LN) ----
    h = _layernorm(xf, ln_a_g, ln_a_b)
    # one fused lane-dense QKV projection; 1/sqrt(dh) folded into the Q columns.
    qkv = jnp.dot(h.astype(BF16), wqkv_ref[0],
                  preferred_element_type=F32) + bqkv_ref[0]    # (Bt*N, 3D)
    qkv = qkv.reshape(Bt, N, 3 * D)

    ctx_heads = []
    for hh in range(H):
        q = qkv[:, :, hh * dh:(hh + 1) * dh]                  # (Bt, N, dh)
        k = qkv[:, :, D + hh * dh:D + (hh + 1) * dh]
        v = qkv[:, :, 2 * D + hh * dh:2 * D + (hh + 1) * dh]
        s = jnp.einsum("bqe,bke->bqk", q.astype(BF16), k.astype(BF16),
                       preferred_element_type=F32)             # (Bt, N, N) f32
        s = s - jnp.max(s, axis=-1, keepdims=True)
        p = jnp.exp(s)
        denom = jnp.sum(p, axis=-1, keepdims=True)             # (Bt, N, 1)
        c = jnp.einsum("bqk,bke->bqe", p.astype(BF16), v.astype(BF16),
                       preferred_element_type=F32)             # (Bt, N, dh)
        # deferred softmax normalization: scale the (N, dh) context, not (N, N) probs
        ctx_heads.append(c * pl.reciprocal(denom, approx=True))
    ctx = jnp.concatenate(ctx_heads, axis=-1).reshape(Bt * N, D)

    # single D-deep output projection on the concatenated heads
    attn = jnp.dot(ctx.astype(BF16), wo_ref[0],
                   preferred_element_type=F32) + b_o
    xf = xf + attn

    # ---- MLP sub-block (pre-LN) ----
    h = _layernorm(xf, ln_m_g, ln_m_b)
    h = jnp.dot(h.astype(BF16), w1_ref[0], preferred_element_type=F32) + b1_ref[0]
    h = _gelu_exact(h)
    h = jnp.dot(h.astype(BF16), w2_ref[0], preferred_element_type=F32) + b_fc2
    xf = xf + h
    tok_ref[...] = xf.reshape(Bt, N, D)

    # ---- classifier head (once, after the last layer; lane-padded logits) ----
    @pl.when(l == nl - 1)
    def _():
        hc = _layernorm(xf, lnfg_ref[...], lnfb_ref[...])
        logits = jnp.dot(hc.astype(BF16), wcls_ref[...],
                         preferred_element_type=F32) + bcls_ref[...]
        out_ref[...] = logits.reshape(Bt, N, -1)


# -------------------------------- spec helpers --------------------------------
def _const_spec(shape):                       # same block for every (b, l)
    n = len(shape)
    return pl.BlockSpec(tuple(shape), lambda b, l, _n=n: (0,) * _n)


def _batch_spec(bt, inner_shape):             # indexed by batch tile b
    n = len(inner_shape)
    return pl.BlockSpec((bt,) + tuple(inner_shape),
                        lambda b, l, _n=n: (b,) + (0,) * _n)


def _layer_spec(shape):                       # indexed by layer l
    n = len(shape) - 1
    return pl.BlockSpec((1,) + tuple(shape[1:]),
                        lambda b, l, _n=n: (l,) + (0,) * _n)


def _nbytes(a):
    return math.prod(a.shape) * jnp.dtype(a.dtype).itemsize


def _vmem_limit_bytes(need):
    try:
        cap = int(pltpu.get_tpu_info().vmem_capacity_bytes)
    except Exception:
        cap = 64 << 20                        # conservative: v7x per-TC VMEM
    ceiling = int(cap * 4 // 5)               # leave headroom for the compiler
    return int(min(max(need, 16 << 20), ceiling))


# ------------------------------- parameter setup -------------------------------
def init_params(key, *, dim_patch, dim_hidden, num_patches, num_classes, num_layers):
    ks = iter(jax.random.split(key, 4 + 4 * num_layers))
    std = 0.02
    P, D, C = dim_patch, dim_hidden, num_classes
    params = {
        "ln0_g": jnp.ones((1, P), F32), "ln0_b": jnp.zeros((1, P), F32),
        "w_emb": std * jax.random.normal(next(ks), (P, D), F32),
        "b_emb": jnp.zeros((1, D), F32),
        "ln1_g": jnp.ones((1, D), F32), "ln1_b": jnp.zeros((1, D), F32),
        "pos":   jax.random.normal(next(ks), (num_patches, D), F32),
        "ln_f_g": jnp.ones((1, D), F32), "ln_f_b": jnp.zeros((1, D), F32),
        "w_cls": std * jax.random.normal(next(ks), (D, C), F32),
        "b_cls": jnp.zeros((1, C), F32),
        "layers": [],
    }
    out_std = 0.02 / math.sqrt(2 * num_layers)
    for _ in range(num_layers):
        params["layers"].append({
            "ln_a_g": jnp.ones((1, D), F32), "ln_a_b": jnp.zeros((1, D), F32),
            "w_qkv": std * jax.random.normal(next(ks), (D, 3 * D), F32),
            "b_qkv": jnp.zeros((1, 3 * D), F32),
            "w_o":   out_std * jax.random.normal(next(ks), (D, D), F32),
            "b_o":   jnp.zeros((1, D), F32),
            "ln_m_g": jnp.ones((1, D), F32), "ln_m_b": jnp.zeros((1, D), F32),
            "w_fc1": std * jax.random.normal(next(ks), (D, 4 * D), F32),
            "b_fc1": jnp.zeros((1, 4 * D), F32),
            "w_fc2": out_std * jax.random.normal(next(ks), (4 * D, D), F32),
            "b_fc2": jnp.zeros((1, D), F32),
        })
    return params


def pack_params(params, num_heads):
    """Kernel layout: fused (D, 3D) QKV weight with the softmax scale folded into
    the Q columns, per-layer weights stacked along a leading L axis, small per-layer
    vectors consolidated into one (L, 6, D) tensor, matmul weights cast to bf16,
    classifier output padded to a 128-lane multiple."""
    D = params["w_emb"].shape[1]
    dh = D // num_heads
    scale = 1.0 / math.sqrt(dh)
    layers = params["layers"]

    def stack(fn, dtype=None):
        a = jnp.stack([fn(ly) for ly in layers])
        return a.astype(dtype) if dtype is not None else a

    def qkv_w(ly):  # fold 1/sqrt(dh) into the Q projection weights
        w = ly["w_qkv"]
        return jnp.concatenate([w[:, :D] * scale, w[:, D:]], axis=1)

    def qkv_b(ly):
        b = ly["b_qkv"]
        return jnp.concatenate([b[:, :D] * scale, b[:, D:]], axis=1)

    vecs = stack(lambda ly: jnp.stack([
        ly["ln_a_g"].reshape(D), ly["ln_a_b"].reshape(D),
        ly["b_o"].reshape(D),
        ly["ln_m_g"].reshape(D), ly["ln_m_b"].reshape(D),
        ly["b_fc2"].reshape(D)]))                           # (L, 6, D)

    layer_stack = [
        vecs,                                               # (L, 6, D)  f32
        stack(qkv_w, BF16),                                 # (L, D, 3D) bf16
        stack(qkv_b),                                       # (L, 1, 3D) f32
        stack(lambda ly: ly["w_o"], BF16),                  # (L, D, D)  bf16
        stack(lambda ly: ly["w_fc1"], BF16),                # (L, D, 4D) bf16
        stack(lambda ly: ly["b_fc1"]),                      # (L, 1, 4D) f32
        stack(lambda ly: ly["w_fc2"], BF16),                # (L, 4D, D) bf16
    ]

    C = params["w_cls"].shape[1]
    Cp = ((C + 127) // 128) * 128                           # lane-dense classifier output
    w_cls = jnp.zeros((D, Cp), F32).at[:, :C].set(params["w_cls"]).astype(BF16)
    b_cls = jnp.zeros((1, Cp), F32).at[:, :C].set(params["b_cls"])

    return {
        "ln0_g": params["ln0_g"], "ln0_b": params["ln0_b"],
        "w_emb": params["w_emb"].astype(BF16), "b_emb": params["b_emb"],
        "ln1_g": params["ln1_g"], "ln1_b": params["ln1_b"],
        "pos": params["pos"],
        "layer_stack": layer_stack,
        "ln_f_g": params["ln_f_g"], "ln_f_b": params["ln_f_b"],
        "w_cls": w_cls, "b_cls": b_cls,
    }


# --------------------------------- forward pass ---------------------------------
@functools.partial(jax.jit, static_argnames=("patch", "num_classes", "num_heads"))
def vit_forward(img, packed, *, patch, num_classes, num_heads):
    # img: NCHW float32.  The rearrange fuses with the HBM read under jit.
    B, C, Hi, Wi = img.shape
    ph = pw = patch
    h, w = Hi // ph, Wi // pw
    x = img.reshape(B, C, h, ph, w, pw)
    x = jnp.transpose(x, (0, 2, 4, 3, 5, 1))               # b h w p1 p2 c
    patches = x.reshape(B, h * w, ph * pw * C).astype(F32)

    N = h * w
    P = ph * pw * C
    D = packed["w_emb"].shape[1]
    L = packed["layer_stack"][0].shape[0]
    Cp = packed["w_cls"].shape[1]

    # batch tile: amortizes per-layer weight streaming & grid-step overhead
    Bt = next(t for t in (8, 4, 2, 1) if B % t == 0)

    embed_params = [packed["ln0_g"], packed["ln0_b"], packed["w_emb"], packed["b_emb"],
                    packed["ln1_g"], packed["ln1_b"], packed["pos"]]
    layer_stack = packed["layer_stack"]
    cls_params = [packed["ln_f_g"], packed["ln_f_b"], packed["w_cls"], packed["b_cls"]]

    in_specs = ([_batch_spec(Bt, (N, P))]
                + [_const_spec(p.shape) for p in embed_params]
                + [_layer_spec(p.shape) for p in layer_stack]
                + [_const_spec(p.shape) for p in cls_params])

    per_layer_bytes = sum(_nbytes(p) // L for p in layer_stack)
    need = (2 * (Bt * N * P * 4 + per_layer_bytes)           # double-buffered streams
            + sum(_nbytes(p) for p in embed_params + cls_params)
            + 2 * Bt * N * Cp * 4                            # output block
            + Bt * N * D * 4                                 # token scratch
            + Bt * num_heads * N * N * 4 * 2                 # scores/probs intermediates
            + 2 * Bt * N * 4 * D * 4                         # MLP hidden
            + (8 << 20))                                     # slack

    logits = pl.pallas_call(
        functools.partial(vit_kernel, num_heads),
        out_shape=jax.ShapeDtypeStruct((B, N, Cp), F32),
        grid_spec=pltpu.PrefetchScalarGridSpec(
            num_scalar_prefetch=0,
            grid=(B // Bt, L),
            in_specs=in_specs,
            out_specs=_batch_spec(Bt, (N, Cp)),
            scratch_shapes=[pltpu.VMEM((Bt, N, D), F32)],    # resident token stream
        ),
        compiler_params=pltpu.CompilerParams(
            dimension_semantics=("parallel", "arbitrary"),
            vmem_limit_bytes=_vmem_limit_bytes(need)),
    )(patches, *embed_params, *layer_stack, *cls_params)

    return logits[..., :num_classes]


# -------------------------------------- main --------------------------------------
if __name__ == "__main__":
    B, C, Hs, Ws = 2, 4, 16, 16
    patch = 4
    dim_hidden = 32
    num_classes = 8
    num_layers = 2
    num_heads = 4

    num_patches = (Hs // patch) * (Ws // patch)             # 16
    dim_patch = C * patch * patch                           # 64

    key = jax.random.PRNGKey(0)
    k_img, k_par = jax.random.split(key)
    img = jax.random.normal(k_img, (B, C, Hs, Ws), F32)
    params = init_params(k_par, dim_patch=dim_patch, dim_hidden=dim_hidden,
                         num_patches=num_patches, num_classes=num_classes,
                         num_layers=num_layers)
    packed = pack_params(params, num_heads=num_heads)

    out = vit_forward(img, packed, patch=patch, num_classes=num_classes,
                      num_heads=num_heads)
    jax.block_until_ready(out)
    assert out.shape == (B, num_patches, num_classes)
    assert bool(jnp.all(jnp.isfinite(out)))
    print("KERNEL_OK")
</pallas_src>

<mosaic_0001>
module attributes {stable_mosaic.version = 11 : i64} {
  func.func @vit_kernel(%arg0: i32, %arg1: i32, %arg2: memref<2x16x64xf32, #tpu.memory_space<vmem>>, %arg3: memref<1x64xf32, #tpu.memory_space<vmem>>, %arg4: memref<1x64xf32, #tpu.memory_space<vmem>>, %arg5: memref<64x32xbf16, #tpu.memory_space<vmem>>, %arg6: memref<1x32xf32, #tpu.memory_space<vmem>>, %arg7: memref<1x32xf32, #tpu.memory_space<vmem>>, %arg8: memref<1x32xf32, #tpu.memory_space<vmem>>, %arg9: memref<16x32xf32, #tpu.memory_space<vmem>>, %arg10: memref<1x6x32xf32, #tpu.memory_space<vmem>>, %arg11: memref<1x32x96xbf16, #tpu.memory_space<vmem>>, %arg12: memref<1x1x96xf32, #tpu.memory_space<vmem>>, %arg13: memref<1x32x32xbf16, #tpu.memory_space<vmem>>, %arg14: memref<1x32x128xbf16, #tpu.memory_space<vmem>>, %arg15: memref<1x1x128xf32, #tpu.memory_space<vmem>>, %arg16: memref<1x128x32xbf16, #tpu.memory_space<vmem>>, %arg17: memref<1x32xf32, #tpu.memory_space<vmem>>, %arg18: memref<1x32xf32, #tpu.memory_space<vmem>>, %arg19: memref<32x128xbf16, #tpu.memory_space<vmem>>, %arg20: memref<1x128xf32, #tpu.memory_space<vmem>>, %arg21: memref<2x16x128xf32, #tpu.memory_space<vmem>>, %arg22: memref<2x16x32xf32, #tpu.memory_space<vmem>>) attributes {dimension_semantics = [#tpu.dimension_semantics<parallel>, #tpu.dimension_semantics<arbitrary>], iteration_bounds = array<i64: 1, 2>, scalar_prefetch = 0 : i64, scratch_operands = 1 : i64, tpu.core_type = #tpu.core_type<tc>, window_params = [{transform_indices = @transform_0, window_bounds = array<i64: 2, 16, 64>}, {pipeline_mode = #tpu.pipeline_mode<synchronous>, transform_indices = @transform_1, window_bounds = array<i64: 1, 64>}, {pipeline_mode = #tpu.pipeline_mode<synchronous>, transform_indices = @transform_2, window_bounds = array<i64: 1, 64>}, {pipeline_mode = #tpu.pipeline_mode<synchronous>, transform_indices = @transform_3, window_bounds = array<i64: 64, 32>}, {pipeline_mode = #tpu.pipeline_mode<synchronous>, transform_indices = @transform_4, window_bounds = array<i64: 1, 32>}, {pipeline_mode = #tpu.pipeline_mode<synchronous>, transform_indices = @transform_5, window_bounds = array<i64: 1, 32>}, {pipeline_mode = #tpu.pipeline_mode<synchronous>, transform_indices = @transform_6, window_bounds = array<i64: 1, 32>}, {pipeline_mode = #tpu.pipeline_mode<synchronous>, transform_indices = @transform_7, window_bounds = array<i64: 16, 32>}, {transform_indices = @transform_8, window_bounds = array<i64: 1, 6, 32>}, {transform_indices = @transform_9, window_bounds = array<i64: 1, 32, 96>}, {transform_indices = @transform_10, window_bounds = array<i64: 1, 1, 96>}, {transform_indices = @transform_11, window_bounds = array<i64: 1, 32, 32>}, {transform_indices = @transform_12, window_bounds = array<i64: 1, 32, 128>}, {transform_indices = @transform_13, window_bounds = array<i64: 1, 1, 128>}, {transform_indices = @transform_14, window_bounds = array<i64: 1, 128, 32>}, {pipeline_mode = #tpu.pipeline_mode<synchronous>, transform_indices = @transform_15, window_bounds = array<i64: 1, 32>}, {pipeline_mode = #tpu.pipeline_mode<synchronous>, transform_indices = @transform_16, window_bounds = array<i64: 1, 32>}, {pipeline_mode = #tpu.pipeline_mode<synchronous>, transform_indices = @transform_17, window_bounds = array<i64: 32, 128>}, {pipeline_mode = #tpu.pipeline_mode<synchronous>, transform_indices = @transform_18, window_bounds = array<i64: 1, 128>}, {transform_indices = @transform_19, window_bounds = array<i64: 2, 16, 128>}]} {
    %c0_i32 = arith.constant 0 : i32
    %0 = arith.cmpi eq, %arg1, %c0_i32 : i32
    %1 = arith.extui %0 : i1 to i32
    %c0_i32_0 = arith.constant 0 : i32
    %2 = arith.cmpi ne, %1, %c0_i32_0 : i32
    scf.if %2 {
      %c0_73 = arith.constant 0 : index
      %c0_74 = arith.constant 0 : index
      %c0_75 = arith.constant 0 : index
      %212 = vector.load %arg2[%c0_73, %c0_74, %c0_75] : memref<2x16x64xf32, #tpu.memory_space<vmem>>, vector<2x16x64xf32>
      %213 = vector.shape_cast %212 : vector<2x16x64xf32> to vector<32x64xf32>
      %c0_76 = arith.constant 0 : index
      %c0_77 = arith.constant 0 : index
      %214 = vector.load %arg3[%c0_76, %c0_77] : memref<1x64xf32, #tpu.memory_space<vmem>>, vector<1x64xf32>
      %c0_78 = arith.constant 0 : index
      %c0_79 = arith.constant 0 : index
      %215 = vector.load %arg4[%c0_78, %c0_79] : memref<1x64xf32, #tpu.memory_space<vmem>>, vector<1x64xf32>
      %cst_80 = arith.constant dense<0.000000e+00> : vector<32xf32>
      %216 = vector.multi_reduction <add>, %213, %cst_80 [1] : vector<32x64xf32> to vector<32xf32>
      %217 = vector.shape_cast %216 : vector<32xf32> to vector<32x1xf32>
      %cst_81 = arith.constant 6.400000e+01 : f32
      %218 = vector.broadcast %cst_81 : f32 to vector<32x1xf32>
      %219 = arith.divf %217, %218 : vector<32x1xf32>
      %220 = vector.broadcast %219 : vector<32x1xf32> to vector<32x64xf32>
      %221 = arith.subf %213, %220 : vector<32x64xf32>
      %222 = arith.mulf %221, %221 : vector<32x64xf32>
      %cst_82 = arith.constant dense<0.000000e+00> : vector<32xf32>
      %223 = vector.multi_reduction <add>, %222, %cst_82 [1] : vector<32x64xf32> to vector<32xf32>
      %224 = vector.shape_cast %223 : vector<32xf32> to vector<32x1xf32>
      %cst_83 = arith.constant 6.400000e+01 : f32
      %225 = vector.broadcast %cst_83 : f32 to vector<32x1xf32>
      %226 = arith.divf %224, %225 : vector<32x1xf32>
      %227 = vector.broadcast %219 : vector<32x1xf32> to vector<32x64xf32>
      %228 = arith.subf %213, %227 : vector<32x64xf32>
      %cst_84 = arith.constant 9.99999974E-6 : f32
      %229 = vector.broadcast %cst_84 : f32 to vector<32x1xf32>
      %230 = arith.addf %226, %229 : vector<32x1xf32>
      %231 = math.rsqrt %230 : vector<32x1xf32>
      %232 = vector.broadcast %231 : vector<32x1xf32> to vector<32x64xf32>
      %233 = arith.mulf %228, %232 : vector<32x64xf32>
      %234 = vector.broadcast %214 : vector<1x64xf32> to vector<32x64xf32>
      %235 = arith.mulf %233, %234 : vector<32x64xf32>
      %236 = vector.broadcast %215 : vector<1x64xf32> to vector<32x64xf32>
      %237 = arith.addf %235, %236 : vector<32x64xf32>
      %238 = arith.truncf %237 : vector<32x64xf32> to vector<32x64xbf16>
      %c0_85 = arith.constant 0 : index
      %c0_86 = arith.constant 0 : index
      %239 = vector.load %arg5[%c0_85, %c0_86] : memref<64x32xbf16, #tpu.memory_space<vmem>>, vector<64x32xbf16>
      %cst_87 = arith.constant dense<0.000000e+00> : vector<32x32xf32>
      %240 = tpu.matmul %238, %239, %cst_87 {dimension_numbers = #tpu.dot_dimension_numbers<[1], [0], [0], [1], [0, 0, 1, 1], [], []>} : vector<32x64xbf16>, vector<64x32xbf16>, vector<32x32xf32> -> vector<32x32xf32>
      %c0_88 = arith.constant 0 : index
      %c0_89 = arith.constant 0 : index
      %241 = vector.load %arg6[%c0_88, %c0_89] : memref<1x32xf32, #tpu.memory_space<vmem>>, vector<1x32xf32>
      %242 = vector.broadcast %241 : vector<1x32xf32> to vector<32x32xf32>
      %243 = arith.addf %240, %242 : vector<32x32xf32>
      %c0_90 = arith.constant 0 : index
      %c0_91 = arith.constant 0 : index
      %244 = vector.load %arg7[%c0_90, %c0_91] : memref<1x32xf32, #tpu.memory_space<vmem>>, vector<1x32xf32>
      %c0_92 = arith.constant 0 : index
      %c0_93 = arith.constant 0 : index
      %245 = vector.load %arg8[%c0_92, %c0_93] : memref<1x32xf32, #tpu.memory_space<vmem>>, vector<1x32xf32>
      %cst_94 = arith.constant dense<0.000000e+00> : vector<32xf32>
      %246 = vector.multi_reduction <add>, %243, %cst_94 [1] : vector<32x32xf32> to vector<32xf32>
      %247 = vector.shape_cast %246 : vector<32xf32> to vector<32x1xf32>
      %cst_95 = arith.constant 3.200000e+01 : f32
      %248 = vector.broadcast %cst_95 : f32 to vector<32x1xf32>
      %249 = arith.divf %247, %248 : vector<32x1xf32>
      %250 = vector.broadcast %249 : vector<32x1xf32> to vector<32x32xf32>
      %251 = arith.subf %243, %250 : vector<32x32xf32>
      %252 = arith.mulf %251, %251 : vector<32x32xf32>
      %cst_96 = arith.constant dense<0.000000e+00> : vector<32xf32>
      %253 = vector.multi_reduction <add>, %252, %cst_96 [1] : vector<32x32xf32> to vector<32xf32>
      %254 = vector.shape_cast %253 : vector<32xf32> to vector<32x1xf32>
      %cst_97 = arith.constant 3.200000e+01 : f32
      %255 = vector.broadcast %cst_97 : f32 to vector<32x1xf32>
      %256 = arith.divf %254, %255 : vector<32x1xf32>
      %257 = vector.broadcast %249 : vector<32x1xf32> to vector<32x32xf32>
      %258 = arith.subf %243, %257 : vector<32x32xf32>
      %cst_98 = arith.constant 9.99999974E-6 : f32
      %259 = vector.broadcast %cst_98 : f32 to vector<32x1xf32>
      %260 = arith.addf %256, %259 : vector<32x1xf32>
      %261 = math.rsqrt %260 : vector<32x1xf32>
      %262 = vector.broadcast %261 : vector<32x1xf32> to vector<32x32xf32>
      %263 = arith.mulf %258, %262 : vector<32x32xf32>
      %264 = vector.broadcast %244 : vector<1x32xf32> to vector<32x32xf32>
      %265 = arith.mulf %263, %264 : vector<32x32xf32>
      %266 = vector.broadcast %245 : vector<1x32xf32> to vector<32x32xf32>
      %267 = arith.addf %265, %266 : vector<32x32xf32>
      %268 = vector.shape_cast %267 : vector<32x32xf32> to vector<2x16x32xf32>
      %c0_99 = arith.constant 0 : index
      %c0_100 = arith.constant 0 : index
      %269 = vector.load %arg9[%c0_99, %c0_100] : memref<16x32xf32, #tpu.memory_space<vmem>>, vector<16x32xf32>
      %270 = vector.shape_cast %269 : vector<16x32xf32> to vector<1x16x32xf32>
      %271 = vector.broadcast %270 : vector<1x16x32xf32> to vector<2x16x32xf32>
      %272 = arith.addf %268, %271 : vector<2x16x32xf32>
      %c0_101 = arith.constant 0 : index
      %c0_102 = arith.constant 0 : index
      %c0_103 = arith.constant 0 : index
      %273 = vector.load %arg22[%c0_101, %c0_102, %c0_103] : memref<2x16x32xf32, #tpu.memory_space<vmem>>, vector<2x16x32xf32>
      tpu.vector_store %arg22[%c0_101, %c0_102, %c0_103], %272 {strides = array<i32>} : memref<2x16x32xf32, #tpu.memory_space<vmem>>, vector<2x16x32xf32>,
    } else {
    }
    %c0 = arith.constant 0 : index
    %c0_1 = arith.constant 0 : index
    %c0_2 = arith.constant 0 : index
    %3 = vector.load %arg22[%c0, %c0_1, %c0_2] : memref<2x16x32xf32, #tpu.memory_space<vmem>>, vector<2x16x32xf32>
    %4 = vector.shape_cast %3 : vector<2x16x32xf32> to vector<32x32xf32>
    %c0_3 = arith.constant 0 : index
    %c0_4 = arith.constant 0 : index
    %c0_5 = arith.constant 0 : index
    %5 = vector.load %arg10[%c0_3, %c0_4, %c0_5] : memref<1x6x32xf32, #tpu.memory_space<vmem>>, vector<1x6x32xf32>
    %6 = vector.shape_cast %5 : vector<1x6x32xf32> to vector<6x32xf32>
    %7 = vector.extract_strided_slice %6 {offsets = [0, 0], sizes = [1, 32], strides = [1, 1]} : vector<6x32xf32> to vector<1x32xf32>
    %8 = vector.extract_strided_slice %6 {offsets = [1, 0], sizes = [1, 32], strides = [1, 1]} : vector<6x32xf32> to vector<1x32xf32>
    %9 = vector.extract_strided_slice %6 {offsets = [2, 0], sizes = [1, 32], strides = [1, 1]} : vector<6x32xf32> to vector<1x32xf32>
    %10 = vector.extract_strided_slice %6 {offsets = [3, 0], sizes = [1, 32], strides = [1, 1]} : vector<6x32xf32> to vector<1x32xf32>
    %11 = vector.extract_strided_slice %6 {offsets = [4, 0], sizes = [1, 32], strides = [1, 1]} : vector<6x32xf32> to vector<1x32xf32>
    %12 = vector.extract_strided_slice %6 {offsets = [5, 0], sizes = [1, 32], strides = [1, 1]} : vector<6x32xf32> to vector<1x32xf32>
    %cst = arith.constant dense<0.000000e+00> : vector<32xf32>
    %13 = vector.multi_reduction <add>, %4, %cst [1] : vector<32x32xf32> to vector<32xf32>
    %14 = vector.shape_cast %13 : vector<32xf32> to vector<32x1xf32>
    %cst_6 = arith.constant 3.200000e+01 : f32
    %15 = vector.broadcast %cst_6 : f32 to vector<32x1xf32>
    %16 = arith.divf %14, %15 : vector<32x1xf32>
    %17 = vector.broadcast %16 : vector<32x1xf32> to vector<32x32xf32>
    %18 = arith.subf %4, %17 : vector<32x32xf32>
    %19 = arith.mulf %18, %18 : vector<32x32xf32>
    %cst_7 = arith.constant dense<0.000000e+00> : vector<32xf32>
    %20 = vector.multi_reduction <add>, %19, %cst_7 [1] : vector<32x32xf32> to vector<32xf32>
    %21 = vector.shape_cast %20 : vector<32xf32> to vector<32x1xf32>
    %cst_8 = arith.constant 3.200000e+01 : f32
    %22 = vector.broadcast %cst_8 : f32 to vector<32x1xf32>
    %23 = arith.divf %21, %22 : vector<32x1xf32>
    %24 = vector.broadcast %16 : vector<32x1xf32> to vector<32x32xf32>
    %25 = arith.subf %4, %24 : vector<32x32xf32>
    %cst_9 = arith.constant 9.99999974E-6 : f32
    %26 = vector.broadcast %cst_9 : f32 to vector<32x1xf32>
    %27 = arith.addf %23, %26 : vector<32x1xf32>
    %28 = math.rsqrt %27 : vector<32x1xf32>
    %29 = vector.broadcast %28 : vector<32x1xf32> to vector<32x32xf32>
    %30 = arith.mulf %25, %29 : vector<32x32xf32>
    %31 = vector.broadcast %7 : vector<1x32xf32> to vector<32x32xf32>
    %32 = arith.mulf %30, %31 : vector<32x32xf32>
    %33 = vector.broadcast %8 : vector<1x32xf32> to vector<32x32xf32>
    %34 = arith.addf %32, %33 : vector<32x32xf32>
    %35 = arith.truncf %34 : vector<32x32xf32> to vector<32x32xbf16>
    %c0_10 = arith.constant 0 : index
    %c0_11 = arith.constant 0 : index
    %c0_12 = arith.constant 0 : index
    %36 = vector.load %arg11[%c0_10, %c0_11, %c0_12] : memref<1x32x96xbf16, #tpu.memory_space<vmem>>, vector<1x32x96xbf16>
    %37 = vector.shape_cast %36 : vector<1x32x96xbf16> to vector<32x96xbf16>
    %cst_13 = arith.constant dense<0.000000e+00> : vector<32x96xf32>
    %38 = tpu.matmul %35, %37, %cst_13 {dimension_numbers = #tpu.dot_dimension_numbers<[1], [0], [0], [1], [0, 0, 1, 1], [], []>} : vector<32x32xbf16>, vector<32x96xbf16>, vector<32x96xf32> -> vector<32x96xf32>
    %c0_14 = arith.constant 0 : index
    %c0_15 = arith.constant 0 : index
    %c0_16 = arith.constant 0 : index
    %39 = vector.load %arg12[%c0_14, %c0_15, %c0_16] : memref<1x1x96xf32, #tpu.memory_space<vmem>>, vector<1x1x96xf32>
    %40 = vector.shape_cast %39 : vector<1x1x96xf32> to vector<1x96xf32>
    %41 = vector.broadcast %40 : vector<1x96xf32> to vector<32x96xf32>
    %42 = arith.addf %38, %41 : vector<32x96xf32>
    %43 = vector.shape_cast %42 : vector<32x96xf32> to vector<2x16x96xf32>
    %44 = vector.extract_strided_slice %43 {offsets = [0, 0, 0], sizes = [2, 16, 8], strides = [1, 1, 1]} : vector<2x16x96xf32> to vector<2x16x8xf32>
    %45 = vector.extract_strided_slice %43 {offsets = [0, 0, 32], sizes = [2, 16, 8], strides = [1, 1, 1]} : vector<2x16x96xf32> to vector<2x16x8xf32>
    %46 = vector.extract_strided_slice %43 {offsets = [0, 0, 64], sizes = [2, 16, 8], strides = [1, 1, 1]} : vector<2x16x96xf32> to vector<2x16x8xf32>
    %47 = arith.truncf %44 : vector<2x16x8xf32> to vector<2x16x8xbf16>
    %48 = arith.truncf %45 : vector<2x16x8xf32> to vector<2x16x8xbf16>
    "tpu.trace_start"() <{level = 10 : i32, message = "bqe,bke->bqk"}> : () -> ()
    %cst_17 = arith.constant dense<0.000000e+00> : vector<2x16x16xf32>
    %49 = tpu.matmul %47, %48, %cst_17 {dimension_numbers = #tpu.dot_dimension_numbers<[2], [2], [1], [1], [0, 0, 0, 1, 1, 1], [0], [0]>} : vector<2x16x8xbf16>, vector<2x16x8xbf16>, vector<2x16x16xf32> -> vector<2x16x16xf32>
    "tpu.trace_stop"() : () -> ()
    %cst_18 = arith.constant dense<0xFF800000> : vector<2x16xf32>
    %50 = vector.multi_reduction <maximumf>, %49, %cst_18 [2] : vector<2x16x16xf32> to vector<2x16xf32>
    %51 = vector.shape_cast %50 : vector<2x16xf32> to vector<2x16x1xf32>
    %52 = vector.broadcast %51 : vector<2x16x1xf32> to vector<2x16x16xf32>
    %53 = arith.subf %49, %52 : vector<2x16x16xf32>
    %54 = math.exp %53 : vector<2x16x16xf32>
    %cst_19 = arith.constant dense<0.000000e+00> : vector<2x16xf32>
    %55 = vector.multi_reduction <add>, %54, %cst_19 [2] : vector<2x16x16xf32> to vector<2x16xf32>
    %56 = vector.shape_cast %55 : vector<2x16xf32> to vector<2x16x1xf32>
    %57 = arith.truncf %54 : vector<2x16x16xf32> to vector<2x16x16xbf16>
    %58 = arith.truncf %46 : vector<2x16x8xf32> to vector<2x16x8xbf16>
    "tpu.trace_start"() <{level = 10 : i32, message = "bqk,bke->bqe"}> : () -> ()
    %cst_20 = arith.constant dense<0.000000e+00> : vector<2x16x8xf32>
    %59 = tpu.matmul %57, %58, %cst_20 {dimension_numbers = #tpu.dot_dimension_numbers<[2], [1], [1], [2], [0, 0, 0, 1, 1, 2], [0], [0]>} : vector<2x16x16xbf16>, vector<2x16x8xbf16>, vector<2x16x8xf32> -> vector<2x16x8xf32>
    "tpu.trace_stop"() : () -> ()
    %60 = tpu.reciprocal %56 {approx = true} : vector<2x16x1xf32> -> vector<2x16x1xf32>
    %61 = vector.broadcast %60 : vector<2x16x1xf32> to vector<2x16x8xf32>
    %62 = arith.mulf %59, %61 : vector<2x16x8xf32>
    %63 = vector.extract_strided_slice %43 {offsets = [0, 0, 8], sizes = [2, 16, 8], strides = [1, 1, 1]} : vector<2x16x96xf32> to vector<2x16x8xf32>
    %64 = vector.extract_strided_slice %43 {offsets = [0, 0, 40], sizes = [2, 16, 8], strides = [1, 1, 1]} : vector<2x16x96xf32> to vector<2x16x8xf32>
    %65 = vector.extract_strided_slice %43 {offsets = [0, 0, 72], sizes = [2, 16, 8], strides = [1, 1, 1]} : vector<2x16x96xf32> to vector<2x16x8xf32>
    %66 = arith.truncf %63 : vector<2x16x8xf32> to vector<2x16x8xbf16>
    %67 = arith.truncf %64 : vector<2x16x8xf32> to vector<2x16x8xbf16>
    "tpu.trace_start"() <{level = 10 : i32, message = "bqe,bke->bqk"}> : () -> ()
    %cst_21 = arith.constant dense<0.000000e+00> : vector<2x16x16xf32>
    %68 = tpu.matmul %66, %67, %cst_21 {dimension_numbers = #tpu.dot_dimension_numbers<[2], [2], [1], [1], [0, 0, 0, 1, 1, 1], [0], [0]>} : vector<2x16x8xbf16>, vector<2x16x8xbf16>, vector<2x16x16xf32> -> vector<2x16x16xf32>
    "tpu.trace_stop"() : () -> ()
    %cst_22 = arith.constant dense<0xFF800000> : vector<2x16xf32>
    %69 = vector.multi_reduction <maximumf>, %68, %cst_22 [2] : vector<2x16x16xf32> to vector<2x16xf32>
    %70 = vector.shape_cast %69 : vector<2x16xf32> to vector<2x16x1xf32>
    %71 = vector.broadcast %70 : vector<2x16x1xf32> to vector<2x16x16xf32>
    %72 = arith.subf %68, %71 : vector<2x16x16xf32>
    %73 = math.exp %72 : vector<2x16x16xf32>
    %cst_23 = arith.constant dense<0.000000e+00> : vector<2x16xf32>
    %74 = vector.multi_reduction <add>, %73, %cst_23 [2] : vector<2x16x16xf32> to vector<2x16xf32>
    %75 = vector.shape_cast %74 : vector<2x16xf32> to vector<2x16x1xf32>
    %76 = arith.truncf %73 : vector<2x16x16xf32> to vector<2x16x16xbf16>
    %77 = arith.truncf %65 : vector<2x16x8xf32> to vector<2x16x8xbf16>
    "tpu.trace_start"() <{level = 10 : i32, message = "bqk,bke->bqe"}> : () -> ()
    %cst_24 = arith.constant dense<0.000000e+00> : vector<2x16x8xf32>
    %78 = tpu.matmul %76, %77, %cst_24 {dimension_numbers = #tpu.dot_dimension_numbers<[2], [1], [1], [2], [0, 0, 0, 1, 1, 2], [0], [0]>} : vector<2x16x16xbf16>, vector<2x16x8xbf16>, vector<2x16x8xf32> -> vector<2x16x8xf32>
    "tpu.trace_stop"() : () -> ()
    %79 = tpu.reciprocal %75 {approx = true} : vector<2x16x1xf32> -> vector<2x16x1xf32>
    %80 = vector.broadcast %79 : vector<2x16x1xf32> to vector<2x16x8xf32>
    %81 = arith.mulf %78, %80 : vector<2x16x8xf32>
    %82 = vector.extract_strided_slice %43 {offsets = [0, 0, 16], sizes = [2, 16, 8], strides = [1, 1, 1]} : vector<2x16x96xf32> to vector<2x16x8xf32>
    %83 = vector.extract_strided_slice %43 {offsets = [0, 0, 48], sizes = [2, 16, 8], strides = [1, 1, 1]} : vector<2x16x96xf32> to vector<2x16x8xf32>
    %84 = vector.extract_strided_slice %43 {offsets = [0, 0, 80], sizes = [2, 16, 8], strides = [1, 1, 1]} : vector<2x16x96xf32> to vector<2x16x8xf32>
    %85 = arith.truncf %82 : vector<2x16x8xf32> to vector<2x16x8xbf16>
    %86 = arith.truncf %83 : vector<2x16x8xf32> to vector<2x16x8xbf16>
    "tpu.trace_start"() <{level = 10 : i32, message = "bqe,bke->bqk"}> : () -> ()
    %cst_25 = arith.constant dense<0.000000e+00> : vector<2x16x16xf32>
    %87 = tpu.matmul %85, %86, %cst_25 {dimension_numbers = #tpu.dot_dimension_numbers<[2], [2], [1], [1], [0, 0, 0, 1, 1, 1], [0], [0]>} : vector<2x16x8xbf16>, vector<2x16x8xbf16>, vector<2x16x16xf32> -> vector<2x16x16xf32>
    "tpu.trace_stop"() : () -> ()
    %cst_26 = arith.constant dense<0xFF800000> : vector<2x16xf32>
    %88 = vector.multi_reduction <maximumf>, %87, %cst_26 [2] : vector<2x16x16xf32> to vector<2x16xf32>
    %89 = vector.shape_cast %88 : vector<2x16xf32> to vector<2x16x1xf32>
    %90 = vector.broadcast %89 : vector<2x16x1xf32> to vector<2x16x16xf32>
    %91 = arith.subf %87, %90 : vector<2x16x16xf32>
    %92 = math.exp %91 : vector<2x16x16xf32>
    %cst_27 = arith.constant dense<0.000000e+00> : vector<2x16xf32>
    %93 = vector.multi_reduction <add>, %92, %cst_27 [2] : vector<2x16x16xf32> to vector<2x16xf32>
    %94 = vector.shape_cast %93 : vector<2x16xf32> to vector<2x16x1xf32>
    %95 = arith.truncf %92 : vector<2x16x16xf32> to vector<2x16x16xbf16>
    %96 = arith.truncf %84 : vector<2x16x8xf32> to vector<2x16x8xbf16>
    "tpu.trace_start"() <{level = 10 : i32, message = "bqk,bke->bqe"}> : () -> ()
    %cst_28 = arith.constant dense<0.000000e+00> : vector<2x16x8xf32>
    %97 = tpu.matmul %95, %96, %cst_28 {dimension_numbers = #tpu.dot_dimension_numbers<[2], [1], [1], [2], [0, 0, 0, 1, 1, 2], [0], [0]>} : vector<2x16x16xbf16>, vector<2x16x8xbf16>, vector<2x16x8xf32> -> vector<2x16x8xf32>
    "tpu.trace_stop"() : () -> ()
    %98 = tpu.reciprocal %94 {approx = true} : vector<2x16x1xf32> -> vector<2x16x1xf32>
    %99 = vector.broadcast %98 : vector<2x16x1xf32> to vector<2x16x8xf32>
    %100 = arith.mulf %97, %99 : vector<2x16x8xf32>
    %101 = vector.extract_strided_slice %43 {offsets = [0, 0, 24], sizes = [2, 16, 8], strides = [1, 1, 1]} : vector<2x16x96xf32> to vector<2x16x8xf32>
    %102 = vector.extract_strided_slice %43 {offsets = [0, 0, 56], sizes = [2, 16, 8], strides = [1, 1, 1]} : vector<2x16x96xf32> to vector<2x16x8xf32>
    %103 = vector.extract_strided_slice %43 {offsets = [0, 0, 88], sizes = [2, 16, 8], strides = [1, 1, 1]} : vector<2x16x96xf32> to vector<2x16x8xf32>
    %104 = arith.truncf %101 : vector<2x16x8xf32> to vector<2x16x8xbf16>
    %105 = arith.truncf %102 : vector<2x16x8xf32> to vector<2x16x8xbf16>
    "tpu.trace_start"() <{level = 10 : i32, message = "bqe,bke->bqk"}> : () -> ()
    %cst_29 = arith.constant dense<0.000000e+00> : vector<2x16x16xf32>
    %106 = tpu.matmul %104, %105, %cst_29 {dimension_numbers = #tpu.dot_dimension_numbers<[2], [2], [1], [1], [0, 0, 0, 1, 1, 1], [0], [0]>} : vector<2x16x8xbf16>, vector<2x16x8xbf16>, vector<2x16x16xf32> -> vector<2x16x16xf32>
    "tpu.trace_stop"() : () -> ()
    %cst_30 = arith.constant dense<0xFF800000> : vector<2x16xf32>
    %107 = vector.multi_reduction <maximumf>, %106, %cst_30 [2] : vector<2x16x16xf32> to vector<2x16xf32>
    %108 = vector.shape_cast %107 : vector<2x16xf32> to vector<2x16x1xf32>
    %109 = vector.broadcast %108 : vector<2x16x1xf32> to vector<2x16x16xf32>
    %110 = arith.subf %106, %109 : vector<2x16x16xf32>
    %111 = math.exp %110 : vector<2x16x16xf32>
    %cst_31 = arith.constant dense<0.000000e+00> : vector<2x16xf32>
    %112 = vector.multi_reduction <add>, %111, %cst_31 [2] : vector<2x16x16xf32> to vector<2x16xf32>
    %113 = vector.shape_cast %112 : vector<2x16xf32> to vector<2x16x1xf32>
    %114 = arith.truncf %111 : vector<2x16x16xf32> to vector<2x16x16xbf16>
    %115 = arith.truncf %103 : vector<2x16x8xf32> to vector<2x16x8xbf16>
    "tpu.trace_start"() <{level = 10 : i32, message = "bqk,bke->bqe"}> : () -> ()
    %cst_32 = arith.constant dense<0.000000e+00> : vector<2x16x8xf32>
    %116 = tpu.matmul %114, %115, %cst_32 {dimension_numbers = #tpu.dot_dimension_numbers<[2], [1], [1], [2], [0, 0, 0, 1, 1, 2], [0], [0]>} : vector<2x16x16xbf16>, vector<2x16x8xbf16>, vector<2x16x8xf32> -> vector<2x16x8xf32>
    "tpu.trace_stop"() : () -> ()
    %117 = tpu.reciprocal %113 {approx = true} : vector<2x16x1xf32> -> vector<2x16x1xf32>
    %118 = vector.broadcast %117 : vector<2x16x1xf32> to vector<2x16x8xf32>
    %119 = arith.mulf %116, %118 : vector<2x16x8xf32>
    %120 = tpu.concatenate %62, %81, %100, %119 in 2 : vector<2x16x8xf32>, vector<2x16x8xf32>, vector<2x16x8xf32>, vector<2x16x8xf32> -> vector<2x16x32xf32>
    %121 = vector.shape_cast %120 : vector<2x16x32xf32> to vector<32x32xf32>
    %122 = arith.truncf %121 : vector<32x32xf32> to vector<32x32xbf16>
    %c0_33 = arith.constant 0 : index
    %c0_34 = arith.constant 0 : index
    %c0_35 = arith.constant 0 : index
    %123 = vector.load %arg13[%c0_33, %c0_34, %c0_35] : memref<1x32x32xbf16, #tpu.memory_space<vmem>>, vector<1x32x32xbf16>
    %124 = vector.shape_cast %123 : vector<1x32x32xbf16> to vector<32x32xbf16>
    %cst_36 = arith.constant dense<0.000000e+00> : vector<32x32xf32>
    %125 = tpu.matmul %122, %124, %cst_36 {dimension_numbers = #tpu.dot_dimension_numbers<[1], [0], [0], [1], [0, 0, 1, 1], [], []>} : vector<32x32xbf16>, vector<32x32xbf16>, vector<32x32xf32> -> vector<32x32xf32>
    %126 = vector.broadcast %9 : vector<1x32xf32> to vector<32x32xf32>
    %127 = arith.addf %125, %126 : vector<32x32xf32>
    %128 = arith.addf %4, %127 : vector<32x32xf32>
    %cst_37 = arith.constant dense<0.000000e+00> : vector<32xf32>
    %129 = vector.multi_reduction <add>, %128, %cst_37 [1] : vector<32x32xf32> to vector<32xf32>
    %130 = vector.shape_cast %129 : vector<32xf32> to vector<32x1xf32>
    %cst_38 = arith.constant 3.200000e+01 : f32
    %131 = vector.broadcast %cst_38 : f32 to vector<32x1xf32>
    %132 = arith.divf %130, %131 : vector<32x1xf32>
    %133 = vector.broadcast %132 : vector<32x1xf32> to vector<32x32xf32>
    %134 = arith.subf %128, %133 : vector<32x32xf32>
    %135 = arith.mulf %134, %134 : vector<32x32xf32>
    %cst_39 = arith.constant dense<0.000000e+00> : vector<32xf32>
    %136 = vector.multi_reduction <add>, %135, %cst_39 [1] : vector<32x32xf32> to vector<32xf32>
    %137 = vector.shape_cast %136 : vector<32xf32> to vector<32x1xf32>
    %cst_40 = arith.constant 3.200000e+01 : f32
    %138 = vector.broadcast %cst_40 : f32 to vector<32x1xf32>
    %139 = arith.divf %137, %138 : vector<32x1xf32>
    %140 = vector.broadcast %132 : vector<32x1xf32> to vector<32x32xf32>
    %141 = arith.subf %128, %140 : vector<32x32xf32>
    %cst_41 = arith.constant 9.99999974E-6 : f32
    %142 = vector.broadcast %cst_41 : f32 to vector<32x1xf32>
    %143 = arith.addf %139, %142 : vector<32x1xf32>
    %144 = math.rsqrt %143 : vector<32x1xf32>
    %145 = vector.broadcast %144 : vector<32x1xf32> to vector<32x32xf32>
    %146 = arith.mulf %141, %145 : vector<32x32xf32>
    %147 = vector.broadcast %10 : vector<1x32xf32> to vector<32x32xf32>
    %148 = arith.mulf %146, %147 : vector<32x32xf32>
    %149 = vector.broadcast %11 : vector<1x32xf32> to vector<32x32xf32>
    %150 = arith.addf %148, %149 : vector<32x32xf32>
    %151 = arith.truncf %150 : vector<32x32xf32> to vector<32x32xbf16>
    %c0_42 = arith.constant 0 : index
    %c0_43 = arith.constant 0 : index
    %c0_44 = arith.constant 0 : index
    %152 = vector.load %arg14[%c0_42, %c0_43, %c0_44] : memref<1x32x128xbf16, #tpu.memory_space<vmem>>, vector<1x32x128xbf16>
    %153 = vector.shape_cast %152 : vector<1x32x128xbf16> to vector<32x128xbf16>
    %cst_45 = arith.constant dense<0.000000e+00> : vector<32x128xf32>
    %154 = tpu.matmul %151, %153, %cst_45 {dimension_numbers = #tpu.dot_dimension_numbers<[1], [0], [0], [1], [0, 0, 1, 1], [], []>} : vector<32x32xbf16>, vector<32x128xbf16>, vector<32x128xf32> -> vector<32x128xf32>
    %c0_46 = arith.constant 0 : index
    %c0_47 = arith.constant 0 : index
    %c0_48 = arith.constant 0 : index
    %155 = vector.load %arg15[%c0_46, %c0_47, %c0_48] : memref<1x1x128xf32, #tpu.memory_space<vmem>>, vector<1x1x128xf32>
    %156 = vector.shape_cast %155 : vector<1x1x128xf32> to vector<1x128xf32>
    %157 = vector.broadcast %156 : vector<1x128xf32> to vector<32x128xf32>
    %158 = arith.addf %154, %157 : vector<32x128xf32>
    %cst_49 = arith.constant 5.000000e-01 : f32
    %159 = vector.broadcast %cst_49 : f32 to vector<32x128xf32>
    %160 = arith.mulf %159, %158 : vector<32x128xf32>
    %cst_50 = arith.constant 0.707106769 : f32
    %161 = vector.broadcast %cst_50 : f32 to vector<32x128xf32>
    %162 = arith.mulf %158, %161 : vector<32x128xf32>
    %cst_51 = arith.constant 0.000000e+00 : f32
    %163 = vector.broadcast %cst_51 : f32 to vector<32x128xf32>
    %164 = arith.cmpf oge, %162, %163 : vector<32x128xf32>
    %cst_52 = arith.constant 1.000000e+00 : f32
    %cst_53 = arith.constant -1.000000e+00 : f32
    %165 = vector.broadcast %cst_52 : f32 to vector<32x128xf32>
    %166 = vector.broadcast %cst_53 : f32 to vector<32x128xf32>
    %167 = arith.select %164, %165, %166 : vector<32x128xi1>, vector<32x128xf32>
    %168 = math.absf %162 : vector<32x128xf32>
    %cst_54 = arith.constant 0.327591091 : f32
    %169 = vector.broadcast %cst_54 : f32 to vector<32x128xf32>
    %170 = arith.mulf %169, %168 : vector<32x128xf32>
    %cst_55 = arith.constant 1.000000e+00 : f32
    %171 = vector.broadcast %cst_55 : f32 to vector<32x128xf32>
    %172 = arith.addf %171, %170 : vector<32x128xf32>
    %cst_56 = arith.constant 1.000000e+00 : f32
    %173 = vector.broadcast %cst_56 : f32 to vector<32x128xf32>
    %174 = arith.divf %173, %172 : vector<32x128xf32>
    %cst_57 = arith.constant 1.06140542 : f32
    %175 = vector.broadcast %cst_57 : f32 to vector<32x128xf32>
    %176 = arith.mulf %174, %175 : vector<32x128xf32>
    %cst_58 = arith.constant -1.45315206 : f32
    %177 = vector.broadcast %cst_58 : f32 to vector<32x128xf32>
    %178 = arith.addf %177, %176 : vector<32x128xf32>
    %179 = arith.mulf %174, %178 : vector<32x128xf32>
    %cst_59 = arith.constant 1.42141378 : f32
    %180 = vector.broadcast %cst_59 : f32 to vector<32x128xf32>
    %181 = arith.addf %180, %179 : vector<32x128xf32>
    %182 = arith.mulf %174, %181 : vector<32x128xf32>
    %cst_60 = arith.constant -0.284496725 : f32
    %183 = vector.broadcast %cst_60 : f32 to vector<32x128xf32>
    %184 = arith.addf %183, %182 : vector<32x128xf32>
    %185 = arith.mulf %174, %184 : vector<32x128xf32>
    %cst_61 = arith.constant 0.254829586 : f32
    %186 = vector.broadcast %cst_61 : f32 to vector<32x128xf32>
    %187 = arith.addf %186, %185 : vector<32x128xf32>
    %188 = arith.mulf %174, %187 : vector<32x128xf32>
    %cst_62 = arith.constant 0.000000e+00 : f32
    %189 = vector.broadcast %cst_62 : f32 to vector<32x128xf32>
    %190 = arith.subf %189, %168 : vector<32x128xf32>
    %191 = arith.mulf %190, %168 : vector<32x128xf32>
    %192 = math.exp %191 : vector<32x128xf32>
    %193 = arith.mulf %188, %192 : vector<32x128xf32>
    %cst_63 = arith.constant 1.000000e+00 : f32
    %194 = vector.broadcast %cst_63 : f32 to vector<32x128xf32>
    %195 = arith.subf %194, %193 : vector<32x128xf32>
    %196 = arith.mulf %167, %195 : vector<32x128xf32>
    %cst_64 = arith.constant 1.000000e+00 : f32
    %197 = vector.broadcast %cst_64 : f32 to vector<32x128xf32>
    %198 = arith.addf %197, %196 : vector<32x128xf32>
    %199 = arith.mulf %160, %198 : vector<32x128xf32>
    %200 = arith.truncf %199 : vector<32x128xf32> to vector<32x128xbf16>
    %c0_65 = arith.constant 0 : index
    %c0_66 = arith.constant 0 : index
    %c0_67 = arith.constant 0 : index
    %201 = vector.load %arg16[%c0_65, %c0_66, %c0_67] : memref<1x128x32xbf16, #tpu.memory_space<vmem>>, vector<1x128x32xbf16>
    %202 = vector.shape_cast %201 : vector<1x128x32xbf16> to vector<128x32xbf16>
    %cst_68 = arith.constant dense<0.000000e+00> : vector<32x32xf32>
    %203 = tpu.matmul %200, %202, %cst_68 {dimension_numbers = #tpu.dot_dimension_numbers<[1], [0], [0], [1], [0, 0, 1, 1], [], []>} : vector<32x128xbf16>, vector<128x32xbf16>, vector<32x32xf32> -> vector<32x32xf32>
    %204 = vector.broadcast %12 : vector<1x32xf32> to vector<32x32xf32>
    %205 = arith.addf %203, %204 : vector<32x32xf32>
    %206 = arith.addf %128, %205 : vector<32x32xf32>
    %207 = vector.shape_cast %206 : vector<32x32xf32> to vector<2x16x32xf32>
    %c0_69 = arith.constant 0 : index
    %c0_70 = arith.constant 0 : index
    %c0_71 = arith.constant 0 : index
    %208 = vector.load %arg22[%c0_69, %c0_70, %c0_71] : memref<2x16x32xf32, #tpu.memory_space<vmem>>, vector<2x16x32xf32>
    tpu.vector_store %arg22[%c0_69, %c0_70, %c0_71], %207 {strides = array<i32>} : memref<2x16x32xf32, #tpu.memory_space<vmem>>, vector<2x16x32xf32>,
    %c1_i32 = arith.constant 1 : i32
    %209 = arith.cmpi eq, %arg1, %c1_i32 : i32
    %210 = arith.extui %209 : i1 to i32
    %c0_i32_72 = arith.constant 0 : i32
    %211 = arith.cmpi ne, %210, %c0_i32_72 : i32
    scf.if %211 {
      %c0_73 = arith.constant 0 : index
      %c0_74 = arith.constant 0 : index
      %212 = vector.load %arg17[%c0_73, %c0_74] : memref<1x32xf32, #tpu.memory_space<vmem>>, vector<1x32xf32>
      %c0_75 = arith.constant 0 : index
      %c0_76 = arith.constant 0 : index
      %213 = vector.load %arg18[%c0_75, %c0_76] : memref<1x32xf32, #tpu.memory_space<vmem>>, vector<1x32xf32>
      %cst_77 = arith.constant dense<0.000000e+00> : vector<32xf32>
      %214 = vector.multi_reduction <add>, %206, %cst_77 [1] : vector<32x32xf32> to vector<32xf32>
      %215 = vector.shape_cast %214 : vector<32xf32> to vector<32x1xf32>
      %cst_78 = arith.constant 3.200000e+01 : f32
      %216 = vector.broadcast %cst_78 : f32 to vector<32x1xf32>
      %217 = arith.divf %215, %216 : vector<32x1xf32>
      %218 = vector.broadcast %217 : vector<32x1xf32> to vector<32x32xf32>
      %219 = arith.subf %206, %218 : vector<32x32xf32>
      %220 = arith.mulf %219, %219 : vector<32x32xf32>
      %cst_79 = arith.constant dense<0.000000e+00> : vector<32xf32>
      %221 = vector.multi_reduction <add>, %220, %cst_79 [1] : vector<32x32xf32> to vector<32xf32>
      %222 = vector.shape_cast %221 : vector<32xf32> to vector<32x1xf32>
      %cst_80 = arith.constant 3.200000e+01 : f32
      %223 = vector.broadcast %cst_80 : f32 to vector<32x1xf32>
      %224 = arith.divf %222, %223 : vector<32x1xf32>
      %225 = vector.broadcast %217 : vector<32x1xf32> to vector<32x32xf32>
      %226 = arith.subf %206, %225 : vector<32x32xf32>
      %cst_81 = arith.constant 9.99999974E-6 : f32
      %227 = vector.broadcast %cst_81 : f32 to vector<32x1xf32>
      %228 = arith.addf %224, %227 : vector<32x1xf32>
      %229 = math.rsqrt %228 : vector<32x1xf32>
      %230 = vector.broadcast %229 : vector<32x1xf32> to vector<32x32xf32>
      %231 = arith.mulf %226, %230 : vector<32x32xf32>
      %232 = vector.broadcast %212 : vector<1x32xf32> to vector<32x32xf32>
      %233 = arith.mulf %231, %232 : vector<32x32xf32>
      %234 = vector.broadcast %213 : vector<1x32xf32> to vector<32x32xf32>
      %235 = arith.addf %233, %234 : vector<32x32xf32>
      %236 = arith.truncf %235 : vector<32x32xf32> to vector<32x32xbf16>
      %c0_82 = arith.constant 0 : index
      %c0_83 = arith.constant 0 : index
      %237 = vector.load %arg19[%c0_82, %c0_83] : memref<32x128xbf16, #tpu.memory_space<vmem>>, vector<32x128xbf16>
      %cst_84 = arith.constant dense<0.000000e+00> : vector<32x128xf32>
      %238 = tpu.matmul %236, %237, %cst_84 {dimension_numbers = #tpu.dot_dimension_numbers<[1], [0], [0], [1], [0, 0, 1, 1], [], []>} : vector<32x32xbf16>, vector<32x128xbf16>, vector<32x128xf32> -> vector<32x128xf32>
      %c0_85 = arith.constant 0 : index
      %c0_86 = arith.constant 0 : index
      %239 = vector.load %arg20[%c0_85, %c0_86] : memref<1x128xf32, #tpu.memory_space<vmem>>, vector<1x128xf32>
      %240 = vector.broadcast %239 : vector<1x128xf32> to vector<32x128xf32>
      %241 = arith.addf %238, %240 : vector<32x128xf32>
      %242 = vector.shape_cast %241 : vector<32x128xf32> to vector<2x16x128xf32>
      %c0_87 = arith.constant 0 : index
      %c0_88 = arith.constant 0 : index
      %c0_89 = arith.constant 0 : index
      %243 = vector.load %arg21[%c0_87, %c0_88, %c0_89] : memref<2x16x128xf32, #tpu.memory_space<vmem>>, vector<2x16x128xf32>
      tpu.vector_store %arg21[%c0_87, %c0_88, %c0_89], %242 {strides = array<i32>} : memref<2x16x128xf32, #tpu.memory_space<vmem>>, vector<2x16x128xf32>,
    } else {
    }
    return
  }
  func.func @transform_0(%arg0: i32, %arg1: i32) -> (i32, i32, i32) {
    %c0_i32 = arith.constant 0 : i32
    %c0_i32_0 = arith.constant 0 : i32
    %c0_i32_1 = arith.constant 0 : i32
    return %arg0, %c0_i32, %c0_i32_0 : i32, i32, i32
  }
  func.func @transform_1(%arg0: i32, %arg1: i32) -> (i32, i32) {
    %c0_i32 = arith.constant 0 : i32
    %c0_i32_0 = arith.constant 0 : i32
    %c0_i32_1 = arith.constant 0 : i32
    return %c0_i32, %c0_i32_0 : i32, i32
  }
  func.func @transform_2(%arg0: i32, %arg1: i32) -> (i32, i32) {
    %c0_i32 = arith.constant 0 : i32
    %c0_i32_0 = arith.constant 0 : i32
    %c0_i32_1 = arith.constant 0 : i32
    return %c0_i32, %c0_i32_0 : i32, i32
  }
  func.func @transform_3(%arg0: i32, %arg1: i32) -> (i32, i32) {
    %c0_i32 = arith.constant 0 : i32
    %c0_i32_0 = arith.constant 0 : i32
    %c0_i32_1 = arith.constant 0 : i32
    return %c0_i32, %c0_i32_0 : i32, i32
  }
  func.func @transform_4(%arg0: i32, %arg1: i32) -> (i32, i32) {
    %c0_i32 = arith.constant 0 : i32
    %c0_i32_0 = arith.constant 0 : i32
    %c0_i32_1 = arith.constant 0 : i32
    return %c0_i32, %c0_i32_0 : i32, i32
  }
  func.func @transform_5(%arg0: i32, %arg1: i32) -> (i32, i32) {
    %c0_i32 = arith.constant 0 : i32
    %c0_i32_0 = arith.constant 0 : i32
    %c0_i32_1 = arith.constant 0 : i32
    return %c0_i32, %c0_i32_0 : i32, i32
  }
  func.func @transform_6(%arg0: i32, %arg1: i32) -> (i32, i32) {
    %c0_i32 = arith.constant 0 : i32
    %c0_i32_0 = arith.constant 0 : i32
    %c0_i32_1 = arith.constant 0 : i32
    return %c0_i32, %c0_i32_0 : i32, i32
  }
  func.func @transform_7(%arg0: i32, %arg1: i32) -> (i32, i32) {
    %c0_i32 = arith.constant 0 : i32
    %c0_i32_0 = arith.constant 0 : i32
    %c0_i32_1 = arith.constant 0 : i32
    return %c0_i32, %c0_i32_0 : i32, i32
  }
  func.func @transform_8(%arg0: i32, %arg1: i32) -> (i32, i32, i32) {
    %c0_i32 = arith.constant 0 : i32
    %c0_i32_0 = arith.constant 0 : i32
    %c0_i32_1 = arith.constant 0 : i32
    return %arg1, %c0_i32, %c0_i32_0 : i32, i32, i32
  }
  func.func @transform_9(%arg0: i32, %arg1: i32) -> (i32, i32, i32) {
    %c0_i32 = arith.constant 0 : i32
    %c0_i32_0 = arith.constant 0 : i32
    %c0_i32_1 = arith.constant 0 : i32
    return %arg1, %c0_i32, %c0_i32_0 : i32, i32, i32
  }
  func.func @transform_10(%arg0: i32, %arg1: i32) -> (i32, i32, i32) {
    %c0_i32 = arith.constant 0 : i32
    %c0_i32_0 = arith.constant 0 : i32
    %c0_i32_1 = arith.constant 0 : i32
    return %arg1, %c0_i32, %c0_i32_0 : i32, i32, i32
  }
  func.func @transform_11(%arg0: i32, %arg1: i32) -> (i32, i32, i32) {
    %c0_i32 = arith.constant 0 : i32
    %c0_i32_0 = arith.constant 0 : i32
    %c0_i32_1 = arith.constant 0 : i32
    return %arg1, %c0_i32, %c0_i32_0 : i32, i32, i32
  }
  func.func @transform_12(%arg0: i32, %arg1: i32) -> (i32, i32, i32) {
    %c0_i32 = arith.constant 0 : i32
    %c0_i32_0 = arith.constant 0 : i32
    %c0_i32_1 = arith.constant 0 : i32
    return %arg1, %c0_i32, %c0_i32_0 : i32, i32, i32
  }
  func.func @transform_13(%arg0: i32, %arg1: i32) -> (i32, i32, i32) {
    %c0_i32 = arith.constant 0 : i32
    %c0_i32_0 = arith.constant 0 : i32
    %c0_i32_1 = arith.constant 0 : i32
    return %arg1, %c0_i32, %c0_i32_0 : i32, i32, i32
  }
  func.func @transform_14(%arg0: i32, %arg1: i32) -> (i32, i32, i32) {
    %c0_i32 = arith.constant 0 : i32
    %c0_i32_0 = arith.constant 0 : i32
    %c0_i32_1 = arith.constant 0 : i32
    return %arg1, %c0_i32, %c0_i32_0 : i32, i32, i32
  }
  func.func @transform_15(%arg0: i32, %arg1: i32) -> (i32, i32) {
    %c0_i32 = arith.constant 0 : i32
    %c0_i32_0 = arith.constant 0 : i32
    %c0_i32_1 = arith.constant 0 : i32
    return %c0_i32, %c0_i32_0 : i32, i32
  }
  func.func @transform_16(%arg0: i32, %arg1: i32) -> (i32, i32) {
    %c0_i32 = arith.constant 0 : i32
    %c0_i32_0 = arith.constant 0 : i32
    %c0_i32_1 = arith.constant 0 : i32
    return %c0_i32, %c0_i32_0 : i32, i32
  }
  func.func @transform_17(%arg0: i32, %arg1: i32) -> (i32, i32) {
    %c0_i32 = arith.constant 0 : i32
    %c0_i32_0 = arith.constant 0 : i32
    %c0_i32_1 = arith.constant 0 : i32
    return %c0_i32, %c0_i32_0 : i32, i32
  }
  func.func @transform_18(%arg0: i32, %arg1: i32) -> (i32, i32) {
    %c0_i32 = arith.constant 0 : i32
    %c0_i32_0 = arith.constant 0 : i32
    %c0_i32_1 = arith.constant 0 : i32
    return %c0_i32, %c0_i32_0 : i32, i32
  }
  func.func @transform_19(%arg0: i32, %arg1: i32) -> (i32, i32, i32) {
    %c0_i32 = arith.constant 0 : i32
    %c0_i32_0 = arith.constant 0 : i32
    %c0_i32_1 = arith.constant 0 : i32
    return %arg0, %c0_i32, %c0_i32_0 : i32, i32, i32
  }
}

</mosaic_0001>

<llo_original>
// kernel: vit_forward.1
$region0: #{vit_forward.1}
  #allocation0 [shape = 'u32[]', space=smem, size = 0x4, offset = 0x4, fixed_abs, tag = 'smem constant byte address 0x4 - core index']
  #allocation1 [shape = 'u32[72,128]{1,0:T(1,128)}', space=vmem, size = 0x9000, scoped, tag = 'internal scratch']
  #allocation2 [shape = 'f32[2,16,32]{2,1,0:T(8,128)}', space=vmem, size = 0x4000, scoped, tag = 'scratch operand']
  %s0 = inlined_call_operand.vmem [shape: f32[2,16,64], index: 0, kind: input, shape index: {}]
  %s1 = inlined_call_operand.vmem [shape: f32[1,64], index: 1, kind: input, shape index: {}]
  %s2 = inlined_call_operand.vmem [shape: f32[1,64], index: 2, kind: input, shape index: {}]
  %s3 = inlined_call_operand.vmem [shape: bf16[64,32], index: 3, kind: input, shape index: {}]
  %s4 = inlined_call_operand.vmem [shape: f32[1,32], index: 4, kind: input, shape index: {}]
  %s5 = inlined_call_operand.vmem [shape: f32[1,32], index: 5, kind: input, shape index: {}]
  %s6 = inlined_call_operand.vmem [shape: f32[1,32], index: 6, kind: input, shape index: {}]
  %s7 = inlined_call_operand.vmem [shape: f32[16,32], index: 7, kind: input, shape index: {}]
  %s8 = inlined_call_operand.vmem [shape: f32[2,6,32], index: 8, kind: input, shape index: {}]
  %s9 = inlined_call_operand.vmem [shape: bf16[2,32,96], index: 9, kind: input, shape index: {}]
  %s10 = inlined_call_operand.vmem [shape: f32[2,1,96], index: 10, kind: input, shape index: {}]
  %s11 = inlined_call_operand.vmem [shape: bf16[2,32,32], index: 11, kind: input, shape index: {}]
  %s12 = inlined_call_operand.vmem [shape: bf16[2,32,128], index: 12, kind: input, shape index: {}]
  %s13 = inlined_call_operand.vmem [shape: f32[2,1,128], index: 13, kind: input, shape index: {}]
  %s14 = inlined_call_operand.vmem [shape: bf16[2,128,32], index: 14, kind: input, shape index: {}]
  %s15 = inlined_call_operand.vmem [shape: f32[1,32], index: 15, kind: input, shape index: {}]
  %s16 = inlined_call_operand.vmem [shape: f32[1,32], index: 16, kind: input, shape index: {}]
  %s17 = inlined_call_operand.vmem [shape: bf16[32,128], index: 17, kind: input, shape index: {}]
  %s18 = inlined_call_operand.vmem [shape: f32[1,128], index: 18, kind: input, shape index: {}]
  %s19 = inlined_call_operand.vmem [shape: f32[2,16,128], index: 19, kind: output, shape index: {}]
  %s20 = sld [smem:[#allocation0]]
  $region117: #{vit_forward.1} parent=0
    _
  %s22 = ssub.s32 1, %s20
  %s23 = scalar_select 0, %s22, %s20
  loop: start=0, step=1, limit=4
  $region2: #{vit_forward.1} parent=0 // loop_pre_header
    _
  $region3: #{vit_forward.1} parent=0 // loop_header
    %s25 = sphi 0, %s29
    %p26 = scmp.ge.s32.totalorder %s25, 4
    %s32 = sphi 0, %s44
    %s33 = sphi 0, %s40
    %s34 = sphi 0, %s32
    %s35 = sphi 0, %s33
    %s36 = sphi 0, %s34
    %s37 = sphi 0, %s35
    %s47 = sphi 0, %s49
    %s50 = sphi 0, %s47
    %s51 = sphi 0, %s50
    %s67 = sphi 0, %s51
    %s71 = sphi 0, %s71
    %s73 = sphi 0, %s71
    %s74 = sphi 0, %s73
    %s88 = sphi 0, %s74
    %s92 = sphi 0, %s92
    %s94 = sphi 0, %s92
    %s95 = sphi 0, %s94
    %s109 = sphi 0, %s95
    %s113 = sphi 0, %s113
    %s115 = sphi 0, %s113
    %s116 = sphi 0, %s115
    %s130 = sphi 0, %s116
    %s134 = sphi 0, %s134
    %s136 = sphi 0, %s134
    %s137 = sphi 0, %s136
    %s151 = sphi 0, %s137
    %s155 = sphi 0, %s155
    %s157 = sphi 0, %s155
    %s158 = sphi 0, %s157
    %s172 = sphi 0, %s158
    %s176 = sphi 0, %s176
    %s178 = sphi 0, %s176
    %s179 = sphi 0, %s178
    %s193 = sphi 0, %s179
    %s197 = sphi 0, %s197
    %s199 = sphi 0, %s197
    %s200 = sphi 0, %s199
    %s214 = sphi 0, %s200
    %s220 = sphi 0, %s222
    %s223 = sphi 0, %s220
    %s224 = sphi 0, %s223
    %s240 = sphi 0, %s224
    %s246 = sphi 0, %s248
    %s249 = sphi 0, %s246
    %s250 = sphi 0, %s249
    %s266 = sphi 0, %s250
    %s272 = sphi 0, %s274
    %s275 = sphi 0, %s272
    %s276 = sphi 0, %s275
    %s292 = sphi 0, %s276
    %s298 = sphi 0, %s300
    %s301 = sphi 0, %s298
    %s302 = sphi 0, %s301
    %s318 = sphi 0, %s302
    %s324 = sphi 0, %s326
    %s327 = sphi 0, %s324
    %s328 = sphi 0, %s327
    %s344 = sphi 0, %s328
    %s350 = sphi 0, %s352
    %s353 = sphi 0, %s350
    %s354 = sphi 0, %s353
    %s370 = sphi 0, %s354
    %s376 = sphi 0, %s378
    %s379 = sphi 0, %s376
    %s380 = sphi 0, %s379
    %s396 = sphi 0, %s380
    %s400 = sphi 0, %s400
    %s402 = sphi 0, %s400
    %s403 = sphi 0, %s402
    %s417 = sphi 0, %s403
    %s421 = sphi 0, %s421
    %s423 = sphi 0, %s421
    %s424 = sphi 0, %s423
    %s438 = sphi 0, %s424
    %s442 = sphi 0, %s442
    %s444 = sphi 0, %s442
    %s445 = sphi 0, %s444
    %s459 = sphi 0, %s445
    %s463 = sphi 0, %s463
    %s465 = sphi 0, %s463
    %s466 = sphi 0, %s465
    %s480 = sphi 0, %s466
    %s486 = sphi 0, %s488
    %s489 = sphi 0, %s486
    %s490 = sphi 0, %s489
    %s506 = sphi 0, %s490
  $region4: #{vit_forward.1} parent=0 // loop_header_branch
    %28 = sbr.rel (%p26) target = $region8
  $region5: #{vit_forward.1} parent=0 // loop_body
    %s30 = ssub.s32 %s25, 1
    %s31 = ssub.s32 %s25, 2
    %s38 = sadd.s32 1, %s33
    %p39 = scmp.ge.s32.totalorder %s38, 2
    %s40 = scalar_select %p39, 0, %s38
    %s41 = sadd.s32 1, %s32
    %s42 = scalar_select %p39, %s41, %s32
    %p43 = scmp.ge.s32.totalorder %s42, 1
    %s44 = scalar_select %p43, 0, %s42
    %s45 = ssub.s32 %s32, %s44
    %p46 = scmp.eq.s32.totalorder %s45, 0
    %s48 = sadd.s32 %s47, 1
    %s49 = scalar_select %p46, %s47, %s48
    %p52 = pneg %p46
    %p53 = scmp.eq.s32.totalorder %s25, 1
    %p54 = por %p52, %p53
    %p55 = scmp.ne.s32.totalorder %s47, %s50
    %p56 = scmp.eq.s32.totalorder %s25, 0
    %p57 = por %p55, %p56
    %p58 = scmp.ne.s32.totalorder %s47, %s50
    %p59 = scmp.eq.s32.totalorder %s30, 1
    %p60 = por %p58, %p59
    %p61 = scmp.ne.s32.totalorder %s50, %s51
    %p62 = scmp.eq.s32.totalorder %s30, 0
    %p63 = por %p61, %p62
    %p64 = scmp.ne.s32.totalorder %s50, %s51
    %p65 = scmp.eq.s32.totalorder %s31, 1
    %p66 = por %p64, %p65
    %p68 = scmp.ne.s32.totalorder %s51, %s67
    %p69 = scmp.eq.s32.totalorder %s31, 0
    %p70 = por %p68, %p69
    %s72 = sadd.s32 %s71, 1
    %p75 = scmp.eq.s32.totalorder %s25, 1
    %p76 = scmp.ne.s32.totalorder %s71, %s73
    %p77 = scmp.eq.s32.totalorder %s25, 0
    %p78 = por %p76, %p77
    %p79 = scmp.ne.s32.totalorder %s71, %s73
    %p80 = scmp.eq.s32.totalorder %s30, 1
    %p81 = por %p79, %p80
    %p82 = scmp.ne.s32.totalorder %s73, %s74
    %p83 = scmp.eq.s32.totalorder %s30, 0
    %p84 = por %p82, %p83
    %p85 = scmp.ne.s32.totalorder %s73, %s74
    %p86 = scmp.eq.s32.totalorder %s31, 1
    %p87 = por %p85, %p86
    %p89 = scmp.ne.s32.totalorder %s74, %s88
    %p90 = scmp.eq.s32.totalorder %s31, 0
    %p91 = por %p89, %p90
    %s93 = sadd.s32 %s92, 1
    %p96 = scmp.eq.s32.totalorder %s25, 1
    %p97 = scmp.ne.s32.totalorder %s92, %s94
    %p98 = scmp.eq.s32.totalorder %s25, 0
    %p99 = por %p97, %p98
    %p100 = scmp.ne.s32.totalorder %s92, %s94
    %p101 = scmp.eq.s32.totalorder %s30, 1
    %p102 = por %p100, %p101
    %p103 = scmp.ne.s32.totalorder %s94, %s95
    %p104 = scmp.eq.s32.totalorder %s30, 0
    %p105 = por %p103, %p104
    %p106 = scmp.ne.s32.totalorder %s94, %s95
    %p107 = scmp.eq.s32.totalorder %s31, 1
    %p108 = por %p106, %p107
    %p110 = scmp.ne.s32.totalorder %s95, %s109
    %p111 = scmp.eq.s32.totalorder %s31, 0
    %p112 = por %p110, %p111
    %s114 = sadd.s32 %s113, 1
    %p117 = scmp.eq.s32.totalorder %s25, 1
    %p118 = scmp.ne.s32.totalorder %s113, %s115
    %p119 = scmp.eq.s32.totalorder %s25, 0
    %p120 = por %p118, %p119
    %p121 = scmp.ne.s32.totalorder %s113, %s115
    %p122 = scmp.eq.s32.totalorder %s30, 1
    %p123 = por %p121, %p122
    %p124 = scmp.ne.s32.totalorder %s115, %s116
    %p125 = scmp.eq.s32.totalorder %s30, 0
    %p126 = por %p124, %p125
    %p127 = scmp.ne.s32.totalorder %s115, %s116
    %p128 = scmp.eq.s32.totalorder %s31, 1
    %p129 = por %p127, %p128
    %p131 = scmp.ne.s32.totalorder %s116, %s130
    %p132 = scmp.eq.s32.totalorder %s31, 0
    %p133 = por %p131, %p132
    %s135 = sadd.s32 %s134, 1
    %p138 = scmp.eq.s32.totalorder %s25, 1
    %p139 = scmp.ne.s32.totalorder %s134, %s136
    %p140 = scmp.eq.s32.totalorder %s25, 0
    %p141 = por %p139, %p140
    %p142 = scmp.ne.s32.totalorder %s134, %s136
    %p143 = scmp.eq.s32.totalorder %s30, 1
    %p144 = por %p142, %p143
    %p145 = scmp.ne.s32.totalorder %s136, %s137
    %p146 = scmp.eq.s32.totalorder %s30, 0
    %p147 = por %p145, %p146
    %p148 = scmp.ne.s32.totalorder %s136, %s137
    %p149 = scmp.eq.s32.totalorder %s31, 1
    %p150 = por %p148, %p149
    %p152 = scmp.ne.s32.totalorder %s137, %s151
    %p153 = scmp.eq.s32.totalorder %s31, 0
    %p154 = por %p152, %p153
    %s156 = sadd.s32 %s155, 1
    %p159 = scmp.eq.s32.totalorder %s25, 1
    %p160 = scmp.ne.s32.totalorder %s155, %s157
    %p161 = scmp.eq.s32.totalorder %s25, 0
    %p162 = por %p160, %p161
    %p163 = scmp.ne.s32.totalorder %s155, %s157
    %p164 = scmp.eq.s32.totalorder %s30, 1
    %p165 = por %p163, %p164
    %p166 = scmp.ne.s32.totalorder %s157, %s158
    %p167 = scmp.eq.s32.totalorder %s30, 0
    %p168 = por %p166, %p167
    %p169 = scmp.ne.s32.totalorder %s157, %s158
    %p170 = scmp.eq.s32.totalorder %s31, 1
    %p171 = por %p169, %p170
    %p173 = scmp.ne.s32.totalorder %s158, %s172
    %p174 = scmp.eq.s32.totalorder %s31, 0
    %p175 = por %p173, %p174
    %s177 = sadd.s32 %s176, 1
    %p180 = scmp.eq.s32.totalorder %s25, 1
    %p181 = scmp.ne.s32.totalorder %s176, %s178
    %p182 = scmp.eq.s32.totalorder %s25, 0
    %p183 = por %p181, %p182
    %p184 = scmp.ne.s32.totalorder %s176, %s178
    %p185 = scmp.eq.s32.totalorder %s30, 1
    %p186 = por %p184, %p185
    %p187 = scmp.ne.s32.totalorder %s178, %s179
    %p188 = scmp.eq.s32.totalorder %s30, 0
    %p189 = por %p187, %p188
    %p190 = scmp.ne.s32.totalorder %s178, %s179
    %p191 = scmp.eq.s32.totalorder %s31, 1
    %p192 = por %p190, %p191
    %p194 = scmp.ne.s32.totalorder %s179, %s193
    %p195 = scmp.eq.s32.totalorder %s31, 0
    %p196 = por %p194, %p195
    %s198 = sadd.s32 %s197, 1
    %p201 = scmp.eq.s32.totalorder %s25, 1
    %p202 = scmp.ne.s32.totalorder %s197, %s199
    %p203 = scmp.eq.s32.totalorder %s25, 0
    %p204 = por %p202, %p203
    %p205 = scmp.ne.s32.totalorder %s197, %s199
    %p206 = scmp.eq.s32.totalorder %s30, 1
    %p207 = por %p205, %p206
    %p208 = scmp.ne.s32.totalorder %s199, %s200
    %p209 = scmp.eq.s32.totalorder %s30, 0
    %p210 = por %p208, %p209
    %p211 = scmp.ne.s32.totalorder %s199, %s200
    %p212 = scmp.eq.s32.totalorder %s31, 1
    %p213 = por %p211, %p212
    %p215 = scmp.ne.s32.totalorder %s200, %s214
    %p216 = scmp.eq.s32.totalorder %s31, 0
    %p217 = por %p215, %p216
    %s218 = ssub.s32 %s33, %s40
    %p219 = scmp.eq.s32.totalorder %s218, 0
    %s221 = sadd.s32 %s220, 1
    %s222 = scalar_select %p219, %s220, %s221
    %p225 = pneg %p219
    %p226 = scmp.eq.s32.totalorder %s25, 1
    %p227 = por %p225, %p226
    %p228 = scmp.ne.s32.totalorder %s220, %s223
    %p229 = scmp.eq.s32.totalorder %s25, 0
    %p230 = por %p228, %p229
    %p231 = scmp.ne.s32.totalorder %s220, %s223
    %p232 = scmp.eq.s32.totalorder %s30, 1
    %p233 = por %p231, %p232
    %p234 = scmp.ne.s32.totalorder %s223, %s224
    %p235 = scmp.eq.s32.totalorder %s30, 0
    %p236 = por %p234, %p235
    %p237 = scmp.ne.s32.totalorder %s223, %s224
    %p238 = scmp.eq.s32.totalorder %s31, 1
    %p239 = por %p237, %p238
    %p241 = scmp.ne.s32.totalorder %s224, %s240
    %p242 = scmp.eq.s32.totalorder %s31, 0
    %p243 = por %p241, %p242
    %s244 = ssub.s32 %s33, %s40
    %p245 = scmp.eq.s32.totalorder %s244, 0
    %s247 = sadd.s32 %s246, 1
    %s248 = scalar_select %p245, %s246, %s247
    %p251 = pneg %p245
    %p252 = scmp.eq.s32.totalorder %s25, 1
    %p253 = por %p251, %p252
    %p254 = scmp.ne.s32.totalorder %s246, %s249
    %p255 = scmp.eq.s32.totalorder %s25, 0
    %p256 = por %p254, %p255
    %p257 = scmp.ne.s32.totalorder %s246, %s249
    %p258 = scmp.eq.s32.totalorder %s30, 1
    %p259 = por %p257, %p258
    %p260 = scmp.ne.s32.totalorder %s249, %s250
    %p261 = scmp.eq.s32.totalorder %s30, 0
    %p262 = por %p260, %p261
    %p263 = scmp.ne.s32.totalorder %s249, %s250
    %p264 = scmp.eq.s32.totalorder %s31, 1
    %p265 = por %p263, %p264
    %p267 = scmp.ne.s32.totalorder %s250, %s266
    %p268 = scmp.eq.s32.totalorder %s31, 0
    %p269 = por %p267, %p268
    %s270 = ssub.s32 %s33, %s40
    %p271 = scmp.eq.s32.totalorder %s270, 0
    %s273 = sadd.s32 %s272, 1
    %s274 = scalar_select %p271, %s272, %s273
    %p277 = pneg %p271
    %p278 = scmp.eq.s32.totalorder %s25, 1
    %p279 = por %p277, %p278
    %p280 = scmp.ne.s32.totalorder %s272, %s275
    %p281 = scmp.eq.s32.totalorder %s25, 0
    %p282 = por %p280, %p281
    %p283 = scmp.ne.s32.totalorder %s272, %s275
    %p284 = scmp.eq.s32.totalorder %s30, 1
    %p285 = por %p283, %p284
    %p286 = scmp.ne.s32.totalorder %s275, %s276
    %p287 = scmp.eq.s32.totalorder %s30, 0
    %p288 = por %p286, %p287
    %p289 = scmp.ne.s32.totalorder %s275, %s276
    %p290 = scmp.eq.s32.totalorder %s31, 1
    %p291 = por %p289, %p290
    %p293 = scmp.ne.s32.totalorder %s276, %s292
    %p294 = scmp.eq.s32.totalorder %s31, 0
    %p295 = por %p293, %p294
    %s296 = ssub.s32 %s33, %s40
    %p297 = scmp.eq.s32.totalorder %s296, 0
    %s299 = sadd.s32 %s298, 1
    %s300 = scalar_select %p297, %s298, %s299
    %p303 = pneg %p297
    %p304 = scmp.eq.s32.totalorder %s25, 1
    %p305 = por %p303, %p304
    %p306 = scmp.ne.s32.totalorder %s298, %s301
    %p307 = scmp.eq.s32.totalorder %s25, 0
    %p308 = por %p306, %p307
    %p309 = scmp.ne.s32.totalorder %s298, %s301
    %p310 = scmp.eq.s32.totalorder %s30, 1
    %p311 = por %p309, %p310
    %p312 = scmp.ne.s32.totalorder %s301, %s302
    %p313 = scmp.eq.s32.totalorder %s30, 0
    %p314 = por %p312, %p313
    %p315 = scmp.ne.s32.totalorder %s301, %s302
    %p316 = scmp.eq.s32.totalorder %s31, 1
    %p317 = por %p315, %p316
    %p319 = scmp.ne.s32.totalorder %s302, %s318
    %p320 = scmp.eq.s32.totalorder %s31, 0
    %p321 = por %p319, %p320
    %s322 = ssub.s32 %s33, %s40
    %p323 = scmp.eq.s32.totalorder %s322, 0
    %s325 = sadd.s32 %s324, 1
    %s326 = scalar_select %p323, %s324, %s325
    %p329 = pneg %p323
    %p330 = scmp.eq.s32.totalorder %s25, 1
    %p331 = por %p329, %p330
    %p332 = scmp.ne.s32.totalorder %s324, %s327
    %p333 = scmp.eq.s32.totalorder %s25, 0
    %p334 = por %p332, %p333
    %p335 = scmp.ne.s32.totalorder %s324, %s327
    %p336 = scmp.eq.s32.totalorder %s30, 1
    %p337 = por %p335, %p336
    %p338 = scmp.ne.s32.totalorder %s327, %s328
    %p339 = scmp.eq.s32.totalorder %s30, 0
    %p340 = por %p338, %p339
    %p341 = scmp.ne.s32.totalorder %s327, %s328
    %p342 = scmp.eq.s32.totalorder %s31, 1
    %p343 = por %p341, %p342
    %p345 = scmp.ne.s32.totalorder %s328, %s344
    %p346 = scmp.eq.s32.totalorder %s31, 0
    %p347 = por %p345, %p346
    %s348 = ssub.s32 %s33, %s40
    %p349 = scmp.eq.s32.totalorder %s348, 0
    %s351 = sadd.s32 %s350, 1
    %s352 = scalar_select %p349, %s350, %s351
    %p355 = pneg %p349
    %p356 = scmp.eq.s32.totalorder %s25, 1
    %p357 = por %p355, %p356
    %p358 = scmp.ne.s32.totalorder %s350, %s353
    %p359 = scmp.eq.s32.totalorder %s25, 0
    %p360 = por %p358, %p359
    %p361 = scmp.ne.s32.totalorder %s350, %s353
    %p362 = scmp.eq.s32.totalorder %s30, 1
    %p363 = por %p361, %p362
    %p364 = scmp.ne.s32.totalorder %s353, %s354
    %p365 = scmp.eq.s32.totalorder %s30, 0
    %p366 = por %p364, %p365
    %p367 = scmp.ne.s32.totalorder %s353, %s354
    %p368 = scmp.eq.s32.totalorder %s31, 1
    %p369 = por %p367, %p368
    %p371 = scmp.ne.s32.totalorder %s354, %s370
    %p372 = scmp.eq.s32.totalorder %s31, 0
    %p373 = por %p371, %p372
    %s374 = ssub.s32 %s33, %s40
    %p375 = scmp.eq.s32.totalorder %s374, 0
    %s377 = sadd.s32 %s376, 1
    %s378 = scalar_select %p375, %s376, %s377
    %p381 = pneg %p375
    %p382 = scmp.eq.s32.totalorder %s25, 1
    %p383 = por %p381, %p382
    %p384 = scmp.ne.s32.totalorder %s376, %s379
    %p385 = scmp.eq.s32.totalorder %s25, 0
    %p386 = por %p384, %p385
    %p387 = scmp.ne.s32.totalorder %s376, %s379
    %p388 = scmp.eq.s32.totalorder %s30, 1
    %p389 = por %p387, %p388
    %p390 = scmp.ne.s32.totalorder %s379, %s380
    %p391 = scmp.eq.s32.totalorder %s30, 0
    %p392 = por %p390, %p391
    %p393 = scmp.ne.s32.totalorder %s379, %s380
    %p394 = scmp.eq.s32.totalorder %s31, 1
    %p395 = por %p393, %p394
    %p397 = scmp.ne.s32.totalorder %s380, %s396
    %p398 = scmp.eq.s32.totalorder %s31, 0
    %p399 = por %p397, %p398
    %s401 = sadd.s32 %s400, 1
    %p404 = scmp.eq.s32.totalorder %s25, 1
    %p405 = scmp.ne.s32.totalorder %s400, %s402
    %p406 = scmp.eq.s32.totalorder %s25, 0
    %p407 = por %p405, %p406
    %p408 = scmp.ne.s32.totalorder %s400, %s402
    %p409 = scmp.eq.s32.totalorder %s30, 1
    %p410 = por %p408, %p409
    %p411 = scmp.ne.s32.totalorder %s402, %s403
    %p412 = scmp.eq.s32.totalorder %s30, 0
    %p413 = por %p411, %p412
    %p414 = scmp.ne.s32.totalorder %s402, %s403
    %p415 = scmp.eq.s32.totalorder %s31, 1
    %p416 = por %p414, %p415
    %p418 = scmp.ne.s32.totalorder %s403, %s417
    %p419 = scmp.eq.s32.totalorder %s31, 0
    %p420 = por %p418, %p419
    %s422 = sadd.s32 %s421, 1
    %p425 = scmp.eq.s32.totalorder %s25, 1
    %p426 = scmp.ne.s32.totalorder %s421, %s423
    %p427 = scmp.eq.s32.totalorder %s25, 0
    %p428 = por %p426, %p427
    %p429 = scmp.ne.s32.totalorder %s421, %s423
    %p430 = scmp.eq.s32.totalorder %s30, 1
    %p431 = por %p429, %p430
    %p432 = scmp.ne.s32.totalorder %s423, %s424
    %p433 = scmp.eq.s32.totalorder %s30, 0
    %p434 = por %p432, %p433
    %p435 = scmp.ne.s32.totalorder %s423, %s424
    %p436 = scmp.eq.s32.totalorder %s31, 1
    %p437 = por %p435, %p436
    %p439 = scmp.ne.s32.totalorder %s424, %s438
    %p440 = scmp.eq.s32.totalorder %s31, 0
    %p441 = por %p439, %p440
    %s443 = sadd.s32 %s442, 1
    %p446 = scmp.eq.s32.totalorder %s25, 1
    %p447 = scmp.ne.s32.totalorder %s442, %s444
    %p448 = scmp.eq.s32.totalorder %s25, 0
    %p449 = por %p447, %p448
    %p450 = scmp.ne.s32.totalorder %s442, %s444
    %p451 = scmp.eq.s32.totalorder %s30, 1
    %p452 = por %p450, %p451
    %p453 = scmp.ne.s32.totalorder %s444, %s445
    %p454 = scmp.eq.s32.totalorder %s30, 0
    %p455 = por %p453, %p454
    %p456 = scmp.ne.s32.totalorder %s444, %s445
    %p457 = scmp.eq.s32.totalorder %s31, 1
    %p458 = por %p456, %p457
    %p460 = scmp.ne.s32.totalorder %s445, %s459
    %p461 = scmp.eq.s32.totalorder %s31, 0
    %p462 = por %p460, %p461
    %s464 = sadd.s32 %s463, 1
    %p467 = scmp.eq.s32.totalorder %s25, 1
    %p468 = scmp.ne.s32.totalorder %s463, %s465
    %p469 = scmp.eq.s32.totalorder %s25, 0
    %p470 = por %p468, %p469
    %p471 = scmp.ne.s32.totalorder %s463, %s465
    %p472 = scmp.eq.s32.totalorder %s30, 1
    %p473 = por %p471, %p472
    %p474 = scmp.ne.s32.totalorder %s465, %s466
    %p475 = scmp.eq.s32.totalorder %s30, 0
    %p476 = por %p474, %p475
    %p477 = scmp.ne.s32.totalorder %s465, %s466
    %p478 = scmp.eq.s32.totalorder %s31, 1
    %p479 = por %p477, %p478
    %p481 = scmp.ne.s32.totalorder %s466, %s480
    %p482 = scmp.eq.s32.totalorder %s31, 0
    %p483 = por %p481, %p482
    %s484 = ssub.s32 %s32, %s44
    %p485 = scmp.eq.s32.totalorder %s484, 0
    %s487 = sadd.s32 %s486, 1
    %s488 = scalar_select %p485, %s486, %s487
    %p491 = pneg %p485
    %p492 = scmp.eq.s32.totalorder %s25, 1
    %p493 = por %p491, %p492
    %p494 = scmp.ne.s32.totalorder %s486, %s489
    %p495 = scmp.eq.s32.totalorder %s25, 0
    %p496 = por %p494, %p495
    %p497 = scmp.ne.s32.totalorder %s486, %s489
    %p498 = scmp.eq.s32.totalorder %s30, 1
    %p499 = por %p497, %p498
    %p500 = scmp.ne.s32.totalorder %s489, %s490
    %p501 = scmp.eq.s32.totalorder %s30, 0
    %p502 = por %p500, %p501
    %p503 = scmp.ne.s32.totalorder %s489, %s490
    %p504 = scmp.eq.s32.totalorder %s31, 1
    %p505 = por %p503, %p504
    %p507 = scmp.ne.s32.totalorder %s490, %s506
    %p508 = scmp.eq.s32.totalorder %s31, 0
    %p509 = por %p507, %p508
    %p510 = scmp.le.s32.totalorder 1, %s25
    %p511 = scmp.lt.s32.totalorder %s25, 3
    %p512 = pnand %p510, %p511
    %p513 = pneg %p512
    // Predicated region
    $region9: #{vit_forward.1} parent=5 // pred_check
      _
    $region10: #{vit_forward.1} parent=5 // pred_check_branch
      %515 = sbr.rel (%p512) target = $region12
    $region11: #{vit_forward.1} parent=5 // pred_region
      %s516 = ssub.s32 %s25, 1
      // Predicated region
      $region13: #{vit_forward.1} parent=11 // pred_check
        %p517 = pneg %p63
      $region14: #{vit_forward.1} parent=11 // pred_check_branch
        %519 = sbr.rel (%p517) target = $region16
      $region15: #{vit_forward.1} parent=11 // pred_region
        %s520 = smul.u32 2, %s34
        %p521 = scmp.lt.s32.totalorder %s520, 1
        %s522 = scalar_select %p521, %s520, 1
        %s523 = smul.addr %s522, 2
        %s524 = smul.addr %s523, 8
        %s525 = scalar_lea.vmem %s0, %s524
        %s526 = smul.u32 2, %s34
      $region16: #{vit_forward.1} parent=11 // pred_fallthru
        _
      // Predicated region
      $region17: #{vit_forward.1} parent=11 // pred_check
        %p527 = pneg %p84
      $region18: #{vit_forward.1} parent=11 // pred_check_branch
        %529 = sbr.rel (%p527) target = $region20
      $region19: #{vit_forward.1} parent=11 // pred_region
        _
      $region20: #{vit_forward.1} parent=11 // pred_fallthru
        _
      // Predicated region
      $region21: #{vit_forward.1} parent=11 // pred_check
        %p530 = pneg %p105
      $region22: #{vit_forward.1} parent=11 // pred_check_branch
        %532 = sbr.rel (%p530) target = $region24
      $region23: #{vit_forward.1} parent=11 // pred_region
        _
      $region24: #{vit_forward.1} parent=11 // pred_fallthru
        _
      // Predicated region
      $region25: #{vit_forward.1} parent=11 // pred_check
        %p533 = pneg %p126
      $region26: #{vit_forward.1} parent=11 // pred_check_branch
        %535 = sbr.rel (%p533) target = $region28
      $region27: #{vit_forward.1} parent=11 // pred_region
        _
      $region28: #{vit_forward.1} parent=11 // pred_fallthru
        _
      // Predicated region
      $region29: #{vit_forward.1} parent=11 // pred_check
        %p536 = pneg %p147
      $region30: #{vit_forward.1} parent=11 // pred_check_branch
        %538 = sbr.rel (%p536) target = $region32
      $region31: #{vit_forward.1} parent=11 // pred_region
        _
      $region32: #{vit_forward.1} parent=11 // pred_fallthru
        _
      // Predicated region
      $region33: #{vit_forward.1} parent=11 // pred_check
        %p539 = pneg %p168
      $region34: #{vit_forward.1} parent=11 // pred_check_branch
        %541 = sbr.rel (%p539) target = $region36
      $region35: #{vit_forward.1} parent=11 // pred_region
        _
      $region36: #{vit_forward.1} parent=11 // pred_fallthru
        _
      // Predicated region
      $region37: #{vit_forward.1} parent=11 // pred_check
        %p542 = pneg %p189
      $region38: #{vit_forward.1} parent=11 // pred_check_branch
        %544 = sbr.rel (%p542) target = $region40
      $region39: #{vit_forward.1} parent=11 // pred_region
        _
      $region40: #{vit_forward.1} parent=11 // pred_fallthru
        _
      // Predicated region
      $region41: #{vit_forward.1} parent=11 // pred_check
        %p545 = pneg %p210
      $region42: #{vit_forward.1} parent=11 // pred_check_branch
        %547 = sbr.rel (%p545) target = $region44
      $region43: #{vit_forward.1} parent=11 // pred_region
        _
      $region44: #{vit_forward.1} parent=11 // pred_fallthru
        _
      // Predicated region
      $region45: #{vit_forward.1} parent=11 // pred_check
        %p548 = pneg %p413
      $region46: #{vit_forward.1} parent=11 // pred_check_branch
        %550 = sbr.rel (%p548) target = $region48
      $region47: #{vit_forward.1} parent=11 // pred_region
        _
      $region48: #{vit_forward.1} parent=11 // pred_fallthru
        _
      // Predicated region
      $region49: #{vit_forward.1} parent=11 // pred_check
        %p551 = pneg %p434
      $region50: #{vit_forward.1} parent=11 // pred_check_branch
        %553 = sbr.rel (%p551) target = $region52
      $region51: #{vit_forward.1} parent=11 // pred_region
        _
      $region52: #{vit_forward.1} parent=11 // pred_fallthru
        _
      // Predicated region
      $region53: #{vit_forward.1} parent=11 // pred_check
        %p554 = pneg %p455
      $region54: #{vit_forward.1} parent=11 // pred_check_branch
        %556 = sbr.rel (%p554) target = $region56
      $region55: #{vit_forward.1} parent=11 // pred_region
        _
      $region56: #{vit_forward.1} parent=11 // pred_fallthru
        _
      // Predicated region
      $region57: #{vit_forward.1} parent=11 // pred_check
        %p557 = pneg %p476
      $region58: #{vit_forward.1} parent=11 // pred_check_branch
        %559 = sbr.rel (%p557) target = $region60
      $region59: #{vit_forward.1} parent=11 // pred_region
        _
      $region60: #{vit_forward.1} parent=11 // pred_fallthru
        _
    $region12: #{vit_forward.1} parent=5 // pred_fallthru
      _
    %p560 = scmp.lt.s32.totalorder %s25, 2
    // Predicated region
    $region61: #{vit_forward.1} parent=5 // pred_check
      %p561 = pneg %p560
    $region62: #{vit_forward.1} parent=5 // pred_check_branch
      %563 = sbr.rel (%p561) target = $region64
    $region63: #{vit_forward.1} parent=5 // pred_region
      // Predicated region
      $region65: #{vit_forward.1} parent=63 // pred_check
        %p564 = pneg %p230
      $region66: #{vit_forward.1} parent=63 // pred_check_branch
        %566 = sbr.rel (%p564) target = $region68
      $region67: #{vit_forward.1} parent=63 // pred_region
        %p567 = scmp.lt.s32.totalorder %s33, 1
        %s568 = scalar_select %p567, %s33, 1
        %s569 = smul.addr %s568, 8
        %s570 = scalar_lea.vmem %s8, %s569
      $region68: #{vit_forward.1} parent=63 // pred_fallthru
        _
      // Predicated region
      $region69: #{vit_forward.1} parent=63 // pred_check
        %p571 = pneg %p256
      $region70: #{vit_forward.1} parent=63 // pred_check_branch
        %573 = sbr.rel (%p571) target = $region72
      $region71: #{vit_forward.1} parent=63 // pred_region
        %p574 = scmp.lt.s32.totalorder %s33, 1
        %s575 = scalar_select %p574, %s33, 1
        %s576 = smul.addr %s575, 4
        %s577 = smul.addr %s576, 4
        %s578 = scalar_lea.vmem %s9, %s577
      $region72: #{vit_forward.1} parent=63 // pred_fallthru
        _
      // Predicated region
      $region73: #{vit_forward.1} parent=63 // pred_check
        %p579 = pneg %p282
      $region74: #{vit_forward.1} parent=63 // pred_check_branch
        %581 = sbr.rel (%p579) target = $region76
      $region75: #{vit_forward.1} parent=63 // pred_region
        %p582 = scmp.lt.s32.totalorder %s33, 1
        %s583 = scalar_select %p582, %s33, 1
        %s584 = scalar_lea.vmem %s10, %s583
      $region76: #{vit_forward.1} parent=63 // pred_fallthru
        _
      // Predicated region
      $region77: #{vit_forward.1} parent=63 // pred_check
        %p585 = pneg %p308
      $region78: #{vit_forward.1} parent=63 // pred_check_branch
        %587 = sbr.rel (%p585) target = $region80
      $region79: #{vit_forward.1} parent=63 // pred_region
        %p588 = scmp.lt.s32.totalorder %s33, 1
        %s589 = scalar_select %p588, %s33, 1
        %s590 = smul.addr %s589, 4
        %s591 = smul.addr %s590, 4
        %s592 = scalar_lea.vmem %s11, %s591
      $region80: #{vit_forward.1} parent=63 // pred_fallthru
        _
      // Predicated region
      $region81: #{vit_forward.1} parent=63 // pred_check
        %p593 = pneg %p334
      $region82: #{vit_forward.1} parent=63 // pred_check_branch
        %595 = sbr.rel (%p593) target = $region84
      $region83: #{vit_forward.1} parent=63 // pred_region
        %p596 = scmp.lt.s32.totalorder %s33, 1
        %s597 = scalar_select %p596, %s33, 1
        %s598 = smul.addr %s597, 4
        %s599 = smul.addr %s598, 4
        %s600 = scalar_lea.vmem %s12, %s599
      $region84: #{vit_forward.1} parent=63 // pred_fallthru
        _
      // Predicated region
      $region85: #{vit_forward.1} parent=63 // pred_check
        %p601 = pneg %p360
      $region86: #{vit_forward.1} parent=63 // pred_check_branch
        %603 = sbr.rel (%p601) target = $region88
      $region87: #{vit_forward.1} parent=63 // pred_region
        %p604 = scmp.lt.s32.totalorder %s33, 1
        %s605 = scalar_select %p604, %s33, 1
        %s606 = scalar_lea.vmem %s13, %s605
      $region88: #{vit_forward.1} parent=63 // pred_fallthru
        _
      // Predicated region
      $region89: #{vit_forward.1} parent=63 // pred_check
        %p607 = pneg %p386
      $region90: #{vit_forward.1} parent=63 // pred_check_branch
        %609 = sbr.rel (%p607) target = $region92
      $region91: #{vit_forward.1} parent=63 // pred_region
        %p610 = scmp.lt.s32.totalorder %s33, 1
        %s611 = scalar_select %p610, %s33, 1
        %s612 = smul.addr %s611, 16
        %s613 = smul.addr %s612, 4
        %s614 = scalar_lea.vmem %s14, %s613
      $region92: #{vit_forward.1} parent=63 // pred_fallthru
        _
    $region64: #{vit_forward.1} parent=5 // pred_fallthru
      _
    %p615 = scmp.le.s32.totalorder 1, %s25
    %p616 = scmp.lt.s32.totalorder %s25, 3
    %p617 = pnand %p615, %p616
    %p618 = pneg %p617
    // Predicated region
    $region93: #{vit_forward.1} parent=5 // pred_check
      _
    $region94: #{vit_forward.1} parent=5 // pred_check_branch
      %620 = sbr.rel (%p617) target = $region96
    $region95: #{vit_forward.1} parent=5 // pred_region
      %s621 = ssub.s32 %s25, 1
      %s622 = smul.u32 2, %s34
      %p623 = scmp.lt.s32.totalorder %s622, 1
      %s624 = scalar_select %p623, %s622, 1
      %s625 = smul.addr %s624, 2
      %s626 = smul.addr %s625, 8
      %s627 = scalar_lea.vmem %s0, %s626
      %p628 = pneg %p63
      %p629 = pneg %p60
      %p630 = pneg %p84
      %p631 = pneg %p81
      %p632 = pneg %p105
      %p633 = pneg %p102
      %p634 = pneg %p126
      %p635 = pneg %p123
      %p636 = pneg %p147
      %p637 = pneg %p144
      %p638 = pneg %p168
      %p639 = pneg %p165
      %p640 = pneg %p189
      %p641 = pneg %p186
      %p642 = pneg %p210
      %p643 = pneg %p207
      %p644 = scmp.lt.s32.totalorder %s35, 1
      %s645 = scalar_select %p644, %s35, 1
      %s646 = smul.addr %s645, 8
      %s647 = scalar_lea.vmem %s8, %s646
      %p648 = pneg %p236
      %p649 = pneg %p233
      %p650 = scmp.lt.s32.totalorder %s35, 1
      %s651 = scalar_select %p650, %s35, 1
      %s652 = smul.addr %s651, 4
      %s653 = smul.addr %s652, 4
      %s654 = scalar_lea.vmem %s9, %s653
      %p655 = pneg %p262
      %p656 = pneg %p259
      %p657 = scmp.lt.s32.totalorder %s35, 1
      %s658 = scalar_select %p657, %s35, 1
      %s659 = scalar_lea.vmem %s10, %s658
      %p660 = pneg %p288
      %p661 = pneg %p285
      %p662 = scmp.lt.s32.totalorder %s35, 1
      %s663 = scalar_select %p662, %s35, 1
      %s664 = smul.addr %s663, 4
      %s665 = smul.addr %s664, 4
      %s666 = scalar_lea.vmem %s11, %s665
      %p667 = pneg %p314
      %p668 = pneg %p311
      %p669 = scmp.lt.s32.totalorder %s35, 1
      %s670 = scalar_select %p669, %s35, 1
      %s671 = smul.addr %s670, 4
      %s672 = smul.addr %s671, 4
      %s673 = scalar_lea.vmem %s12, %s672
      %p674 = pneg %p340
      %p675 = pneg %p337
      %p676 = scmp.lt.s32.totalorder %s35, 1
      %s677 = scalar_select %p676, %s35, 1
      %s678 = scalar_lea.vmem %s13, %s677
      %p679 = pneg %p366
      %p680 = pneg %p363
      %p681 = scmp.lt.s32.totalorder %s35, 1
      %s682 = scalar_select %p681, %s35, 1
      %s683 = smul.addr %s682, 16
      %s684 = smul.addr %s683, 4
      %s685 = scalar_lea.vmem %s14, %s684
      %p686 = pneg %p392
      %p687 = pneg %p389
      %p688 = pneg %p413
      %p689 = pneg %p410
      %p690 = pneg %p434
      %p691 = pneg %p431
      %p692 = pneg %p455
      %p693 = pneg %p452
      %p694 = pneg %p476
      %p695 = pneg %p473
      %p696 = pneg %p502
      %p697 = pneg %p499
      %s698 = smul.u32 2, %s34
      %p699 = scmp.lt.s32.totalorder %s698, 1
      %s700 = scalar_select %p699, %s698, 1
      %s701 = smul.addr %s700, 2
      %s702 = smul.addr %s701, 8
      %s703 = scalar_lea.vmem %s19, %s702
      %s704 = smul.u32 2, %s34
      %p705 = scmp.lt.s32.totalorder %s704, 1
      %s706 = scalar_select %p705, %s704, 1
      %s707 = smul.addr %s706, 2
      %s708 = smul.addr %s707, 8
      %s709 = scalar_lea.vmem %s0, %s708
      %s710 = smul.u32 2, %s34
      %p711 = scmp.lt.s32.totalorder %s35, 1
      %s712 = scalar_select %p711, %s35, 1
      %s713 = smul.addr %s712, 8
      %s714 = scalar_lea.vmem %s8, %s713
      %p715 = scmp.lt.s32.totalorder %s35, 1
      %s716 = scalar_select %p715, %s35, 1
      %s717 = smul.addr %s716, 4
      %s718 = smul.addr %s717, 4
      %s719 = scalar_lea.vmem %s9, %s718
      %p720 = scmp.lt.s32.totalorder %s35, 1
      %s721 = scalar_select %p720, %s35, 1
      %s722 = scalar_lea.vmem %s10, %s721
      %p723 = scmp.lt.s32.totalorder %s35, 1
      %s724 = scalar_select %p723, %s35, 1
      %s725 = smul.addr %s724, 4
      %s726 = smul.addr %s725, 4
      %s727 = scalar_lea.vmem %s11, %s726
      %p728 = scmp.lt.s32.totalorder %s35, 1
      %s729 = scalar_select %p728, %s35, 1
      %s730 = smul.addr %s729, 4
      %s731 = smul.addr %s730, 4
      %s732 = scalar_lea.vmem %s12, %s731
      %p733 = scmp.lt.s32.totalorder %s35, 1
      %s734 = scalar_select %p733, %s35, 1
      %s735 = scalar_lea.vmem %s13, %s734
      %p736 = scmp.lt.s32.totalorder %s35, 1
      %s737 = scalar_select %p736, %s35, 1
      %s738 = smul.addr %s737, 16
      %s739 = smul.addr %s738, 4
      %s740 = scalar_lea.vmem %s14, %s739
      %s741 = smul.u32 2, %s34
      %p742 = scmp.lt.s32.totalorder %s741, 1
      %s743 = scalar_select %p742, %s741, 1
      %s744 = smul.addr %s743, 2
      %s745 = smul.addr %s744, 8
      %s746 = scalar_lea.vmem %s19, %s745
      %s747 = smul.u32 2, %s34
      %p749 = scmp.eq.s32.totalorder %s35, 0
      // Predicated region
      $region97: #{vit_forward.1} parent=95 // pred_check
        %p750 = pneg %p749
      $region98: #{vit_forward.1} parent=95 // pred_check_branch
        %752 = sbr.rel (%p750) target = $region100
      $region99: #{vit_forward.1} parent=95 // pred_region
        %v753 = vld [vmem:[%s709] sm:$0xff]
        %v754 = vld [vmem:[%s709 + $0x8] sm:$0xff]
        %v755 = vld [vmem:[%s709 + $0x10] sm:$0xff]
        %v756 = vld [vmem:[%s709 + $0x18] sm:$0xff]
        %v757 = vld [vmem:[%s1] sm:$0x1]
        %v758 = vld [vmem:[%s2] sm:$0x1]
        %vm759 = vcmask 523264
        %v760 = vsel %vm759, %v753, 0.0
        %761 = vadd.xlane.f32.xlu0 %v760
        %v762 = vpop.xlane.xlu0 %761
        %v763 = vsel %vm759, %v754, 0.0
        %764 = vadd.xlane.f32.xlu0 %v763
        %v765 = vpop.xlane.xlu0 %764
        %v766 = vsel %vm759, %v755, 0.0
        %767 = vadd.xlane.f32.xlu0 %v766
        %v768 = vpop.xlane.xlu0 %767
        %v769 = vsel %vm759, %v756, 0.0
        %770 = vadd.xlane.f32.xlu0 %v769
        %v771 = vpop.xlane.xlu0 %770
        %v772 = vrcp.pop 64.0
        %v773 = vmul.f32 64.0, %v772
        %v774 = vsub.f32 1.0, %v773
        %v775 = vmul.f32 %v772, %v774
        %v776 = vadd.f32 %v772, %v775
        %vm777 = vweird.f32 %v772
        %v778 = vsel %vm777, %v772, %v776
        %v779 = vmul.f32 %v762, %v778
        %v780 = vmul.f32 %v765, %v778
        %v781 = vmul.f32 %v768, %v778
        %v782 = vmul.f32 %v771, %v778
        %v783 = vsub.f32 %v753, %v779
        %v784 = vsub.f32 %v754, %v780
        %v785 = vsub.f32 %v755, %v781
        %v786 = vsub.f32 %v756, %v782
        %v787 = vmul.f32 %v783, %v783
        %v788 = vmul.f32 %v784, %v784
        %v789 = vmul.f32 %v785, %v785
        %v790 = vmul.f32 %v786, %v786
        %v791 = vsel %vm759, %v787, 0.0
        %792 = vadd.xlane.f32.xlu0 %v791
        %v793 = vpop.xlane.xlu0 %792
        %v794 = vsel %vm759, %v788, 0.0
        %795 = vadd.xlane.f32.xlu0 %v794
        %v796 = vpop.xlane.xlu0 %795
        %v797 = vsel %vm759, %v789, 0.0
        %798 = vadd.xlane.f32.xlu0 %v797
        %v799 = vpop.xlane.xlu0 %798
        %v800 = vsel %vm759, %v790, 0.0
        %801 = vadd.xlane.f32.xlu0 %v800
        %v802 = vpop.xlane.xlu0 %801
        %v803 = vmul.f32 %v793, %v778
        %v804 = vmul.f32 %v796, %v778
        %v805 = vmul.f32 %v799, %v778
        %v806 = vmul.f32 %v802, %v778
        %v807 = vadd.f32 %v803, 1e-05
        %v808 = vadd.f32 %v804, 1e-05
        %v809 = vadd.f32 %v805, 1e-05
        %v810 = vadd.f32 %v806, 1e-05
        %v811 = vrsqrt.pop %v807
        %v812 = vmul.f32 %v811, %v807
        %v813 = vmul.f32 %v812, %v811
        %v814 = vmul.f32 0.5, %v813
        %v815 = vsub.f32 1.5, %v814
        %v816 = vmul.f32 %v811, %v815
        %vm817 = vweird.f32 %v807
        %vm818 = vweird.f32 %v811
        %vm819 = vmor %vm817, %vm818
        %v820 = vsel %vm819, %v811, %v816
        %v821 = vrsqrt.pop %v808
        %v822 = vmul.f32 %v821, %v808
        %v823 = vmul.f32 %v822, %v821
        %v824 = vmul.f32 0.5, %v823
        %v825 = vsub.f32 1.5, %v824
        %v826 = vmul.f32 %v821, %v825
        %vm827 = vweird.f32 %v808
        %vm828 = vweird.f32 %v821
        %vm829 = vmor %vm827, %vm828
        %v830 = vsel %vm829, %v821, %v826
        %v831 = vrsqrt.pop %v809
        %v832 = vmul.f32 %v831, %v809
        %v833 = vmul.f32 %v832, %v831
        %v834 = vmul.f32 0.5, %v833
        %v835 = vsub.f32 1.5, %v834
        %v836 = vmul.f32 %v831, %v835
        %vm837 = vweird.f32 %v809
        %vm838 = vweird.f32 %v831
        %vm839 = vmor %vm837, %vm838
        %v840 = vsel %vm839, %v831, %v836
        %v841 = vrsqrt.pop %v810
        %v842 = vmul.f32 %v841, %v810
        %v843 = vmul.f32 %v842, %v841
        %v844 = vmul.f32 0.5, %v843
        %v845 = vsub.f32 1.5, %v844
        %v846 = vmul.f32 %v841, %v845
        %vm847 = vweird.f32 %v810
        %vm848 = vweird.f32 %v841
        %vm849 = vmor %vm847, %vm848
        %v850 = vsel %vm849, %v841, %v846
        %v851 = vmul.f32 %v783, %v820
        %v852 = vmul.f32 %v784, %v830
        %v853 = vmul.f32 %v785, %v840
        %v854 = vmul.f32 %v786, %v850
        %v856 = vperm.slane %v757, 0
        %v858 = vmul.f32 %v851, %v856
        %v859 = vmul.f32 %v852, %v856
        %v860 = vmul.f32 %v853, %v856
        %v861 = vmul.f32 %v854, %v856
        %v863 = vperm.slane %v758, 0
        %v865 = vadd.f32 %v858, %v863
        %v866 = vadd.f32 %v859, %v863
        %v867 = vadd.f32 %v860, %v863
        %v868 = vadd.f32 %v861, %v863
        %v869 = vpack.c.bf16 %v866, %v865
        %v870 = vpack.c.bf16 %v868, %v867
        %v871 = vld [vmem:[%s3] sm:$0xf]
        %v872 = vld [vmem:[%s3 + $0x4] sm:$0xf]
        %v873 = vld [vmem:[%s3 + $0x8] sm:$0xf]
        %v874 = vld [vmem:[%s3 + $0xc] sm:$0xf]
        %v875 = vld [vmem:[%s3 + $0x10] sm:$0xf]
        %v876 = vld [vmem:[%s3 + $0x14] sm:$0xf]
        %v877 = vld [vmem:[%s3 + $0x18] sm:$0xf]
        %v878 = vld [vmem:[%s3 + $0x1c] sm:$0xf]
        %v879 = vld [vmem:[%s4] sm:$0x1]
        %v881 = vperm.slane %v879, 0
        %v891 = vunpack.c.l.b16 %v871
        %v892 = vunpack.c.l.b16 %v872
        %v893 = vunpack.c.l.b16 %v873
        %v894 = vunpack.c.l.b16 %v874
        %v895 = vunpack.c.l.b16 %v875
        %v896 = vunpack.c.l.b16 %v876
        %v897 = vunpack.c.l.b16 %v877
        %v898 = vunpack.c.l.b16 %v878
        %v899 = vpack.c.b16 %v892, %v891
        %v900 = vpack.c.b16 %v894, %v893
        %v901 = vpack.c.b16 %v896, %v895
        %v902 = vpack.c.b16 %v898, %v897
        %v908 = vsel %vm759, %v869, 0
        %v911 = vsel %vm759, %v870, 0
        %913 = vmatpush.bf16.msra.mxu0 0
        %914 = vmatpush.bf16.msra.mxu0 0
        %915 = vmatpush.bf16.msra.mxu0 0
        %916 = vmatpush.bf16.msra.mxu0 0
        %917 = vmatpush.bf16.msra.mxu0 %v902
        %918 = vmatpush.bf16.msra.mxu0 %v901
        %919 = vmatpush.bf16.msra.mxu0 %v900
        %920 = vmatpush.bf16.msra.mxu0 %v899
        %921 = vmatmul.bf16.gmra.mxu0 %v908
        %v922 = vpop.f32.mrf.mxu0
        %v923 = vadd.f32 %v881, %v922
        %v924 = vpop.f32.mrf.mxu0
        %v925 = vadd.f32 %v881, %v924
        %926 = vmatmul.bf16.gmra.mxu0 %v911
        %v927 = vpop.f32.mrf.mxu0
        %v928 = vadd.f32 %v881, %v927
        %v929 = vpop.f32.mrf.mxu0
        %v930 = vadd.f32 %v881, %v929
        %931 = vdwg.mxu0
        %v932 = vld [vmem:[%s5] sm:$0x1]
        %v933 = vld [vmem:[%s6] sm:$0x1]
        %vm934 = vcmask 261120
        %v935 = vsel %vm934, %v923, 0.0
        %936 = vadd.xlane.f32.xlu0 %v935
        %v937 = vpop.xlane.xlu0 %936
        %v938 = vsel %vm934, %v925, 0.0
        %939 = vadd.xlane.f32.xlu0 %v938
        %v940 = vpop.xlane.xlu0 %939
        %v941 = vsel %vm934, %v928, 0.0
        %942 = vadd.xlane.f32.xlu0 %v941
        %v943 = vpop.xlane.xlu0 %942
        %v944 = vsel %vm934, %v930, 0.0
        %945 = vadd.xlane.f32.xlu0 %v944
        %v946 = vpop.xlane.xlu0 %945
        %v947 = vrcp.pop 32.0
        %v948 = vmul.f32 32.0, %v947
        %v949 = vsub.f32 1.0, %v948
        %v950 = vmul.f32 %v947, %v949
        %v951 = vadd.f32 %v947, %v950
        %vm952 = vweird.f32 %v947
        %v953 = vsel %vm952, %v947, %v951
        %v954 = vmul.f32 %v937, %v953
        %v955 = vmul.f32 %v940, %v953
        %v956 = vmul.f32 %v943, %v953
        %v957 = vmul.f32 %v946, %v953
        %v958 = vsub.f32 %v923, %v954
        %v959 = vsub.f32 %v925, %v955
        %v960 = vsub.f32 %v928, %v956
        %v961 = vsub.f32 %v930, %v957
        %v962 = vmul.f32 %v958, %v958
        %v963 = vmul.f32 %v959, %v959
        %v964 = vmul.f32 %v960, %v960
        %v965 = vmul.f32 %v961, %v961
        %v966 = vsel %vm934, %v962, 0.0
        %967 = vadd.xlane.f32.xlu0 %v966
        %v968 = vpop.xlane.xlu0 %967
        %v969 = vsel %vm934, %v963, 0.0
        %970 = vadd.xlane.f32.xlu0 %v969
        %v971 = vpop.xlane.xlu0 %970
        %v972 = vsel %vm934, %v964, 0.0
        %973 = vadd.xlane.f32.xlu0 %v972
        %v974 = vpop.xlane.xlu0 %973
        %v975 = vsel %vm934, %v965, 0.0
        %976 = vadd.xlane.f32.xlu0 %v975
        %v977 = vpop.xlane.xlu0 %976
        %v978 = vmul.f32 %v968, %v953
        %v979 = vmul.f32 %v971, %v953
        %v980 = vmul.f32 %v974, %v953
        %v981 = vmul.f32 %v977, %v953
        %v982 = vadd.f32 %v978, 1e-05
        %v983 = vadd.f32 %v979, 1e-05
        %v984 = vadd.f32 %v980, 1e-05
        %v985 = vadd.f32 %v981, 1e-05
        %v986 = vrsqrt.pop %v982
        %v987 = vmul.f32 %v986, %v982
        %v988 = vmul.f32 %v987, %v986
        %v989 = vmul.f32 0.5, %v988
        %v990 = vsub.f32 1.5, %v989
        %v991 = vmul.f32 %v986, %v990
        %vm992 = vweird.f32 %v982
        %vm993 = vweird.f32 %v986
        %vm994 = vmor %vm992, %vm993
        %v995 = vsel %vm994, %v986, %v991
        %v996 = vrsqrt.pop %v983
        %v997 = vmul.f32 %v996, %v983
        %v998 = vmul.f32 %v997, %v996
        %v999 = vmul.f32 0.5, %v998
        %v1000 = vsub.f32 1.5, %v999
        %v1001 = vmul.f32 %v996, %v1000
        %vm1002 = vweird.f32 %v983
        %vm1003 = vweird.f32 %v996
        %vm1004 = vmor %vm1002, %vm1003
        %v1005 = vsel %vm1004, %v996, %v1001
        %v1006 = vrsqrt.pop %v984
        %v1007 = vmul.f32 %v1006, %v984
        %v1008 = vmul.f32 %v1007, %v1006
        %v1009 = vmul.f32 0.5, %v1008
        %v1010 = vsub.f32 1.5, %v1009
        %v1011 = vmul.f32 %v1006, %v1010
        %vm1012 = vweird.f32 %v984
        %vm1013 = vweird.f32 %v1006
        %vm1014 = vmor %vm1012, %vm1013
        %v1015 = vsel %vm1014, %v1006, %v1011
        %v1016 = vrsqrt.pop %v985
        %v1017 = vmul.f32 %v1016, %v985
        %v1018 = vmul.f32 %v1017, %v1016
        %v1019 = vmul.f32 0.5, %v1018
        %v1020 = vsub.f32 1.5, %v1019
        %v1021 = vmul.f32 %v1016, %v1020
        %vm1022 = vweird.f32 %v985
        %vm1023 = vweird.f32 %v1016
        %vm1024 = vmor %vm1022, %vm1023
        %v1025 = vsel %vm1024, %v1016, %v1021
        %v1026 = vmul.f32 %v958, %v995
        %v1027 = vmul.f32 %v959, %v1005
        %v1028 = vmul.f32 %v960, %v1015
        %v1029 = vmul.f32 %v961, %v1025
        %v1031 = vperm.slane %v932, 0
        %v1033 = vmul.f32 %v1026, %v1031
        %v1034 = vmul.f32 %v1027, %v1031
        %v1035 = vmul.f32 %v1028, %v1031
        %v1036 = vmul.f32 %v1029, %v1031
        %v1038 = vperm.slane %v933, 0
        %v1040 = vadd.f32 %v1033, %v1038
        %v1041 = vadd.f32 %v1034, %v1038
        %v1042 = vadd.f32 %v1035, %v1038
        %v1043 = vadd.f32 %v1036, %v1038
        %v1044 = vld [vmem:[%s7] sm:$0xff]
        %v1045 = vld [vmem:[%s7 + $0x8] sm:$0xff]
        %v1046 = vadd.f32 %v1040, %v1044
        %v1047 = vadd.f32 %v1041, %v1045
        %v1048 = vadd.f32 %v1042, %v1044
        %v1049 = vadd.f32 %v1043, %v1045
        %1050 = vst.msk [vmem:[#allocation2] sm:$0xff] %vm934, %v1046
        %1051 = vst.msk [vmem:[#allocation2 + $0x8] sm:$0xff] %vm934, %v1047
        %1052 = vst.msk [vmem:[#allocation2 + $0x10] sm:$0xff] %vm934, %v1048
        %1053 = vst.msk [vmem:[#allocation2 + $0x18] sm:$0xff] %vm934, %v1049
      $region100: #{vit_forward.1} parent=95 // pred_fallthru
        _
      %v1054 = vld [vmem:[#allocation2] sm:$0xff]
      %v1055 = vld [vmem:[#allocation2 + $0x8] sm:$0xff]
      %v1056 = vld [vmem:[#allocation2 + $0x10] sm:$0xff]
      %v1057 = vld [vmem:[#allocation2 + $0x18] sm:$0xff]
      %v1058 = vld [vmem:[%s714] sm:$0x3f]
      %vm1059 = vcmask 261120
      %v1060 = vsel %vm1059, %v1054, 0.0
      %1061 = vadd.xlane.f32.xlu0 %v1060
      %v1062 = vpop.xlane.xlu0 %1061
      %v1063 = vsel %vm1059, %v1055, 0.0
      %1064 = vadd.xlane.f32.xlu0 %v1063
      %v1065 = vpop.xlane.xlu0 %1064
      %v1066 = vsel %vm1059, %v1056, 0.0
      %1067 = vadd.xlane.f32.xlu0 %v1066
      %v1068 = vpop.xlane.xlu0 %1067
      %v1069 = vsel %vm1059, %v1057, 0.0
      %1070 = vadd.xlane.f32.xlu0 %v1069
      %v1071 = vpop.xlane.xlu0 %1070
      %v1072 = vrcp.pop 32.0
      %v1073 = vmul.f32 32.0, %v1072
      %v1074 = vsub.f32 1.0, %v1073
      %v1075 = vmul.f32 %v1072, %v1074
      %v1076 = vadd.f32 %v1072, %v1075
      %vm1077 = vweird.f32 %v1072
      %v1078 = vsel %vm1077, %v1072, %v1076
      %v1079 = vmul.f32 %v1062, %v1078
      %v1080 = vmul.f32 %v1065, %v1078
      %v1081 = vmul.f32 %v1068, %v1078
      %v1082 = vmul.f32 %v1071, %v1078
      %v1083 = vsub.f32 %v1054, %v1079
      %v1084 = vsub.f32 %v1055, %v1080
      %v1085 = vsub.f32 %v1056, %v1081
      %v1086 = vsub.f32 %v1057, %v1082
      %v1087 = vmul.f32 %v1083, %v1083
      %v1088 = vmul.f32 %v1084, %v1084
      %v1089 = vmul.f32 %v1085, %v1085
      %v1090 = vmul.f32 %v1086, %v1086
      %v1091 = vsel %vm1059, %v1087, 0.0
      %1092 = vadd.xlane.f32.xlu0 %v1091
      %v1093 = vpop.xlane.xlu0 %1092
      %v1094 = vsel %vm1059, %v1088, 0.0
      %1095 = vadd.xlane.f32.xlu0 %v1094
      %v1096 = vpop.xlane.xlu0 %1095
      %v1097 = vsel %vm1059, %v1089, 0.0
      %1098 = vadd.xlane.f32.xlu0 %v1097
      %v1099 = vpop.xlane.xlu0 %1098
      %v1100 = vsel %vm1059, %v1090, 0.0
      %1101 = vadd.xlane.f32.xlu0 %v1100
      %v1102 = vpop.xlane.xlu0 %1101
      %v1103 = vmul.f32 %v1093, %v1078
      %v1104 = vmul.f32 %v1096, %v1078
      %v1105 = vmul.f32 %v1099, %v1078
      %v1106 = vmul.f32 %v1102, %v1078
      %v1107 = vadd.f32 %v1103, 1e-05
      %v1108 = vadd.f32 %v1104, 1e-05
      %v1109 = vadd.f32 %v1105, 1e-05
      %v1110 = vadd.f32 %v1106, 1e-05
      %v1111 = vrsqrt.pop %v1107
      %v1112 = vmul.f32 %v1111, %v1107
      %v1113 = vmul.f32 %v1112, %v1111
      %v1114 = vmul.f32 0.5, %v1113
      %v1115 = vsub.f32 1.5, %v1114
      %v1116 = vmul.f32 %v1111, %v1115
      %vm1117 = vweird.f32 %v1107
      %vm1118 = vweird.f32 %v1111
      %vm1119 = vmor %vm1117, %vm1118
      %v1120 = vsel %vm1119, %v1111, %v1116
      %v1121 = vrsqrt.pop %v1108
      %v1122 = vmul.f32 %v1121, %v1108
      %v1123 = vmul.f32 %v1122, %v1121
      %v1124 = vmul.f32 0.5, %v1123
      %v1125 = vsub.f32 1.5, %v1124
      %v1126 = vmul.f32 %v1121, %v1125
      %vm1127 = vweird.f32 %v1108
      %vm1128 = vweird.f32 %v1121
      %vm1129 = vmor %vm1127, %vm1128
      %v1130 = vsel %vm1129, %v1121, %v1126
      %v1131 = vrsqrt.pop %v1109
      %v1132 = vmul.f32 %v1131, %v1109
      %v1133 = vmul.f32 %v1132, %v1131
      %v1134 = vmul.f32 0.5, %v1133
      %v1135 = vsub.f32 1.5, %v1134
      %v1136 = vmul.f32 %v1131, %v1135
      %vm1137 = vweird.f32 %v1109
      %vm1138 = vweird.f32 %v1131
      %vm1139 = vmor %vm1137, %vm1138
      %v1140 = vsel %vm1139, %v1131, %v1136
      %v1141 = vrsqrt.pop %v1110
      %v1142 = vmul.f32 %v1141, %v1110
      %v1143 = vmul.f32 %v1142, %v1141
      %v1144 = vmul.f32 0.5, %v1143
      %v1145 = vsub.f32 1.5, %v1144
      %v1146 = vmul.f32 %v1141, %v1145
      %vm1147 = vweird.f32 %v1110
      %vm1148 = vweird.f32 %v1141
      %vm1149 = vmor %vm1147, %vm1148
      %v1150 = vsel %vm1149, %v1141, %v1146
      %v1151 = vmul.f32 %v1083, %v1120
      %v1152 = vmul.f32 %v1084, %v1130
      %v1153 = vmul.f32 %v1085, %v1140
      %v1154 = vmul.f32 %v1086, %v1150
      %v1155 = vperm.slane %v1058, 0
      %v1156 = vmul.f32 %v1151, %v1155
      %v1157 = vmul.f32 %v1152, %v1155
      %v1158 = vmul.f32 %v1153, %v1155
      %v1159 = vmul.f32 %v1154, %v1155
      %v1160 = vperm.slane %v1058, 1
      %v1161 = vadd.f32 %v1156, %v1160
      %v1162 = vadd.f32 %v1157, %v1160
      %v1163 = vadd.f32 %v1158, %v1160
      %v1164 = vadd.f32 %v1159, %v1160
      %v1165 = vpack.c.bf16 %v1162, %v1161
      %v1166 = vpack.c.bf16 %v1164, %v1163
      %v1167 = vld [vmem:[%s719] sm:$0xf]
      %v1168 = vld [vmem:[%s719 + $0x4] sm:$0xf]
      %v1169 = vld [vmem:[%s719 + $0x8] sm:$0xf]
      %v1170 = vld [vmem:[%s719 + $0xc] sm:$0xf]
      %v1171 = vld [vmem:[%s722] sm:$0x1]
      %v1173 = vperm.slane %v1171, 0
      %v1179 = vunpack.c.l.b16 %v1167
      %v1180 = vunpack.c.l.b16 %v1168
      %v1181 = vunpack.c.l.b16 %v1169
      %v1182 = vunpack.c.l.b16 %v1170
      %v1183 = vpack.c.b16 %v1180, %v1179
      %v1184 = vpack.c.b16 %v1182, %v1181
      %v1188 = vsel %vm1059, %v1165, 0
      %v1191 = vsel %vm1059, %v1166, 0
      %1193 = vmatpush.bf16.msra.mxu0 0
      %1194 = vmatpush.bf16.msra.mxu0 0
      %1195 = vmatpush.bf16.msra.mxu0 0
      %1196 = vmatpush.bf16.msra.mxu0 0
      %1197 = vmatpush.bf16.msra.mxu0 0
      %1198 = vmatpush.bf16.msra.mxu0 0
      %1199 = vmatpush.bf16.msra.mxu0 %v1184
      %1200 = vmatpush.bf16.msra.mxu0 %v1183
      %1201 = vmatmul.bf16.gmra.mxu0 %v1188
      %v1202 = vpop.f32.mrf.mxu0
      %v1203 = vadd.f32 %v1173, %v1202
      %v1204 = vpop.f32.mrf.mxu0
      %v1205 = vadd.f32 %v1173, %v1204
      %1206 = vmatmul.bf16.gmra.mxu0 %v1191
      %v1207 = vpop.f32.mrf.mxu0
      %v1208 = vadd.f32 %v1173, %v1207
      %v1209 = vpop.f32.mrf.mxu0
      %v1210 = vadd.f32 %v1173, %v1209
      %1211 = vdwg.mxu0
      %v1212 = vpack.c.bf16 %v1203, %v1203
      %v1213 = vpack.c.bf16 %v1205, %v1205
      %v1214 = vpack.c.bf16 %v1208, %v1208
      %v1215 = vpack.c.bf16 %v1210, %v1210
      %v1218 = vunpack.c.l.b16 %v1212
      %v1219 = vunpack.c.l.b16 %v1213
      %v1220 = vpack.c.b16 %v1219, %v1218
      %1221 = vrot.lane.b32.xlu0 %v1220, 96
      %v1222 = vpop.permute.xlu0 %1221
      %vm1223 = vcmask 64512
      %v1225 = vsel %vm1223, %v1220, 0
      %v1228 = vsel %vm1223, %v1222, 0
      %1230 = vmatpush.bf16.xpose.msra.mxu0 0
      %1231 = vmatpush.bf16.xpose.msra.mxu0 0
      %1232 = vmatpush.bf16.xpose.msra.mxu0 0
      %1233 = vmatpush.bf16.xpose.msra.mxu0 0
      %1234 = vmatpush.bf16.xpose.msra.mxu0 0
      %1235 = vmatpush.bf16.xpose.msra.mxu0 0
      %1236 = vmatpush.bf16.xpose.msra.mxu0 0
      %1237 = vmatpush.bf16.xpose.msra.mxu0 %v1228
      %1238 = vmatmul.bf16.gmra.mxu0 %v1225
      %v1239 = vpop.f32.mrf.mxu0
      %v1240 = vadd.f32 0.0, %v1239
      %v1241 = vpop.f32.mrf.mxu0
      %v1242 = vadd.f32 0.0, %v1241
      %1243 = vdwg.mxu0
      %v1246 = vunpack.c.l.b16 %v1214
      %v1247 = vunpack.c.l.b16 %v1215
      %v1248 = vpack.c.b16 %v1247, %v1246
      %1249 = vrot.lane.b32.xlu0 %v1248, 96
      %v1250 = vpop.permute.xlu0 %1249
      %v1252 = vsel %vm1223, %v1248, 0
      %v1255 = vsel %vm1223, %v1250, 0
      %1257 = vmatpush.bf16.xpose.msra.mxu0 0
      %1258 = vmatpush.bf16.xpose.msra.mxu0 0
      %1259 = vmatpush.bf16.xpose.msra.mxu0 0
      %1260 = vmatpush.bf16.xpose.msra.mxu0 0
      %1261 = vmatpush.bf16.xpose.msra.mxu0 0
      %1262 = vmatpush.bf16.xpose.msra.mxu0 0
      %1263 = vmatpush.bf16.xpose.msra.mxu0 0
      %1264 = vmatpush.bf16.xpose.msra.mxu0 %v1255
      %1265 = vmatmul.bf16.gmra.mxu0 %v1252
      %v1266 = vpop.f32.mrf.mxu0
      %v1267 = vadd.f32 0.0, %v1266
      %v1268 = vpop.f32.mrf.mxu0
      %v1269 = vadd.f32 0.0, %v1268
      %1270 = vdwg.mxu0
      %vm1271 = vcmask 130048
      %v1272 = vsel %vm1271, %v1240, -inf
      %1273 = vmax.xlane.f32.xlu0 %v1272
      %v1274 = vpop.xlane.xlu0 %1273
      %v1275 = vsel %vm1271, %v1242, -inf
      %1276 = vmax.xlane.f32.xlu0 %v1275
      %v1277 = vpop.xlane.xlu0 %1276
      %v1278 = vsel %vm1271, %v1267, -inf
      %1279 = vmax.xlane.f32.xlu0 %v1278
      %v1280 = vpop.xlane.xlu0 %1279
      %v1281 = vsel %vm1271, %v1269, -inf
      %1282 = vmax.xlane.f32.xlu0 %v1281
      %v1283 = vpop.xlane.xlu0 %1282
      %v1284 = vsub.f32 %v1240, %v1274
      %v1285 = vsub.f32 %v1242, %v1277
      %v1286 = vsub.f32 %v1267, %v1280
      %v1287 = vsub.f32 %v1269, %v1283
      %v1288 = vmul.f32 %v1284, 1.442695
      %v1289 = vpow.pop %v1288
      %v1290 = vmul.f32 %v1285, 1.442695
      %v1291 = vpow.pop %v1290
      %v1292 = vmul.f32 %v1286, 1.442695
      %v1293 = vpow.pop %v1292
      %v1294 = vmul.f32 %v1287, 1.442695
      %v1295 = vpow.pop %v1294
      %v1296 = vsel %vm1271, %v1289, 0.0
      %1297 = vadd.xlane.f32.xlu0 %v1296
      %v1298 = vpop.xlane.xlu0 %1297
      %v1299 = vsel %vm1271, %v1291, 0.0
      %1300 = vadd.xlane.f32.xlu0 %v1299
      %v1301 = vpop.xlane.xlu0 %1300
      %v1302 = vsel %vm1271, %v1293, 0.0
      %1303 = vadd.xlane.f32.xlu0 %v1302
      %v1304 = vpop.xlane.xlu0 %1303
      %v1305 = vsel %vm1271, %v1295, 0.0
      %1306 = vadd.xlane.f32.xlu0 %v1305
      %v1307 = vpop.xlane.xlu0 %1306
      %v1308 = vpack.c.bf16 %v1289, %v1289
      %v1309 = vpack.c.bf16 %v1291, %v1291
      %v1310 = vpack.c.bf16 %v1293, %v1293
      %v1311 = vpack.c.bf16 %v1295, %v1295
      %v1314 = vunpack.c.l.b16 %v1308
      %v1315 = vunpack.c.l.b16 %v1309
      %v1316 = vpack.c.b16 %v1315, %v1314
      %1317 = vrot.lane.b32.xlu0 %v1220, 64
      %v1318 = vpop.permute.xlu0 %1317
      %v1321 = vsel %vm1271, %v1316, 0
      %1323 = vmatpush.bf16.msra.mxu0 0
      %1324 = vmatpush.bf16.msra.mxu0 0
      %1325 = vmatpush.bf16.msra.mxu0 0
      %1326 = vmatpush.bf16.msra.mxu0 0
      %1327 = vmatpush.bf16.msra.mxu0 0
      %1328 = vmatpush.bf16.msra.mxu0 0
      %1329 = vmatpush.bf16.msra.mxu0 0
      %1330 = vmatpush.bf16.msra.mxu0 %v1318
      %1331 = vmatmul.bf16.gmra.mxu0 %v1321
      %v1332 = vpop.f32.mrf.mxu0
      %v1333 = vadd.f32 0.0, %v1332
      %v1334 = vpop.f32.mrf.mxu0
      %v1335 = vadd.f32 0.0, %v1334
      %1336 = vdwg.mxu0
      %v1339 = vunpack.c.l.b16 %v1310
      %v1340 = vunpack.c.l.b16 %v1311
      %v1341 = vpack.c.b16 %v1340, %v1339
      %1342 = vrot.lane.b32.xlu0 %v1248, 64
      %v1343 = vpop.permute.xlu0 %1342
      %v1346 = vsel %vm1271, %v1341, 0
      %1348 = vmatpush.bf16.msra.mxu0 0
      %1349 = vmatpush.bf16.msra.mxu0 0
      %1350 = vmatpush.bf16.msra.mxu0 0
      %1351 = vmatpush.bf16.msra.mxu0 0
      %1352 = vmatpush.bf16.msra.mxu0 0
      %1353 = vmatpush.bf16.msra.mxu0 0
      %1354 = vmatpush.bf16.msra.mxu0 0
      %1355 = vmatpush.bf16.msra.mxu0 %v1343
      %1356 = vmatmul.bf16.gmra.mxu0 %v1346
      %v1357 = vpop.f32.mrf.mxu0
      %v1358 = vadd.f32 0.0, %v1357
      %v1359 = vpop.f32.mrf.mxu0
      %v1360 = vadd.f32 0.0, %v1359
      %1361 = vdwg.mxu0
      %v1362 = vrcp.pop %v1298
      %v1363 = vrcp.pop %v1301
      %v1364 = vrcp.pop %v1304
      %v1365 = vrcp.pop %v1307
      %v1366 = vmul.f32 %v1333, %v1362
      %v1367 = vmul.f32 %v1335, %v1363
      %v1368 = vmul.f32 %v1358, %v1364
      %v1369 = vmul.f32 %v1360, %v1365
      %1370 = vrot.lane.b32.xlu0 %v1220, 120
      %v1371 = vpop.permute.xlu0 %1370
      %1372 = vrot.lane.b32.xlu0 %v1220, 88
      %v1373 = vpop.permute.xlu0 %1372
      %v1375 = vsel %vm1223, %v1371, 0
      %v1378 = vsel %vm1223, %v1373, 0
      %1380 = vmatpush.bf16.xpose.msra.mxu0 0
      %1381 = vmatpush.bf16.xpose.msra.mxu0 0
      %1382 = vmatpush.bf16.xpose.msra.mxu0 0
      %1383 = vmatpush.bf16.xpose.msra.mxu0 0
      %1384 = vmatpush.bf16.xpose.msra.mxu0 0
      %1385 = vmatpush.bf16.xpose.msra.mxu0 0
      %1386 = vmatpush.bf16.xpose.msra.mxu0 0
      %1387 = vmatpush.bf16.xpose.msra.mxu0 %v1378
      %1388 = vmatmul.bf16.gmra.mxu0 %v1375
      %v1389 = vpop.f32.mrf.mxu0
      %v1390 = vadd.f32 0.0, %v1389
      %v1391 = vpop.f32.mrf.mxu0
      %v1392 = vadd.f32 0.0, %v1391
      %1393 = vdwg.mxu0
      %1394 = vrot.lane.b32.xlu0 %v1248, 120
      %v1395 = vpop.permute.xlu0 %1394
      %1396 = vrot.lane.b32.xlu0 %v1248, 88
      %v1397 = vpop.permute.xlu0 %1396
      %v1399 = vsel %vm1223, %v1395, 0
      %v1402 = vsel %vm1223, %v1397, 0
      %1404 = vmatpush.bf16.xpose.msra.mxu0 0
      %1405 = vmatpush.bf16.xpose.msra.mxu0 0
      %1406 = vmatpush.bf16.xpose.msra.mxu0 0
      %1407 = vmatpush.bf16.xpose.msra.mxu0 0
      %1408 = vmatpush.bf16.xpose.msra.mxu0 0
      %1409 = vmatpush.bf16.xpose.msra.mxu0 0
      %1410 = vmatpush.bf16.xpose.msra.mxu0 0
      %1411 = vmatpush.bf16.xpose.msra.mxu0 %v1402
      %1412 = vmatmul.bf16.gmra.mxu0 %v1399
      %v1413 = vpop.f32.mrf.mxu0
      %v1414 = vadd.f32 0.0, %v1413
      %v1415 = vpop.f32.mrf.mxu0
      %v1416 = vadd.f32 0.0, %v1415
      %1417 = vdwg.mxu0
      %v1418 = vsel %vm1271, %v1390, -inf
      %1419 = vmax.xlane.f32.xlu0 %v1418
      %v1420 = vpop.xlane.xlu0 %1419
      %v1421 = vsel %vm1271, %v1392, -inf
      %1422 = vmax.xlane.f32.xlu0 %v1421
      %v1423 = vpop.xlane.xlu0 %1422
      %v1424 = vsel %vm1271, %v1414, -inf
      %1425 = vmax.xlane.f32.xlu0 %v1424
      %v1426 = vpop.xlane.xlu0 %1425
      %v1427 = vsel %vm1271, %v1416, -inf
      %1428 = vmax.xlane.f32.xlu0 %v1427
      %v1429 = vpop.xlane.xlu0 %1428
      %v1430 = vsub.f32 %v1390, %v1420
      %v1431 = vsub.f32 %v1392, %v1423
      %v1432 = vsub.f32 %v1414, %v1426
      %v1433 = vsub.f32 %v1416, %v1429
      %v1434 = vmul.f32 %v1430, 1.442695
      %v1435 = vpow.pop %v1434
      %v1436 = vmul.f32 %v1431, 1.442695
      %v1437 = vpow.pop %v1436
      %v1438 = vmul.f32 %v1432, 1.442695
      %v1439 = vpow.pop %v1438
      %v1440 = vmul.f32 %v1433, 1.442695
      %v1441 = vpow.pop %v1440
      %v1442 = vsel %vm1271, %v1435, 0.0
      %1443 = vadd.xlane.f32.xlu0 %v1442
      %v1444 = vpop.xlane.xlu0 %1443
      %v1445 = vsel %vm1271, %v1437, 0.0
      %1446 = vadd.xlane.f32.xlu0 %v1445
      %v1447 = vpop.xlane.xlu0 %1446
      %v1448 = vsel %vm1271, %v1439, 0.0
      %1449 = vadd.xlane.f32.xlu0 %v1448
      %v1450 = vpop.xlane.xlu0 %1449
      %v1451 = vsel %vm1271, %v1441, 0.0
      %1452 = vadd.xlane.f32.xlu0 %v1451
      %v1453 = vpop.xlane.xlu0 %1452
      %v1454 = vpack.c.bf16 %v1435, %v1435
      %v1455 = vpack.c.bf16 %v1437, %v1437
      %v1456 = vpack.c.bf16 %v1439, %v1439
      %v1457 = vpack.c.bf16 %v1441, %v1441
      %v1460 = vunpack.c.l.b16 %v1454
      %v1461 = vunpack.c.l.b16 %v1455
      %v1462 = vpack.c.b16 %v1461, %v1460
      %1463 = vrot.lane.b32.xlu0 %v1220, 56
      %v1464 = vpop.permute.xlu0 %1463
      %v1467 = vsel %vm1271, %v1462, 0
      %1469 = vmatpush.bf16.msra.mxu0 0
      %1470 = vmatpush.bf16.msra.mxu0 0
      %1471 = vmatpush.bf16.msra.mxu0 0
      %1472 = vmatpush.bf16.msra.mxu0 0
      %1473 = vmatpush.bf16.msra.mxu0 0
      %1474 = vmatpush.bf16.msra.mxu0 0
      %1475 = vmatpush.bf16.msra.mxu0 0
      %1476 = vmatpush.bf16.msra.mxu0 %v1464
      %1477 = vmatmul.bf16.gmra.mxu0 %v1467
      %v1478 = vpop.f32.mrf.mxu0
      %v1479 = vadd.f32 0.0, %v1478
      %v1480 = vpop.f32.mrf.mxu0
      %v1481 = vadd.f32 0.0, %v1480
      %1482 = vdwg.mxu0
      %v1485 = vunpack.c.l.b16 %v1456
      %v1486 = vunpack.c.l.b16 %v1457
      %v1487 = vpack.c.b16 %v1486, %v1485
      %1488 = vrot.lane.b32.xlu0 %v1248, 56
      %v1489 = vpop.permute.xlu0 %1488
      %v1492 = vsel %vm1271, %v1487, 0
      %1494 = vmatpush.bf16.msra.mxu0 0
      %1495 = vmatpush.bf16.msra.mxu0 0
      %1496 = vmatpush.bf16.msra.mxu0 0
      %1497 = vmatpush.bf16.msra.mxu0 0
      %1498 = vmatpush.bf16.msra.mxu0 0
      %1499 = vmatpush.bf16.msra.mxu0 0
      %1500 = vmatpush.bf16.msra.mxu0 0
      %1501 = vmatpush.bf16.msra.mxu0 %v1489
      %1502 = vmatmul.bf16.gmra.mxu0 %v1492
      %v1503 = vpop.f32.mrf.mxu0
      %v1504 = vadd.f32 0.0, %v1503
      %v1505 = vpop.f32.mrf.mxu0
      %v1506 = vadd.f32 0.0, %v1505
      %1507 = vdwg.mxu0
      %v1508 = vrcp.pop %v1444
      %v1509 = vrcp.pop %v1447
      %v1510 = vrcp.pop %v1450
      %v1511 = vrcp.pop %v1453
      %v1512 = vmul.f32 %v1479, %v1508
      %v1513 = vmul.f32 %v1481, %v1509
      %v1514 = vmul.f32 %v1504, %v1510
      %v1515 = vmul.f32 %v1506, %v1511
      %1516 = vrot.lane.b32.xlu0 %v1220, 112
      %v1517 = vpop.permute.xlu0 %1516
      %1518 = vrot.lane.b32.xlu0 %v1220, 80
      %v1519 = vpop.permute.xlu0 %1518
      %v1521 = vsel %vm1223, %v1517, 0
      %v1524 = vsel %vm1223, %v1519, 0
      %1526 = vmatpush.bf16.xpose.msra.mxu0 0
      %1527 = vmatpush.bf16.xpose.msra.mxu0 0
      %1528 = vmatpush.bf16.xpose.msra.mxu0 0
      %1529 = vmatpush.bf16.xpose.msra.mxu0 0
      %1530 = vmatpush.bf16.xpose.msra.mxu0 0
      %1531 = vmatpush.bf16.xpose.msra.mxu0 0
      %1532 = vmatpush.bf16.xpose.msra.mxu0 0
      %1533 = vmatpush.bf16.xpose.msra.mxu0 %v1524
      %1534 = vmatmul.bf16.gmra.mxu0 %v1521
      %v1535 = vpop.f32.mrf.mxu0
      %v1536 = vadd.f32 0.0, %v1535
      %v1537 = vpop.f32.mrf.mxu0
      %v1538 = vadd.f32 0.0, %v1537
      %1539 = vdwg.mxu0
      %1540 = vrot.lane.b32.xlu0 %v1248, 112
      %v1541 = vpop.permute.xlu0 %1540
      %1542 = vrot.lane.b32.xlu0 %v1248, 80
      %v1543 = vpop.permute.xlu0 %1542
      %v1545 = vsel %vm1223, %v1541, 0
      %v1548 = vsel %vm1223, %v1543, 0
      %1550 = vmatpush.bf16.xpose.msra.mxu0 0
      %1551 = vmatpush.bf16.xpose.msra.mxu0 0
      %1552 = vmatpush.bf16.xpose.msra.mxu0 0
      %1553 = vmatpush.bf16.xpose.msra.mxu0 0
      %1554 = vmatpush.bf16.xpose.msra.mxu0 0
      %1555 = vmatpush.bf16.xpose.msra.mxu0 0
      %1556 = vmatpush.bf16.xpose.msra.mxu0 0
      %1557 = vmatpush.bf16.xpose.msra.mxu0 %v1548
      %1558 = vmatmul.bf16.gmra.mxu0 %v1545
      %v1559 = vpop.f32.mrf.mxu0
      %v1560 = vadd.f32 0.0, %v1559
      %v1561 = vpop.f32.mrf.mxu0
      %v1562 = vadd.f32 0.0, %v1561
      %1563 = vdwg.mxu0
      %v1564 = vsel %vm1271, %v1536, -inf
      %1565 = vmax.xlane.f32.xlu0 %v1564
      %v1566 = vpop.xlane.xlu0 %1565
      %v1567 = vsel %vm1271, %v1538, -inf
      %1568 = vmax.xlane.f32.xlu0 %v1567
      %v1569 = vpop.xlane.xlu0 %1568
      %v1570 = vsel %vm1271, %v1560, -inf
      %1571 = vmax.xlane.f32.xlu0 %v1570
      %v1572 = vpop.xlane.xlu0 %1571
      %v1573 = vsel %vm1271, %v1562, -inf
      %1574 = vmax.xlane.f32.xlu0 %v1573
      %v1575 = vpop.xlane.xlu0 %1574
      %v1576 = vsub.f32 %v1536, %v1566
      %v1577 = vsub.f32 %v1538, %v1569
      %v1578 = vsub.f32 %v1560, %v1572
      %v1579 = vsub.f32 %v1562, %v1575
      %v1580 = vmul.f32 %v1576, 1.442695
      %v1581 = vpow.pop %v1580
      %v1582 = vmul.f32 %v1577, 1.442695
      %v1583 = vpow.pop %v1582
      %v1584 = vmul.f32 %v1578, 1.442695
      %v1585 = vpow.pop %v1584
      %v1586 = vmul.f32 %v1579, 1.442695
      %v1587 = vpow.pop %v1586
      %v1588 = vsel %vm1271, %v1581, 0.0
      %1589 = vadd.xlane.f32.xlu0 %v1588
      %v1590 = vpop.xlane.xlu0 %1589
      %v1591 = vsel %vm1271, %v1583, 0.0
      %1592 = vadd.xlane.f32.xlu0 %v1591
      %v1593 = vpop.xlane.xlu0 %1592
      %v1594 = vsel %vm1271, %v1585, 0.0
      %1595 = vadd.xlane.f32.xlu0 %v1594
      %v1596 = vpop.xlane.xlu0 %1595
      %v1597 = vsel %vm1271, %v1587, 0.0
      %1598 = vadd.xlane.f32.xlu0 %v1597
      %v1599 = vpop.xlane.xlu0 %1598
      %v1600 = vpack.c.bf16 %v1581, %v1581
      %v1601 = vpack.c.bf16 %v1583, %v1583
      %v1602 = vpack.c.bf16 %v1585, %v1585
      %v1603 = vpack.c.bf16 %v1587, %v1587
      %v1606 = vunpack.c.l.b16 %v1600
      %v1607 = vunpack.c.l.b16 %v1601
      %v1608 = vpack.c.b16 %v1607, %v1606
      %1609 = vrot.lane.b32.xlu0 %v1220, 48
      %v1610 = vpop.permute.xlu0 %1609
      %v1613 = vsel %vm1271, %v1608, 0
      %1615 = vmatpush.bf16.msra.mxu0 0
      %1616 = vmatpush.bf16.msra.mxu0 0
      %1617 = vmatpush.bf16.msra.mxu0 0
      %1618 = vmatpush.bf16.msra.mxu0 0
      %1619 = vmatpush.bf16.msra.mxu0 0
      %1620 = vmatpush.bf16.msra.mxu0 0
      %1621 = vmatpush.bf16.msra.mxu0 0
      %1622 = vmatpush.bf16.msra.mxu0 %v1610
      %1623 = vmatmul.bf16.gmra.mxu0 %v1613
      %v1624 = vpop.f32.mrf.mxu0
      %v1625 = vadd.f32 0.0, %v1624
      %v1626 = vpop.f32.mrf.mxu0
      %v1627 = vadd.f32 0.0, %v1626
      %1628 = vdwg.mxu0
      %v1631 = vunpack.c.l.b16 %v1602
      %v1632 = vunpack.c.l.b16 %v1603
      %v1633 = vpack.c.b16 %v1632, %v1631
      %1634 = vrot.lane.b32.xlu0 %v1248, 48
      %v1635 = vpop.permute.xlu0 %1634
      %v1638 = vsel %vm1271, %v1633, 0
      %1640 = vmatpush.bf16.msra.mxu0 0
      %1641 = vmatpush.bf16.msra.mxu0 0
      %1642 = vmatpush.bf16.msra.mxu0 0
      %1643 = vmatpush.bf16.msra.mxu0 0
      %1644 = vmatpush.bf16.msra.mxu0 0
      %1645 = vmatpush.bf16.msra.mxu0 0
      %1646 = vmatpush.bf16.msra.mxu0 0
      %1647 = vmatpush.bf16.msra.mxu0 %v1635
      %1648 = vmatmul.bf16.gmra.mxu0 %v1638
      %v1649 = vpop.f32.mrf.mxu0
      %v1650 = vadd.f32 0.0, %v1649
      %v1651 = vpop.f32.mrf.mxu0
      %v1652 = vadd.f32 0.0, %v1651
      %1653 = vdwg.mxu0
      %v1654 = vrcp.pop %v1590
      %v1655 = vrcp.pop %v1593
      %v1656 = vrcp.pop %v1596
      %v1657 = vrcp.pop %v1599
      %v1658 = vmul.f32 %v1625, %v1654
      %v1659 = vmul.f32 %v1627, %v1655
      %v1660 = vmul.f32 %v1650, %v1656
      %v1661 = vmul.f32 %v1652, %v1657
      %1662 = vrot.lane.b32.xlu0 %v1220, 104
      %v1663 = vpop.permute.xlu0 %1662
      %1664 = vrot.lane.b32.xlu0 %v1220, 72
      %v1665 = vpop.permute.xlu0 %1664
      %v1667 = vsel %vm1223, %v1663, 0
      %v1670 = vsel %vm1223, %v1665, 0
      %1672 = vmatpush.bf16.xpose.msra.mxu0 0
      %1673 = vmatpush.bf16.xpose.msra.mxu0 0
      %1674 = vmatpush.bf16.xpose.msra.mxu0 0
      %1675 = vmatpush.bf16.xpose.msra.mxu0 0
      %1676 = vmatpush.bf16.xpose.msra.mxu0 0
      %1677 = vmatpush.bf16.xpose.msra.mxu0 0
      %1678 = vmatpush.bf16.xpose.msra.mxu0 0
      %1679 = vmatpush.bf16.xpose.msra.mxu0 %v1670
      %1680 = vmatmul.bf16.gmra.mxu0 %v1667
      %v1681 = vpop.f32.mrf.mxu0
      %v1682 = vadd.f32 0.0, %v1681
      %v1683 = vpop.f32.mrf.mxu0
      %v1684 = vadd.f32 0.0, %v1683
      %1685 = vdwg.mxu0
      %1686 = vrot.lane.b32.xlu0 %v1248, 104
      %v1687 = vpop.permute.xlu0 %1686
      %1688 = vrot.lane.b32.xlu0 %v1248, 72
      %v1689 = vpop.permute.xlu0 %1688
      %v1691 = vsel %vm1223, %v1687, 0
      %v1694 = vsel %vm1223, %v1689, 0
      %1696 = vmatpush.bf16.xpose.msra.mxu0 0
      %1697 = vmatpush.bf16.xpose.msra.mxu0 0
      %1698 = vmatpush.bf16.xpose.msra.mxu0 0
      %1699 = vmatpush.bf16.xpose.msra.mxu0 0
      %1700 = vmatpush.bf16.xpose.msra.mxu0 0
      %1701 = vmatpush.bf16.xpose.msra.mxu0 0
      %1702 = vmatpush.bf16.xpose.msra.mxu0 0
      %1703 = vmatpush.bf16.xpose.msra.mxu0 %v1694
      %1704 = vmatmul.bf16.gmra.mxu0 %v1691
      %v1705 = vpop.f32.mrf.mxu0
      %v1706 = vadd.f32 0.0, %v1705
      %v1707 = vpop.f32.mrf.mxu0
      %v1708 = vadd.f32 0.0, %v1707
      %1709 = vdwg.mxu0
      %v1710 = vsel %vm1271, %v1682, -inf
      %1711 = vmax.xlane.f32.xlu0 %v1710
      %v1712 = vpop.xlane.xlu0 %1711
      %v1713 = vsel %vm1271, %v1684, -inf
      %1714 = vmax.xlane.f32.xlu0 %v1713
      %v1715 = vpop.xlane.xlu0 %1714
      %v1716 = vsel %vm1271, %v1706, -inf
      %1717 = vmax.xlane.f32.xlu0 %v1716
      %v1718 = vpop.xlane.xlu0 %1717
      %v1719 = vsel %vm1271, %v1708, -inf
      %1720 = vmax.xlane.f32.xlu0 %v1719
      %v1721 = vpop.xlane.xlu0 %1720
      %v1722 = vsub.f32 %v1682, %v1712
      %v1723 = vsub.f32 %v1684, %v1715
      %v1724 = vsub.f32 %v1706, %v1718
      %v1725 = vsub.f32 %v1708, %v1721
      %v1726 = vmul.f32 %v1722, 1.442695
      %v1727 = vpow.pop %v1726
      %v1728 = vmul.f32 %v1723, 1.442695
      %v1729 = vpow.pop %v1728
      %v1730 = vmul.f32 %v1724, 1.442695
      %v1731 = vpow.pop %v1730
      %v1732 = vmul.f32 %v1725, 1.442695
      %v1733 = vpow.pop %v1732
      %v1734 = vsel %vm1271, %v1727, 0.0
      %1735 = vadd.xlane.f32.xlu0 %v1734
      %v1736 = vpop.xlane.xlu0 %1735
      %v1737 = vsel %vm1271, %v1729, 0.0
      %1738 = vadd.xlane.f32.xlu0 %v1737
      %v1739 = vpop.xlane.xlu0 %1738
      %v1740 = vsel %vm1271, %v1731, 0.0
      %1741 = vadd.xlane.f32.xlu0 %v1740
      %v1742 = vpop.xlane.xlu0 %1741
      %v1743 = vsel %vm1271, %v1733, 0.0
      %1744 = vadd.xlane.f32.xlu0 %v1743
      %v1745 = vpop.xlane.xlu0 %1744
      %v1746 = vpack.c.bf16 %v1727, %v1727
      %v1747 = vpack.c.bf16 %v1729, %v1729
      %v1748 = vpack.c.bf16 %v1731, %v1731
      %v1749 = vpack.c.bf16 %v1733, %v1733
      %v1752 = vunpack.c.l.b16 %v1746
      %v1753 = vunpack.c.l.b16 %v1747
      %v1754 = vpack.c.b16 %v1753, %v1752
      %1755 = vrot.lane.b32.xlu0 %v1220, 40
      %v1756 = vpop.permute.xlu0 %1755
      %v1759 = vsel %vm1271, %v1754, 0
      %1761 = vmatpush.bf16.msra.mxu0 0
      %1762 = vmatpush.bf16.msra.mxu0 0
      %1763 = vmatpush.bf16.msra.mxu0 0
      %1764 = vmatpush.bf16.msra.mxu0 0
      %1765 = vmatpush.bf16.msra.mxu0 0
      %1766 = vmatpush.bf16.msra.mxu0 0
      %1767 = vmatpush.bf16.msra.mxu0 0
      %1768 = vmatpush.bf16.msra.mxu0 %v1756
      %1769 = vmatmul.bf16.gmra.mxu0 %v1759
      %v1770 = vpop.f32.mrf.mxu0
      %v1771 = vadd.f32 0.0, %v1770
      %v1772 = vpop.f32.mrf.mxu0
      %v1773 = vadd.f32 0.0, %v1772
      %1774 = vdwg.mxu0
      %v1777 = vunpack.c.l.b16 %v1748
      %v1778 = vunpack.c.l.b16 %v1749
      %v1779 = vpack.c.b16 %v1778, %v1777
      %1780 = vrot.lane.b32.xlu0 %v1248, 40
      %v1781 = vpop.permute.xlu0 %1780
      %v1784 = vsel %vm1271, %v1779, 0
      %1786 = vmatpush.bf16.msra.mxu0 0
      %1787 = vmatpush.bf16.msra.mxu0 0
      %1788 = vmatpush.bf16.msra.mxu0 0
      %1789 = vmatpush.bf16.msra.mxu0 0
      %1790 = vmatpush.bf16.msra.mxu0 0
      %1791 = vmatpush.bf16.msra.mxu0 0
      %1792 = vmatpush.bf16.msra.mxu0 0
      %1793 = vmatpush.bf16.msra.mxu0 %v1781
      %1794 = vmatmul.bf16.gmra.mxu0 %v1784
      %v1795 = vpop.f32.mrf.mxu0
      %v1796 = vadd.f32 0.0, %v1795
      %v1797 = vpop.f32.mrf.mxu0
      %v1798 = vadd.f32 0.0, %v1797
      %1799 = vdwg.mxu0
      %v1800 = vrcp.pop %v1736
      %v1801 = vrcp.pop %v1739
      %v1802 = vrcp.pop %v1742
      %v1803 = vrcp.pop %v1745
      %v1804 = vmul.f32 %v1771, %v1800
      %v1805 = vmul.f32 %v1773, %v1801
      %v1806 = vmul.f32 %v1796, %v1802
      %v1807 = vmul.f32 %v1798, %v1803
      %1812 = vrot.lane.b32.xlu0 %v1512, 8
      %v1813 = vpop.permute.xlu0 %1812
      %1814 = vrot.lane.b32.xlu0 %v1513, 8
      %v1815 = vpop.permute.xlu0 %1814
      %1816 = vrot.lane.b32.xlu0 %v1514, 8
      %v1817 = vpop.permute.xlu0 %1816
      %1818 = vrot.lane.b32.xlu0 %v1515, 8
      %v1819 = vpop.permute.xlu0 %1818
      %1828 = vrot.lane.b32.xlu0 %v1658, 16
      %v1829 = vpop.permute.xlu0 %1828
      %1830 = vrot.lane.b32.xlu0 %v1659, 16
      %v1831 = vpop.permute.xlu0 %1830
      %1832 = vrot.lane.b32.xlu0 %v1660, 16
      %v1833 = vpop.permute.xlu0 %1832
      %1834 = vrot.lane.b32.xlu0 %v1661, 16
      %v1835 = vpop.permute.xlu0 %1834
      %1844 = vrot.lane.b32.xlu0 %v1804, 24
      %v1845 = vpop.permute.xlu0 %1844
      %1846 = vrot.lane.b32.xlu0 %v1805, 24
      %v1847 = vpop.permute.xlu0 %1846
      %1848 = vrot.lane.b32.xlu0 %v1806, 24
      %v1849 = vpop.permute.xlu0 %1848
      %1850 = vrot.lane.b32.xlu0 %v1807, 24
      %v1851 = vpop.permute.xlu0 %1850
      %v1856 = vsel %vm1223, %v1366, %v1813
      %v1857 = vsel %vm1223, %v1367, %v1815
      %v1858 = vsel %vm1223, %v1368, %v1817
      %v1859 = vsel %vm1223, %v1369, %v1819
      %v1860 = vsel %vm1271, %v1856, %v1829
      %v1861 = vsel %vm1271, %v1857, %v1831
      %v1862 = vsel %vm1271, %v1858, %v1833
      %v1863 = vsel %vm1271, %v1859, %v1835
      %vm1864 = vcmask 195584
      %v1865 = vsel %vm1864, %v1860, %v1845
      %v1866 = vsel %vm1864, %v1861, %v1847
      %v1867 = vsel %vm1864, %v1862, %v1849
      %v1868 = vsel %vm1864, %v1863, %v1851
      %v1869 = vpack.c.bf16 %v1866, %v1865
      %v1870 = vpack.c.bf16 %v1868, %v1867
      %v1871 = vld [vmem:[%s727] sm:$0xf]
      %v1872 = vld [vmem:[%s727 + $0x4] sm:$0xf]
      %v1873 = vld [vmem:[%s727 + $0x8] sm:$0xf]
      %v1874 = vld [vmem:[%s727 + $0xc] sm:$0xf]
      %v1875 = vperm.slane %v1058, 2
      %v1880 = vunpack.c.l.b16 %v1871
      %v1881 = vunpack.c.l.b16 %v1872
      %v1882 = vunpack.c.l.b16 %v1873
      %v1883 = vunpack.c.l.b16 %v1874
      %v1884 = vpack.c.b16 %v1881, %v1880
      %v1885 = vpack.c.b16 %v1883, %v1882
      %v1889 = vsel %vm1059, %v1869, 0
      %v1892 = vsel %vm1059, %v1870, 0
      %1894 = vmatpush.bf16.msra.mxu0 0
      %1895 = vmatpush.bf16.msra.mxu0 0
      %1896 = vmatpush.bf16.msra.mxu0 0
      %1897 = vmatpush.bf16.msra.mxu0 0
      %1898 = vmatpush.bf16.msra.mxu0 0
      %1899 = vmatpush.bf16.msra.mxu0 0
      %1900 = vmatpush.bf16.msra.mxu0 %v1885
      %1901 = vmatpush.bf16.msra.mxu0 %v1884
      %1902 = vmatmul.bf16.gmra.mxu0 %v1889
      %v1903 = vpop.f32.mrf.mxu0
      %v1904 = vadd.f32 %v1875, %v1903
      %v1905 = vpop.f32.mrf.mxu0
      %v1906 = vadd.f32 %v1875, %v1905
      %1907 = vmatmul.bf16.gmra.mxu0 %v1892
      %v1908 = vpop.f32.mrf.mxu0
      %v1909 = vadd.f32 %v1875, %v1908
      %v1910 = vpop.f32.mrf.mxu0
      %v1911 = vadd.f32 %v1875, %v1910
      %1912 = vdwg.mxu0
      %v1913 = vadd.f32 %v1054, %v1904
      %v1914 = vadd.f32 %v1055, %v1906
      %v1915 = vadd.f32 %v1056, %v1909
      %v1916 = vadd.f32 %v1057, %v1911
      %v1917 = vsel %vm1059, %v1913, 0.0
      %1918 = vadd.xlane.f32.xlu0 %v1917
      %v1919 = vpop.xlane.xlu0 %1918
      %v1920 = vsel %vm1059, %v1914, 0.0
      %1921 = vadd.xlane.f32.xlu0 %v1920
      %v1922 = vpop.xlane.xlu0 %1921
      %v1923 = vsel %vm1059, %v1915, 0.0
      %1924 = vadd.xlane.f32.xlu0 %v1923
      %v1925 = vpop.xlane.xlu0 %1924
      %v1926 = vsel %vm1059, %v1916, 0.0
      %1927 = vadd.xlane.f32.xlu0 %v1926
      %v1928 = vpop.xlane.xlu0 %1927
      %v1929 = vmul.f32 %v1919, %v1078
      %v1930 = vmul.f32 %v1922, %v1078
      %v1931 = vmul.f32 %v1925, %v1078
      %v1932 = vmul.f32 %v1928, %v1078
      %v1933 = vsub.f32 %v1913, %v1929
      %v1934 = vsub.f32 %v1914, %v1930
      %v1935 = vsub.f32 %v1915, %v1931
      %v1936 = vsub.f32 %v1916, %v1932
      %v1937 = vmul.f32 %v1933, %v1933
      %v1938 = vmul.f32 %v1934, %v1934
      %v1939 = vmul.f32 %v1935, %v1935
      %v1940 = vmul.f32 %v1936, %v1936
      %v1941 = vsel %vm1059, %v1937, 0.0
      %1942 = vadd.xlane.f32.xlu0 %v1941
      %v1943 = vpop.xlane.xlu0 %1942
      %v1944 = vsel %vm1059, %v1938, 0.0
      %1945 = vadd.xlane.f32.xlu0 %v1944
      %v1946 = vpop.xlane.xlu0 %1945
      %v1947 = vsel %vm1059, %v1939, 0.0
      %1948 = vadd.xlane.f32.xlu0 %v1947
      %v1949 = vpop.xlane.xlu0 %1948
      %v1950 = vsel %vm1059, %v1940, 0.0
      %1951 = vadd.xlane.f32.xlu0 %v1950
      %v1952 = vpop.xlane.xlu0 %1951
      %v1953 = vmul.f32 %v1943, %v1078
      %v1954 = vmul.f32 %v1946, %v1078
      %v1955 = vmul.f32 %v1949, %v1078
      %v1956 = vmul.f32 %v1952, %v1078
      %v1957 = vadd.f32 %v1953, 1e-05
      %v1958 = vadd.f32 %v1954, 1e-05
      %v1959 = vadd.f32 %v1955, 1e-05
      %v1960 = vadd.f32 %v1956, 1e-05
      %v1961 = vrsqrt.pop %v1957
      %v1962 = vmul.f32 %v1961, %v1957
      %v1963 = vmul.f32 %v1962, %v1961
      %v1964 = vmul.f32 0.5, %v1963
      %v1965 = vsub.f32 1.5, %v1964
      %v1966 = vmul.f32 %v1961, %v1965
      %vm1967 = vweird.f32 %v1957
      %vm1968 = vweird.f32 %v1961
      %vm1969 = vmor %vm1967, %vm1968
      %v1970 = vsel %vm1969, %v1961, %v1966
      %v1971 = vrsqrt.pop %v1958
      %v1972 = vmul.f32 %v1971, %v1958
      %v1973 = vmul.f32 %v1972, %v1971
      %v1974 = vmul.f32 0.5, %v1973
      %v1975 = vsub.f32 1.5, %v1974
      %v1976 = vmul.f32 %v1971, %v1975
      %vm1977 = vweird.f32 %v1958
      %vm1978 = vweird.f32 %v1971
      %vm1979 = vmor %vm1977, %vm1978
      %v1980 = vsel %vm1979, %v1971, %v1976
      %v1981 = vrsqrt.pop %v1959
      %v1982 = vmul.f32 %v1981, %v1959
      %v1983 = vmul.f32 %v1982, %v1981
      %v1984 = vmul.f32 0.5, %v1983
      %v1985 = vsub.f32 1.5, %v1984
      %v1986 = vmul.f32 %v1981, %v1985
      %vm1987 = vweird.f32 %v1959
      %vm1988 = vweird.f32 %v1981
      %vm1989 = vmor %vm1987, %vm1988
      %v1990 = vsel %vm1989, %v1981, %v1986
      %v1991 = vrsqrt.pop %v1960
      %v1992 = vmul.f32 %v1991, %v1960
      %v1993 = vmul.f32 %v1992, %v1991
      %v1994 = vmul.f32 0.5, %v1993
      %v1995 = vsub.f32 1.5, %v1994
      %v1996 = vmul.f32 %v1991, %v1995
      %vm1997 = vweird.f32 %v1960
      %vm1998 = vweird.f32 %v1991
      %vm1999 = vmor %vm1997, %vm1998
      %v2000 = vsel %vm1999, %v1991, %v1996
      %v2001 = vmul.f32 %v1933, %v1970
      %v2002 = vmul.f32 %v1934, %v1980
      %v2003 = vmul.f32 %v1935, %v1990
      %v2004 = vmul.f32 %v1936, %v2000
      %v2005 = vperm.slane %v1058, 3
      %v2006 = vmul.f32 %v2001, %v2005
      %v2007 = vmul.f32 %v2002, %v2005
      %v2008 = vmul.f32 %v2003, %v2005
      %v2009 = vmul.f32 %v2004, %v2005
      %v2010 = vperm.slane %v1058, 4
      %v2011 = vadd.f32 %v2006, %v2010
      %v2012 = vadd.f32 %v2007, %v2010
      %v2013 = vadd.f32 %v2008, %v2010
      %v2014 = vadd.f32 %v2009, %v2010
      %v2015 = vpack.c.bf16 %v2012, %v2011
      %v2016 = vpack.c.bf16 %v2014, %v2013
      %v2017 = vld [vmem:[%s732] sm:$0xf]
      %v2018 = vld [vmem:[%s732 + $0x4] sm:$0xf]
      %v2019 = vld [vmem:[%s732 + $0x8] sm:$0xf]
      %v2020 = vld [vmem:[%s732 + $0xc] sm:$0xf]
      %v2021 = vld [vmem:[%s735] sm:$0x1]
      %v2023 = vperm.slane %v2021, 0
      %v2029 = vunpack.c.l.b16 %v2017
      %v2030 = vunpack.c.l.b16 %v2018
      %v2031 = vunpack.c.l.b16 %v2019
      %v2032 = vunpack.c.l.b16 %v2020
      %v2033 = vpack.c.b16 %v2030, %v2029
      %v2034 = vpack.c.b16 %v2032, %v2031
      %v2038 = vsel %vm1059, %v2015, 0
      %v2041 = vsel %vm1059, %v2016, 0
      %2043 = vmatpush.bf16.msra.mxu0 0
      %2044 = vmatpush.bf16.msra.mxu0 0
      %2045 = vmatpush.bf16.msra.mxu0 0
      %2046 = vmatpush.bf16.msra.mxu0 0
      %2047 = vmatpush.bf16.msra.mxu0 0
      %2048 = vmatpush.bf16.msra.mxu0 0
      %2049 = vmatpush.bf16.msra.mxu0 %v2034
      %2050 = vmatpush.bf16.msra.mxu0 %v2033
      %2051 = vmatmul.bf16.gmra.mxu0 %v2038
      %v2052 = vpop.f32.mrf.mxu0
      %v2053 = vadd.f32 %v2023, %v2052
      %v2054 = vpop.f32.mrf.mxu0
      %v2055 = vadd.f32 %v2023, %v2054
      %2056 = vmatmul.bf16.gmra.mxu0 %v2041
      %v2057 = vpop.f32.mrf.mxu0
      %v2058 = vadd.f32 %v2023, %v2057
      %v2059 = vpop.f32.mrf.mxu0
      %v2060 = vadd.f32 %v2023, %v2059
      %2061 = vdwg.mxu0
      %v2062 = vmul.f32 %v2053, 0.5
      %v2063 = vmul.f32 %v2055, 0.5
      %v2064 = vmul.f32 %v2058, 0.5
      %v2065 = vmul.f32 %v2060, 0.5
      %v2066 = vmul.f32 %v2053, 0.70710677
      %v2067 = vmul.f32 %v2055, 0.70710677
      %v2068 = vmul.f32 %v2058, 0.70710677
      %v2069 = vmul.f32 %v2060, 0.70710677
      %vm2070 = vcmp.ge.f32.partialorder %v2066, 0.0
      %vm2071 = vcmp.ge.f32.partialorder %v2067, 0.0
      %vm2072 = vcmp.ge.f32.partialorder %v2068, 0.0
      %vm2073 = vcmp.ge.f32.partialorder %v2069, 0.0
      %v2074 = vsel %vm2070, 1.0, -1.0
      %v2075 = vsel %vm2071, 1.0, -1.0
      %v2076 = vsel %vm2072, 1.0, -1.0
      %v2077 = vsel %vm2073, 1.0, -1.0
      %v2078 = vand.u32 2147483647, %v2066
      %v2079 = vand.u32 2147483647, %v2067
      %v2080 = vand.u32 2147483647, %v2068
      %v2081 = vand.u32 2147483647, %v2069
      %v2082 = vmul.f32 %v2078, 0.3275911
      %v2083 = vmul.f32 %v2079, 0.3275911
      %v2084 = vmul.f32 %v2080, 0.3275911
      %v2085 = vmul.f32 %v2081, 0.3275911
      %v2086 = vadd.f32 %v2082, 1.0
      %v2087 = vadd.f32 %v2083, 1.0
      %v2088 = vadd.f32 %v2084, 1.0
      %v2089 = vadd.f32 %v2085, 1.0
      %v2090 = vrcp.pop %v2086
      %v2091 = vmul.f32 %v2086, %v2090
      %v2092 = vsub.f32 1.0, %v2091
      %v2093 = vmul.f32 %v2090, %v2092
      %v2094 = vadd.f32 %v2090, %v2093
      %vm2095 = vweird.f32 %v2086
      %vm2096 = vweird.f32 %v2090
      %vm2097 = vmor %vm2095, %vm2096
      %v2098 = vsel %vm2097, %v2090, %v2094
      %v2099 = vand.u32 2147483647, %v2086
      %vm2100 = vcmp.eq.f32.partialorder %v2099, 8.507059e+37
      %v2101 = vand.u32 %v2086, 2147483648
      %v2102 = vor.u32 1.1754944e-38, %v2101
      %v2103 = vsel %vm2100, %v2102, %v2098
      %v2104 = vmul.f32 1.0, %v2103
      %v2105 = vrcp.pop %v2087
      %v2106 = vmul.f32 %v2087, %v2105
      %v2107 = vsub.f32 1.0, %v2106
      %v2108 = vmul.f32 %v2105, %v2107
      %v2109 = vadd.f32 %v2105, %v2108
      %vm2110 = vweird.f32 %v2087
      %vm2111 = vweird.f32 %v2105
      %vm2112 = vmor %vm2110, %vm2111
      %v2113 = vsel %vm2112, %v2105, %v2109
      %v2114 = vand.u32 2147483647, %v2087
      %vm2115 = vcmp.eq.f32.partialorder %v2114, 8.507059e+37
      %v2116 = vand.u32 %v2087, 2147483648
      %v2117 = vor.u32 1.1754944e-38, %v2116
      %v2118 = vsel %vm2115, %v2117, %v2113
      %v2119 = vmul.f32 1.0, %v2118
      %v2120 = vrcp.pop %v2088
      %v2121 = vmul.f32 %v2088, %v2120
      %v2122 = vsub.f32 1.0, %v2121
      %v2123 = vmul.f32 %v2120, %v2122
      %v2124 = vadd.f32 %v2120, %v2123
      %vm2125 = vweird.f32 %v2088
      %vm2126 = vweird.f32 %v2120
      %vm2127 = vmor %vm2125, %vm2126
      %v2128 = vsel %vm2127, %v2120, %v2124
      %v2129 = vand.u32 2147483647, %v2088
      %vm2130 = vcmp.eq.f32.partialorder %v2129, 8.507059e+37
      %v2131 = vand.u32 %v2088, 2147483648
      %v2132 = vor.u32 1.1754944e-38, %v2131
      %v2133 = vsel %vm2130, %v2132, %v2128
      %v2134 = vmul.f32 1.0, %v2133
      %v2135 = vrcp.pop %v2089
      %v2136 = vmul.f32 %v2089, %v2135
      %v2137 = vsub.f32 1.0, %v2136
      %v2138 = vmul.f32 %v2135, %v2137
      %v2139 = vadd.f32 %v2135, %v2138
      %vm2140 = vweird.f32 %v2089
      %vm2141 = vweird.f32 %v2135
      %vm2142 = vmor %vm2140, %vm2141
      %v2143 = vsel %vm2142, %v2135, %v2139
      %v2144 = vand.u32 2147483647, %v2089
      %vm2145 = vcmp.eq.f32.partialorder %v2144, 8.507059e+37
      %v2146 = vand.u32 %v2089, 2147483648
      %v2147 = vor.u32 1.1754944e-38, %v2146
      %v2148 = vsel %vm2145, %v2147, %v2143
      %v2149 = vmul.f32 1.0, %v2148
      %v2150 = vmul.f32 %v2104, 1.0614054
      %v2151 = vmul.f32 %v2119, 1.0614054
      %v2152 = vmul.f32 %v2134, 1.0614054
      %v2153 = vmul.f32 %v2149, 1.0614054
      %v2154 = vadd.f32 %v2150, -1.4531521
      %v2155 = vadd.f32 %v2151, -1.4531521
      %v2156 = vadd.f32 %v2152, -1.4531521
      %v2157 = vadd.f32 %v2153, -1.4531521
      %v2158 = vmul.f32 %v2104, %v2154
      %v2159 = vmul.f32 %v2119, %v2155
      %v2160 = vmul.f32 %v2134, %v2156
      %v2161 = vmul.f32 %v2149, %v2157
      %v2162 = vadd.f32 %v2158, 1.4214138
      %v2163 = vadd.f32 %v2159, 1.4214138
      %v2164 = vadd.f32 %v2160, 1.4214138
      %v2165 = vadd.f32 %v2161, 1.4214138
      %v2166 = vmul.f32 %v2104, %v2162
      %v2167 = vmul.f32 %v2119, %v2163
      %v2168 = vmul.f32 %v2134, %v2164
      %v2169 = vmul.f32 %v2149, %v2165
      %v2170 = vadd.f32 %v2166, -0.28449672
      %v2171 = vadd.f32 %v2167, -0.28449672
      %v2172 = vadd.f32 %v2168, -0.28449672
      %v2173 = vadd.f32 %v2169, -0.28449672
      %v2174 = vmul.f32 %v2104, %v2170
      %v2175 = vmul.f32 %v2119, %v2171
      %v2176 = vmul.f32 %v2134, %v2172
      %v2177 = vmul.f32 %v2149, %v2173
      %v2178 = vadd.f32 %v2174, 0.2548296
      %v2179 = vadd.f32 %v2175, 0.2548296
      %v2180 = vadd.f32 %v2176, 0.2548296
      %v2181 = vadd.f32 %v2177, 0.2548296
      %v2182 = vmul.f32 %v2104, %v2178
      %v2183 = vmul.f32 %v2119, %v2179
      %v2184 = vmul.f32 %v2134, %v2180
      %v2185 = vmul.f32 %v2149, %v2181
      %v2186 = vsub.f32 0.0, %v2078
      %v2187 = vsub.f32 0.0, %v2079
      %v2188 = vsub.f32 0.0, %v2080
      %v2189 = vsub.f32 0.0, %v2081
      %v2190 = vmul.f32 %v2186, %v2078
      %v2191 = vmul.f32 %v2187, %v2079
      %v2192 = vmul.f32 %v2188, %v2080
      %v2193 = vmul.f32 %v2189, %v2081
      %v2194 = vmul.f32 %v2190, 1.442695
      %v2195 = vpow.pop %v2194
      %v2196 = vmul.f32 %v2191, 1.442695
      %v2197 = vpow.pop %v2196
      %v2198 = vmul.f32 %v2192, 1.442695
      %v2199 = vpow.pop %v2198
      %v2200 = vmul.f32 %v2193, 1.442695
      %v2201 = vpow.pop %v2200
      %v2202 = vmul.f32 %v2182, %v2195
      %v2203 = vmul.f32 %v2183, %v2197
      %v2204 = vmul.f32 %v2184, %v2199
      %v2205 = vmul.f32 %v2185, %v2201
      %v2206 = vsub.f32 1.0, %v2202
      %v2207 = vsub.f32 1.0, %v2203
      %v2208 = vsub.f32 1.0, %v2204
      %v2209 = vsub.f32 1.0, %v2205
      %v2210 = vmul.f32 %v2074, %v2206
      %v2211 = vmul.f32 %v2075, %v2207
      %v2212 = vmul.f32 %v2076, %v2208
      %v2213 = vmul.f32 %v2077, %v2209
      %v2214 = vadd.f32 %v2210, 1.0
      %v2215 = vadd.f32 %v2211, 1.0
      %v2216 = vadd.f32 %v2212, 1.0
      %v2217 = vadd.f32 %v2213, 1.0
      %v2218 = vmul.f32 %v2062, %v2214
      %v2219 = vmul.f32 %v2063, %v2215
      %v2220 = vmul.f32 %v2064, %v2216
      %v2221 = vmul.f32 %v2065, %v2217
      %v2222 = vpack.c.bf16 %v2219, %v2218
      %v2223 = vpack.c.bf16 %v2221, %v2220
      %v2224 = vld [vmem:[%s740] sm:$0xf]
      %v2225 = vld [vmem:[%s740 + $0x4] sm:$0xf]
      %v2226 = vld [vmem:[%s740 + $0x8] sm:$0xf]
      %v2227 = vld [vmem:[%s740 + $0xc] sm:$0xf]
      %v2228 = vld [vmem:[%s740 + $0x10] sm:$0xf]
      %v2229 = vld [vmem:[%s740 + $0x14] sm:$0xf]
      %v2230 = vld [vmem:[%s740 + $0x18] sm:$0xf]
      %v2231 = vld [vmem:[%s740 + $0x1c] sm:$0xf]
      %v2232 = vld [vmem:[%s740 + $0x20] sm:$0xf]
      %v2233 = vld [vmem:[%s740 + $0x24] sm:$0xf]
      %v2234 = vld [vmem:[%s740 + $0x28] sm:$0xf]
      %v2235 = vld [vmem:[%s740 + $0x2c] sm:$0xf]
      %v2236 = vld [vmem:[%s740 + $0x30] sm:$0xf]
      %v2237 = vld [vmem:[%s740 + $0x34] sm:$0xf]
      %v2238 = vld [vmem:[%s740 + $0x38] sm:$0xf]
      %v2239 = vld [vmem:[%s740 + $0x3c] sm:$0xf]
      %v2240 = vperm.slane %v1058, 5
      %v2257 = vunpack.c.l.b16 %v2224
      %v2258 = vunpack.c.l.b16 %v2225
      %v2259 = vunpack.c.l.b16 %v2226
      %v2260 = vunpack.c.l.b16 %v2227
      %v2261 = vunpack.c.l.b16 %v2228
      %v2262 = vunpack.c.l.b16 %v2229
      %v2263 = vunpack.c.l.b16 %v2230
      %v2264 = vunpack.c.l.b16 %v2231
      %v2265 = vunpack.c.l.b16 %v2232
      %v2266 = vunpack.c.l.b16 %v2233
      %v2267 = vunpack.c.l.b16 %v2234
      %v2268 = vunpack.c.l.b16 %v2235
      %v2269 = vunpack.c.l.b16 %v2236
      %v2270 = vunpack.c.l.b16 %v2237
      %v2271 = vunpack.c.l.b16 %v2238
      %v2272 = vunpack.c.l.b16 %v2239
      %v2273 = vpack.c.b16 %v2258, %v2257
      %v2274 = vpack.c.b16 %v2260, %v2259
      %v2275 = vpack.c.b16 %v2262, %v2261
      %v2276 = vpack.c.b16 %v2264, %v2263
      %v2277 = vpack.c.b16 %v2266, %v2265
      %v2278 = vpack.c.b16 %v2268, %v2267
      %v2279 = vpack.c.b16 %v2270, %v2269
      %v2280 = vpack.c.b16 %v2272, %v2271
      %2289 = vmatpush.bf16.msra.mxu0 %v2280
      %2290 = vmatpush.bf16.msra.mxu0 %v2279
      %2291 = vmatpush.bf16.msra.mxu0 %v2278
      %2292 = vmatpush.bf16.msra.mxu0 %v2277
      %2293 = vmatpush.bf16.msra.mxu0 %v2276
      %2294 = vmatpush.bf16.msra.mxu0 %v2275
      %2295 = vmatpush.bf16.msra.mxu0 %v2274
      %2296 = vmatpush.bf16.msra.mxu0 %v2273
      %2297 = vmatmul.bf16.gmra.mxu0 %v2222
      %v2298 = vpop.f32.mrf.mxu0
      %v2299 = vadd.f32 %v2240, %v2298
      %v2300 = vpop.f32.mrf.mxu0
      %v2301 = vadd.f32 %v2240, %v2300
      %2302 = vmatmul.bf16.gmra.mxu0 %v2223
      %v2303 = vpop.f32.mrf.mxu0
      %v2304 = vadd.f32 %v2240, %v2303
      %v2305 = vpop.f32.mrf.mxu0
      %v2306 = vadd.f32 %v2240, %v2305
      %2307 = vdwg.mxu0
      %v2308 = vadd.f32 %v1913, %v2299
      %v2309 = vadd.f32 %v1914, %v2301
      %v2310 = vadd.f32 %v1915, %v2304
      %v2311 = vadd.f32 %v1916, %v2306
      %2312 = vst.msk [vmem:[#allocation2] sm:$0xff] %vm1059, %v2308
      %2313 = vst.msk [vmem:[#allocation2 + $0x8] sm:$0xff] %vm1059, %v2309
      %2314 = vst.msk [vmem:[#allocation2 + $0x10] sm:$0xff] %vm1059, %v2310
      %2315 = vst.msk [vmem:[#allocation2 + $0x18] sm:$0xff] %vm1059, %v2311
      %p2316 = scmp.eq.s32.totalorder %s35, 1
      // Predicated region
      $region101: #{vit_forward.1} parent=95 // pred_check
        %p2317 = pneg %p2316
      $region102: #{vit_forward.1} parent=95 // pred_check_branch
        %2319 = sbr.rel (%p2317) target = $region104
      $region103: #{vit_forward.1} parent=95 // pred_region
        %v2320 = vld [vmem:[%s15] sm:$0x1]
        %v2321 = vld [vmem:[%s16] sm:$0x1]
        %v2322 = vsel %vm1059, %v2308, 0.0
        %2323 = vadd.xlane.f32.xlu0 %v2322
        %v2324 = vpop.xlane.xlu0 %2323
        %v2325 = vsel %vm1059, %v2309, 0.0
        %2326 = vadd.xlane.f32.xlu0 %v2325
        %v2327 = vpop.xlane.xlu0 %2326
        %v2328 = vsel %vm1059, %v2310, 0.0
        %2329 = vadd.xlane.f32.xlu0 %v2328
        %v2330 = vpop.xlane.xlu0 %2329
        %v2331 = vsel %vm1059, %v2311, 0.0
        %2332 = vadd.xlane.f32.xlu0 %v2331
        %v2333 = vpop.xlane.xlu0 %2332
        %v2334 = vmul.f32 %v2324, %v1078
        %v2335 = vmul.f32 %v2327, %v1078
        %v2336 = vmul.f32 %v2330, %v1078
        %v2337 = vmul.f32 %v2333, %v1078
        %v2338 = vsub.f32 %v2308, %v2334
        %v2339 = vsub.f32 %v2309, %v2335
        %v2340 = vsub.f32 %v2310, %v2336
        %v2341 = vsub.f32 %v2311, %v2337
        %v2342 = vmul.f32 %v2338, %v2338
        %v2343 = vmul.f32 %v2339, %v2339
        %v2344 = vmul.f32 %v2340, %v2340
        %v2345 = vmul.f32 %v2341, %v2341
        %v2346 = vsel %vm1059, %v2342, 0.0
        %2347 = vadd.xlane.f32.xlu0 %v2346
        %v2348 = vpop.xlane.xlu0 %2347
        %v2349 = vsel %vm1059, %v2343, 0.0
        %2350 = vadd.xlane.f32.xlu0 %v2349
        %v2351 = vpop.xlane.xlu0 %2350
        %v2352 = vsel %vm1059, %v2344, 0.0
        %2353 = vadd.xlane.f32.xlu0 %v2352
        %v2354 = vpop.xlane.xlu0 %2353
        %v2355 = vsel %vm1059, %v2345, 0.0
        %2356 = vadd.xlane.f32.xlu0 %v2355
        %v2357 = vpop.xlane.xlu0 %2356
        %v2358 = vmul.f32 %v2348, %v1078
        %v2359 = vmul.f32 %v2351, %v1078
        %v2360 = vmul.f32 %v2354, %v1078
        %v2361 = vmul.f32 %v2357, %v1078
        %v2362 = vadd.f32 %v2358, 1e-05
        %v2363 = vadd.f32 %v2359, 1e-05
        %v2364 = vadd.f32 %v2360, 1e-05
        %v2365 = vadd.f32 %v2361, 1e-05
        %v2366 = vrsqrt.pop %v2362
        %v2367 = vmul.f32 %v2366, %v2362
        %v2368 = vmul.f32 %v2367, %v2366
        %v2369 = vmul.f32 0.5, %v2368
        %v2370 = vsub.f32 1.5, %v2369
        %v2371 = vmul.f32 %v2366, %v2370
        %vm2372 = vweird.f32 %v2362
        %vm2373 = vweird.f32 %v2366
        %vm2374 = vmor %vm2372, %vm2373
        %v2375 = vsel %vm2374, %v2366, %v2371
        %v2376 = vrsqrt.pop %v2363
        %v2377 = vmul.f32 %v2376, %v2363
        %v2378 = vmul.f32 %v2377, %v2376
        %v2379 = vmul.f32 0.5, %v2378
        %v2380 = vsub.f32 1.5, %v2379
        %v2381 = vmul.f32 %v2376, %v2380
        %vm2382 = vweird.f32 %v2363
        %vm2383 = vweird.f32 %v2376
        %vm2384 = vmor %vm2382, %vm2383
        %v2385 = vsel %vm2384, %v2376, %v2381
        %v2386 = vrsqrt.pop %v2364
        %v2387 = vmul.f32 %v2386, %v2364
        %v2388 = vmul.f32 %v2387, %v2386
        %v2389 = vmul.f32 0.5, %v2388
        %v2390 = vsub.f32 1.5, %v2389
        %v2391 = vmul.f32 %v2386, %v2390
        %vm2392 = vweird.f32 %v2364
        %vm2393 = vweird.f32 %v2386
        %vm2394 = vmor %vm2392, %vm2393
        %v2395 = vsel %vm2394, %v2386, %v2391
        %v2396 = vrsqrt.pop %v2365
        %v2397 = vmul.f32 %v2396, %v2365
        %v2398 = vmul.f32 %v2397, %v2396
        %v2399 = vmul.f32 0.5, %v2398
        %v2400 = vsub.f32 1.5, %v2399
        %v2401 = vmul.f32 %v2396, %v2400
        %vm2402 = vweird.f32 %v2365
        %vm2403 = vweird.f32 %v2396
        %vm2404 = vmor %vm2402, %vm2403
        %v2405 = vsel %vm2404, %v2396, %v2401
        %v2406 = vmul.f32 %v2338, %v2375
        %v2407 = vmul.f32 %v2339, %v2385
        %v2408 = vmul.f32 %v2340, %v2395
        %v2409 = vmul.f32 %v2341, %v2405
        %v2411 = vperm.slane %v2320, 0
        %v2413 = vmul.f32 %v2406, %v2411
        %v2414 = vmul.f32 %v2407, %v2411
        %v2415 = vmul.f32 %v2408, %v2411
        %v2416 = vmul.f32 %v2409, %v2411
        %v2418 = vperm.slane %v2321, 0
        %v2420 = vadd.f32 %v2413, %v2418
        %v2421 = vadd.f32 %v2414, %v2418
        %v2422 = vadd.f32 %v2415, %v2418
        %v2423 = vadd.f32 %v2416, %v2418
        %v2424 = vpack.c.bf16 %v2421, %v2420
        %v2425 = vpack.c.bf16 %v2423, %v2422
        %v2426 = vld [vmem:[%s17] sm:$0xf]
        %v2427 = vld [vmem:[%s17 + $0x4] sm:$0xf]
        %v2428 = vld [vmem:[%s17 + $0x8] sm:$0xf]
        %v2429 = vld [vmem:[%s17 + $0xc] sm:$0xf]
        %v2430 = vld [vmem:[%s18] sm:$0x1]
        %v2432 = vperm.slane %v2430, 0
        %v2438 = vunpack.c.l.b16 %v2426
        %v2439 = vunpack.c.l.b16 %v2427
        %v2440 = vunpack.c.l.b16 %v2428
        %v2441 = vunpack.c.l.b16 %v2429
        %v2442 = vpack.c.b16 %v2439, %v2438
        %v2443 = vpack.c.b16 %v2441, %v2440
        %v2447 = vsel %vm1059, %v2424, 0
        %v2450 = vsel %vm1059, %v2425, 0
        %2452 = vmatpush.bf16.msra.mxu0 0
        %2453 = vmatpush.bf16.msra.mxu0 0
        %2454 = vmatpush.bf16.msra.mxu0 0
        %2455 = vmatpush.bf16.msra.mxu0 0
        %2456 = vmatpush.bf16.msra.mxu0 0
        %2457 = vmatpush.bf16.msra.mxu0 0
        %2458 = vmatpush.bf16.msra.mxu0 %v2443
        %2459 = vmatpush.bf16.msra.mxu0 %v2442
        %2460 = vmatmul.bf16.gmra.mxu0 %v2447
        %v2461 = vpop.f32.mrf.mxu0
        %v2462 = vadd.f32 %v2432, %v2461
        %v2463 = vpop.f32.mrf.mxu0
        %v2464 = vadd.f32 %v2432, %v2463
        %2465 = vmatmul.bf16.gmra.mxu0 %v2450
        %v2466 = vpop.f32.mrf.mxu0
        %v2467 = vadd.f32 %v2432, %v2466
        %v2468 = vpop.f32.mrf.mxu0
        %v2469 = vadd.f32 %v2432, %v2468
        %2470 = vdwg.mxu0
        %2471 = vst [vmem:[%s746] sm:$0xff] %v2462
        %2472 = vst [vmem:[%s746 + $0x8] sm:$0xff] %v2464
        %2473 = vst [vmem:[%s746 + $0x10] sm:$0xff] %v2467
        %2474 = vst [vmem:[%s746 + $0x18] sm:$0xff] %v2469
      $region104: #{vit_forward.1} parent=95 // pred_fallthru
        _
      %s2475 = smul.u32 2, %s34
      %p2476 = scmp.lt.s32.totalorder %s2475, 1
      %s2477 = scalar_select %p2476, %s2475, 1
      %s2478 = smul.addr %s2477, 2
      %s2479 = smul.addr %s2478, 8
      %s2480 = scalar_lea.vmem %s19, %s2479
      // Predicated region
      $region105: #{vit_forward.1} parent=95 // pred_check
        %p2481 = pneg %p499
      $region106: #{vit_forward.1} parent=95 // pred_check_branch
        %2483 = sbr.rel (%p2481) target = $region108
      $region107: #{vit_forward.1} parent=95 // pred_region
        %s2484 = smul.u32 2, %s34
      $region108: #{vit_forward.1} parent=95 // pred_fallthru
        _
      // Predicated region
      $region109: #{vit_forward.1} parent=95 // pred_check
        %p2485 = pneg %p499
      $region110: #{vit_forward.1} parent=95 // pred_check_branch
        %2487 = sbr.rel (%p2485) target = $region112
      $region111: #{vit_forward.1} parent=95 // pred_region
        %s2488 = smul.u32 2, %s34
        %p2489 = scmp.lt.s32.totalorder %s2488, 1
        %s2490 = scalar_select %p2489, %s2488, 1
        %s2491 = smul.addr %s2490, 2
        %s2492 = smul.addr %s2491, 8
        %s2493 = scalar_lea.vmem %s19, %s2492
      $region112: #{vit_forward.1} parent=95 // pred_fallthru
        _
    $region96: #{vit_forward.1} parent=5 // pred_fallthru
      _
    %p2494 = scmp.le.s32.totalorder 2, %s25
    // Predicated region
    $region113: #{vit_forward.1} parent=5 // pred_check
      %p2495 = pneg %p2494
    $region114: #{vit_forward.1} parent=5 // pred_check_branch
      %2497 = sbr.rel (%p2495) target = $region116
    $region115: #{vit_forward.1} parent=5 // pred_region
      %s2498 = ssub.s32 %s25, 2
    $region116: #{vit_forward.1} parent=5 // pred_fallthru
      _
  $region6: #{vit_forward.1} parent=0 // loop_footer
    %s29 = sadd.s32 1, %s25
  $region7: #{vit_forward.1} parent=0 // loop_footer_branch
    %24 = sbr.rel target = $region3
  $region8: #{vit_forward.1} parent=0 // loop_exit
    _

</llo_original>
